<compile_context>
chip_gen: v7x
topology: tpu7x:2x2x1
jax: 0.10.0
libtpu: 0.0.40
codegen_flags: <defaults>
</compile_context>

<pallas_src>
import functools

import jax
import jax.numpy as jnp
from jax import lax
from jax.experimental import pallas as pl
from jax.experimental.pallas import tpu as pltpu

LN_EPS = 1e-5  # torch.layer_norm default eps


def _gc_block_kernel(x_ref, w_att_ref, b_att_ref, w12_ref, b12_ref,
                     w15_ref, b15_ref, seg_ref, segT_ref, o_ref, *, block_n):
    # Shared per-grid-step parameter loads, hoisted out of the sample loop.
    w_att = w_att_ref[...]          # [1, C]
    b_att = b_att_ref[...]          # [1, 1]
    w12 = w12_ref[...]              # [Cr, C]
    b12 = b12_ref[...]              # [Cr, 1]
    w15 = w15_ref[...]              # [C, Cr]
    b15 = b15_ref[...]              # [C, 1]
    seg = seg_ref[...]              # [P, D]  seg[p, d] = 1.0 iff p // F == d
    segT = segT_ref[...]            # [D, P]

    dot = functools.partial(jnp.dot, preferred_element_type=jnp.float32,
                            precision=lax.Precision.HIGHEST)

    for s in range(block_n):        # static unroll over samples in this block
        x = x_ref[s]                                     # [C, P], lane-dense

        # attention = Conv3d(C, 1, k=1)(x):  [1, C] @ [C, P]  (MXU)
        att = dot(w_att, x) + b_att                      # [1, P]

        # softmax over channels (torch F.softmax default dim=1 for 5-D input)
        m = jnp.max(x, axis=0, keepdims=True)            # [1, P]
        e = jnp.exp(x - m)
        denom = jnp.sum(e, axis=0, keepdims=True)
        # NOTE: approx=True would use the EUP vrcp slot for free, but is kept
        # exact here so the f32 1e-4 parity check against the reference holds.
        sm = e * pl.reciprocal(denom, approx=False)      # [C, P]

        # Stream softmax(x) to the output now so no [C, P] value stays live
        # across the c12 / layer-norm / c15 section (cuts vreg pressure).
        o_ref[s] = sm

        # c11[c, d] = sum_f sm[c, d, f] * att[d, f]  ==  (sm * att) @ seg
        c11 = dot(sm * att, seg)                         # [C, D]

        # c12 = Conv3d(C, Cr, k=1)(c11)
        c12 = dot(w12, c11) + b12                        # [Cr, D]

        # layer_norm over all non-batch dims (no affine), then ReLU
        mu = jnp.mean(c12)
        var = jnp.mean(jnp.square(c12 - mu))
        r = jnp.maximum((c12 - mu) * lax.rsqrt(var + LN_EPS), 0.0)

        # c15 = Conv3d(Cr, C, k=1)(relu(ln))
        c15 = dot(w15, r) + b15                          # [C, D]

        # Broadcast c15 over the F spatial positions of each frame d
        # (c15 @ segT) and accumulate into the already-stored softmax.
        o_ref[s] = o_ref[s] + dot(c15, segT)             # [C, P]


def _pick_block_n(n, c, p, itemsize=4, target_bytes=2 << 20):
    """Samples per grid step: big enough to amortize the ~0.35us/step overhead,
    small enough to double-buffer comfortably in VMEM, and keeping >= 2 grid
    steps (when N >= 2) so both v7x TensorCores get work."""
    per_sample = c * p * itemsize
    nb = max(1, min(n, target_bytes // max(per_sample, 1)))
    while nb > 1 and pl.cdiv(n, nb) < 2:
        nb -= 1
    while n % nb != 0:          # keep the BlockSpec un-padded
        nb -= 1
    return nb


def gc_block(x, params, *, block_n=None):
    """x: [N, C, D, H, W] float32 -> [N, C, D, H, W] float32."""
    N, C, D, H, W = x.shape
    F = H * W
    P = D * F
    Cr = params["w12"].shape[0]

    if block_n is None:
        block_n = _pick_block_n(N, C, P)
    assert N % block_n == 0

    # Lane-dense layout: fold (D, H, W) -> P in the wrapper (layout plumbing,
    # not compute); the kernel sees [block_n, C, P] tiles.
    xf = x.reshape(N, C, P)

    # Segment matrices: `seg` sums the F lanes of each frame d (c11 reduction),
    # `segT` broadcasts a per-frame value back over its F lanes.  Both run as
    # MXU matmuls and avoid any in-kernel lane reshape.
    d_of_p = jnp.arange(P, dtype=jnp.int32) // F
    seg = (d_of_p[:, None] == jnp.arange(D, dtype=jnp.int32)[None, :]
           ).astype(jnp.float32)                         # [P, D]
    segT = seg.T                                         # [D, P]

    w_att = params["w_att"].reshape(1, C)
    b_att = params["b_att"].reshape(1, 1)
    w12 = params["w12"]                  # [Cr, C]
    b12 = params["b12"].reshape(Cr, 1)
    w15 = params["w15"]                  # [C, Cr]
    b15 = params["b15"].reshape(C, 1)

    def rep(shape):                      # replicated (grid-invariant) operand
        return pl.BlockSpec(shape, lambda n: (0,) * len(shape))

    kernel = functools.partial(_gc_block_kernel, block_n=block_n)

    out = pl.pallas_call(
        kernel,
        out_shape=jax.ShapeDtypeStruct((N, C, P), jnp.float32),
        grid_spec=pltpu.PrefetchScalarGridSpec(
            num_scalar_prefetch=0,
            grid=(N // block_n,),
            in_specs=[
                pl.BlockSpec((block_n, C, P), lambda n: (n, 0, 0)),
                rep((1, C)),
                rep((1, 1)),
                rep((Cr, C)),
                rep((Cr, 1)),
                rep((C, Cr)),
                rep((C, 1)),
                rep((P, D)),
                rep((D, P)),
            ],
            out_specs=pl.BlockSpec((block_n, C, P), lambda n: (n, 0, 0)),
        ),
        compiler_params=pltpu.CompilerParams(
            dimension_semantics=("parallel",)),
    )(xf, w_att, b_att, w12, b12, w15, b15, seg, segT)

    return out.reshape(N, C, D, H, W)


def gc_block_ref(x, params):
    """Pure-JAX reference mirroring the PyTorch forward."""
    N, C, D, H, W = x.shape
    F = H * W
    att = jnp.einsum('ncdhw,c->ndhw', x, params["w_att"],
                     precision=lax.Precision.HIGHEST) + params["b_att"]
    sm = jax.nn.softmax(x, axis=1)                       # F.softmax default dim=1
    smf = sm.reshape(N, C, D, F)
    attf = att.reshape(N, D, F)
    c11 = jnp.einsum('bcdf,bdf->bcd', smf, attf,
                     precision=lax.Precision.HIGHEST)    # [N, C, D]
    c12 = jnp.einsum('rc,bcd->brd', params["w12"], c11,
                     precision=lax.Precision.HIGHEST) + params["b12"][None, :, None]
    mu = jnp.mean(c12, axis=(1, 2), keepdims=True)
    var = jnp.mean(jnp.square(c12 - mu), axis=(1, 2), keepdims=True)
    ln = (c12 - mu) / jnp.sqrt(var + LN_EPS)
    r = jnp.maximum(ln, 0.0)
    c15 = jnp.einsum('cr,brd->bcd', params["w15"], r,
                     precision=lax.Precision.HIGHEST) + params["b15"][None, :, None]
    return sm + c15[:, :, :, None, None]


if __name__ == "__main__":
    # Small shapes consistent with a 5-D Conv3d input.
    N, C, D, H, W = 4, 8, 4, 8, 8
    reduction_ratio = 4
    Cr = -(-C // reduction_ratio)   # math.ceil(C / reduction_ratio) = 2

    key = jax.random.PRNGKey(0)
    kx, k1, k2, k3, k4, k5, k6 = jax.random.split(key, 7)

    x = jax.random.normal(kx, (N, C, D, H, W), dtype=jnp.float32)
    params = {
        "w_att": jax.random.normal(k1, (C,), dtype=jnp.float32) * 0.2,
        "b_att": jax.random.normal(k2, (), dtype=jnp.float32) * 0.1,
        "w12":   jax.random.normal(k3, (Cr, C), dtype=jnp.float32) * 0.2,
        "b12":   jax.random.normal(k4, (Cr,), dtype=jnp.float32) * 0.1,
        "w15":   jax.random.normal(k5, (C, Cr), dtype=jnp.float32) * 0.2,
        "b15":   jax.random.normal(k6, (C,), dtype=jnp.float32) * 0.1,
    }

    out = jax.block_until_ready(gc_block(x, params))
    ref = jax.block_until_ready(gc_block_ref(x, params))

    assert out.shape == (N, C, D, H, W)
    err = jnp.max(jnp.abs(out - ref))
    assert jnp.allclose(out, ref, rtol=1e-4, atol=1e-4), (
        f"mismatch vs reference: max abs err = {err:.3e}")

    print("KERNEL_OK")
</pallas_src>

<mosaic_0001>
module attributes {stable_mosaic.version = 11 : i64} {
  func.func @_gc_block_kernel(%arg0: i32, %arg1: memref<2x8x256xf32, #tpu.memory_space<vmem>>, %arg2: memref<1x8xf32, #tpu.memory_space<vmem>>, %arg3: memref<1x1xf32, #tpu.memory_space<vmem>>, %arg4: memref<2x8xf32, #tpu.memory_space<vmem>>, %arg5: memref<2x1xf32, #tpu.memory_space<vmem>>, %arg6: memref<8x2xf32, #tpu.memory_space<vmem>>, %arg7: memref<8x1xf32, #tpu.memory_space<vmem>>, %arg8: memref<256x4xf32, #tpu.memory_space<vmem>>, %arg9: memref<4x256xf32, #tpu.memory_space<vmem>>, %arg10: memref<2x8x256xf32, #tpu.memory_space<vmem>>) attributes {dimension_semantics = [#tpu.dimension_semantics<parallel>], iteration_bounds = array<i64: 2>, scalar_prefetch = 0 : i64, scratch_operands = 0 : i64, tpu.core_type = #tpu.core_type<tc>, window_params = [{transform_indices = @transform_0, window_bounds = array<i64: 2, 8, 256>}, {pipeline_mode = #tpu.pipeline_mode<synchronous>, transform_indices = @transform_1, window_bounds = array<i64: 1, 8>}, {pipeline_mode = #tpu.pipeline_mode<synchronous>, transform_indices = @transform_2, window_bounds = array<i64: 1, 1>}, {pipeline_mode = #tpu.pipeline_mode<synchronous>, transform_indices = @transform_3, window_bounds = array<i64: 2, 8>}, {pipeline_mode = #tpu.pipeline_mode<synchronous>, transform_indices = @transform_4, window_bounds = array<i64: 2, 1>}, {pipeline_mode = #tpu.pipeline_mode<synchronous>, transform_indices = @transform_5, window_bounds = array<i64: 8, 2>}, {pipeline_mode = #tpu.pipeline_mode<synchronous>, transform_indices = @transform_6, window_bounds = array<i64: 8, 1>}, {pipeline_mode = #tpu.pipeline_mode<synchronous>, transform_indices = @transform_7, window_bounds = array<i64: 256, 4>}, {pipeline_mode = #tpu.pipeline_mode<synchronous>, transform_indices = @transform_8, window_bounds = array<i64: 4, 256>}, {transform_indices = @transform_9, window_bounds = array<i64: 2, 8, 256>}]} {
    %c0 = arith.constant 0 : index
    %c0_0 = arith.constant 0 : index
    %0 = vector.load %arg2[%c0, %c0_0] : memref<1x8xf32, #tpu.memory_space<vmem>>, vector<1x8xf32>
    %c0_1 = arith.constant 0 : index
    %c0_2 = arith.constant 0 : index
    %1 = vector.load %arg3[%c0_1, %c0_2] : memref<1x1xf32, #tpu.memory_space<vmem>>, vector<1x1xf32>
    %c0_3 = arith.constant 0 : index
    %c0_4 = arith.constant 0 : index
    %2 = vector.load %arg4[%c0_3, %c0_4] : memref<2x8xf32, #tpu.memory_space<vmem>>, vector<2x8xf32>
    %c0_5 = arith.constant 0 : index
    %c0_6 = arith.constant 0 : index
    %3 = vector.load %arg5[%c0_5, %c0_6] : memref<2x1xf32, #tpu.memory_space<vmem>>, vector<2x1xf32>
    %c0_7 = arith.constant 0 : index
    %c0_8 = arith.constant 0 : index
    %4 = vector.load %arg6[%c0_7, %c0_8] : memref<8x2xf32, #tpu.memory_space<vmem>>, vector<8x2xf32>
    %c0_9 = arith.constant 0 : index
    %c0_10 = arith.constant 0 : index
    %5 = vector.load %arg7[%c0_9, %c0_10] : memref<8x1xf32, #tpu.memory_space<vmem>>, vector<8x1xf32>
    %c0_11 = arith.constant 0 : index
    %c0_12 = arith.constant 0 : index
    %6 = vector.load %arg8[%c0_11, %c0_12] : memref<256x4xf32, #tpu.memory_space<vmem>>, vector<256x4xf32>
    %c0_13 = arith.constant 0 : index
    %c0_14 = arith.constant 0 : index
    %7 = vector.load %arg9[%c0_13, %c0_14] : memref<4x256xf32, #tpu.memory_space<vmem>>, vector<4x256xf32>
    %c0_15 = arith.constant 0 : index
    %c0_16 = arith.constant 0 : index
    %c0_17 = arith.constant 0 : index
    %8 = vector.load %arg1[%c0_15, %c0_16, %c0_17] : memref<2x8x256xf32, #tpu.memory_space<vmem>>, vector<1x8x256xf32>
    %9 = vector.shape_cast %8 : vector<1x8x256xf32> to vector<8x256xf32>
    %cst = arith.constant dense<0.000000e+00> : vector<1x256xf32>
    %10 = tpu.matmul %0, %9, %cst {dimension_numbers = #tpu.dot_dimension_numbers<[1], [0], [0], [1], [0, 0, 1, 1], [], []>, precision = #tpu.contract_precision<fp32>} : vector<1x8xf32>, vector<8x256xf32>, vector<1x256xf32> -> vector<1x256xf32>
    %11 = vector.broadcast %1 : vector<1x1xf32> to vector<1x256xf32>
    %12 = arith.addf %10, %11 : vector<1x256xf32>
    %cst_18 = arith.constant dense<0xFF800000> : vector<256xf32>
    %13 = vector.multi_reduction <maximumf>, %9, %cst_18 [0] : vector<8x256xf32> to vector<256xf32>
    %14 = vector.shape_cast %13 : vector<256xf32> to vector<1x256xf32>
    %15 = vector.broadcast %14 : vector<1x256xf32> to vector<8x256xf32>
    %16 = arith.subf %9, %15 : vector<8x256xf32>
    %17 = math.exp %16 : vector<8x256xf32>
    %cst_19 = arith.constant dense<0.000000e+00> : vector<256xf32>
    %18 = vector.multi_reduction <add>, %17, %cst_19 [0] : vector<8x256xf32> to vector<256xf32>
    %19 = vector.shape_cast %18 : vector<256xf32> to vector<1x256xf32>
    %20 = tpu.reciprocal %19 : vector<1x256xf32> -> vector<1x256xf32>
    %21 = vector.broadcast %20 : vector<1x256xf32> to vector<8x256xf32>
    %22 = arith.mulf %17, %21 : vector<8x256xf32>
    %c0_20 = arith.constant 0 : index
    %c0_21 = arith.constant 0 : index
    %c0_22 = arith.constant 0 : index
    %23 = vector.load %arg10[%c0_20, %c0_21, %c0_22] : memref<2x8x256xf32, #tpu.memory_space<vmem>>, vector<1x8x256xf32>
    %24 = vector.shape_cast %23 : vector<1x8x256xf32> to vector<8x256xf32>
    %25 = vector.shape_cast %22 : vector<8x256xf32> to vector<1x8x256xf32>
    tpu.vector_store %arg10[%c0_20, %c0_21, %c0_22], %25 {strides = array<i32>} : memref<2x8x256xf32, #tpu.memory_space<vmem>>, vector<1x8x256xf32>,
    %26 = vector.broadcast %12 : vector<1x256xf32> to vector<8x256xf32>
    %27 = arith.mulf %22, %26 : vector<8x256xf32>
    %cst_23 = arith.constant dense<0.000000e+00> : vector<8x4xf32>
    %28 = tpu.matmul %27, %6, %cst_23 {dimension_numbers = #tpu.dot_dimension_numbers<[1], [0], [0], [1], [0, 0, 1, 1], [], []>, precision = #tpu.contract_precision<fp32>} : vector<8x256xf32>, vector<256x4xf32>, vector<8x4xf32> -> vector<8x4xf32>
    %cst_24 = arith.constant dense<0.000000e+00> : vector<2x4xf32>
    %29 = tpu.matmul %2, %28, %cst_24 {dimension_numbers = #tpu.dot_dimension_numbers<[1], [0], [0], [1], [0, 0, 1, 1], [], []>, precision = #tpu.contract_precision<fp32>} : vector<2x8xf32>, vector<8x4xf32>, vector<2x4xf32> -> vector<2x4xf32>
    %30 = vector.broadcast %3 : vector<2x1xf32> to vector<2x4xf32>
    %31 = arith.addf %29, %30 : vector<2x4xf32>
    %32 = vector.shape_cast %31 : vector<2x4xf32> to vector<1x2x4xf32>
    %cst_25 = arith.constant dense<0.000000e+00> : vector<1xf32>
    %33 = vector.multi_reduction <add>, %32, %cst_25 [1, 2] : vector<1x2x4xf32> to vector<1xf32>
    %34 = vector.shape_cast %33 : vector<1xf32> to vector<1x1x1xf32>
    %35 = vector.extract %34[0, 0, 0] : f32 from vector<1x1x1xf32>
    %cst_26 = arith.constant 8.000000e+00 : f32
    %36 = arith.divf %35, %cst_26 : f32
    %37 = vector.broadcast %36 : f32 to vector<2x4xf32>
    %38 = arith.subf %31, %37 : vector<2x4xf32>
    %39 = arith.mulf %38, %38 : vector<2x4xf32>
    %40 = vector.shape_cast %39 : vector<2x4xf32> to vector<1x2x4xf32>
    %cst_27 = arith.constant dense<0.000000e+00> : vector<1xf32>
    %41 = vector.multi_reduction <add>, %40, %cst_27 [1, 2] : vector<1x2x4xf32> to vector<1xf32>
    %42 = vector.shape_cast %41 : vector<1xf32> to vector<1x1x1xf32>
    %43 = vector.extract %42[0, 0, 0] : f32 from vector<1x1x1xf32>
    %cst_28 = arith.constant 8.000000e+00 : f32
    %44 = arith.divf %43, %cst_28 : f32
    %45 = vector.broadcast %36 : f32 to vector<2x4xf32>
    %46 = arith.subf %31, %45 : vector<2x4xf32>
    %cst_29 = arith.constant 9.99999974E-6 : f32
    %47 = arith.addf %44, %cst_29 : f32
    %48 = math.rsqrt %47 : f32
    %49 = vector.broadcast %48 : f32 to vector<2x4xf32>
    %50 = arith.mulf %46, %49 : vector<2x4xf32>
    %cst_30 = arith.constant 0.000000e+00 : f32
    %51 = vector.broadcast %cst_30 : f32 to vector<2x4xf32>
    %52 = arith.maximumf %50, %51 : vector<2x4xf32>
    %cst_31 = arith.constant dense<0.000000e+00> : vector<8x4xf32>
    %53 = tpu.matmul %4, %52, %cst_31 {dimension_numbers = #tpu.dot_dimension_numbers<[1], [0], [0], [1], [0, 0, 1, 1], [], []>, precision = #tpu.contract_precision<fp32>} : vector<8x2xf32>, vector<2x4xf32>, vector<8x4xf32> -> vector<8x4xf32>
    %54 = vector.broadcast %5 : vector<8x1xf32> to vector<8x4xf32>
    %55 = arith.addf %53, %54 : vector<8x4xf32>
    %c0_32 = arith.constant 0 : index
    %c0_33 = arith.constant 0 : index
    %c0_34 = arith.constant 0 : index
    %56 = vector.load %arg10[%c0_32, %c0_33, %c0_34] : memref<2x8x256xf32, #tpu.memory_space<vmem>>, vector<1x8x256xf32>
    %57 = vector.shape_cast %56 : vector<1x8x256xf32> to vector<8x256xf32>
    %cst_35 = arith.constant dense<0.000000e+00> : vector<8x256xf32>
    %58 = tpu.matmul %55, %7, %cst_35 {dimension_numbers = #tpu.dot_dimension_numbers<[1], [0], [0], [1], [0, 0, 1, 1], [], []>, precision = #tpu.contract_precision<fp32>} : vector<8x4xf32>, vector<4x256xf32>, vector<8x256xf32> -> vector<8x256xf32>
    %59 = arith.addf %57, %58 : vector<8x256xf32>
    %c0_36 = arith.constant 0 : index
    %c0_37 = arith.constant 0 : index
    %c0_38 = arith.constant 0 : index
    %60 = vector.load %arg10[%c0_36, %c0_37, %c0_38] : memref<2x8x256xf32, #tpu.memory_space<vmem>>, vector<1x8x256xf32>
    %61 = vector.shape_cast %60 : vector<1x8x256xf32> to vector<8x256xf32>
    %62 = vector.shape_cast %59 : vector<8x256xf32> to vector<1x8x256xf32>
    tpu.vector_store %arg10[%c0_36, %c0_37, %c0_38], %62 {strides = array<i32>} : memref<2x8x256xf32, #tpu.memory_space<vmem>>, vector<1x8x256xf32>,
    %c1 = arith.constant 1 : index
    %c0_39 = arith.constant 0 : index
    %c0_40 = arith.constant 0 : index
    %63 = vector.load %arg1[%c1, %c0_39, %c0_40] : memref<2x8x256xf32, #tpu.memory_space<vmem>>, vector<1x8x256xf32>
    %64 = vector.shape_cast %63 : vector<1x8x256xf32> to vector<8x256xf32>
    %cst_41 = arith.constant dense<0.000000e+00> : vector<1x256xf32>
    %65 = tpu.matmul %0, %64, %cst_41 {dimension_numbers = #tpu.dot_dimension_numbers<[1], [0], [0], [1], [0, 0, 1, 1], [], []>, precision = #tpu.contract_precision<fp32>} : vector<1x8xf32>, vector<8x256xf32>, vector<1x256xf32> -> vector<1x256xf32>
    %66 = vector.broadcast %1 : vector<1x1xf32> to vector<1x256xf32>
    %67 = arith.addf %65, %66 : vector<1x256xf32>
    %cst_42 = arith.constant dense<0xFF800000> : vector<256xf32>
    %68 = vector.multi_reduction <maximumf>, %64, %cst_42 [0] : vector<8x256xf32> to vector<256xf32>
    %69 = vector.shape_cast %68 : vector<256xf32> to vector<1x256xf32>
    %70 = vector.broadcast %69 : vector<1x256xf32> to vector<8x256xf32>
    %71 = arith.subf %64, %70 : vector<8x256xf32>
    %72 = math.exp %71 : vector<8x256xf32>
    %cst_43 = arith.constant dense<0.000000e+00> : vector<256xf32>
    %73 = vector.multi_reduction <add>, %72, %cst_43 [0] : vector<8x256xf32> to vector<256xf32>
    %74 = vector.shape_cast %73 : vector<256xf32> to vector<1x256xf32>
    %75 = tpu.reciprocal %74 : vector<1x256xf32> -> vector<1x256xf32>
    %76 = vector.broadcast %75 : vector<1x256xf32> to vector<8x256xf32>
    %77 = arith.mulf %72, %76 : vector<8x256xf32>
    %c1_44 = arith.constant 1 : index
    %c0_45 = arith.constant 0 : index
    %c0_46 = arith.constant 0 : index
    %78 = vector.load %arg10[%c1_44, %c0_45, %c0_46] : memref<2x8x256xf32, #tpu.memory_space<vmem>>, vector<1x8x256xf32>
    %79 = vector.shape_cast %78 : vector<1x8x256xf32> to vector<8x256xf32>
    %80 = vector.shape_cast %77 : vector<8x256xf32> to vector<1x8x256xf32>
    tpu.vector_store %arg10[%c1_44, %c0_45, %c0_46], %80 {strides = array<i32>} : memref<2x8x256xf32, #tpu.memory_space<vmem>>, vector<1x8x256xf32>,
    %81 = vector.broadcast %67 : vector<1x256xf32> to vector<8x256xf32>
    %82 = arith.mulf %77, %81 : vector<8x256xf32>
    %cst_47 = arith.constant dense<0.000000e+00> : vector<8x4xf32>
    %83 = tpu.matmul %82, %6, %cst_47 {dimension_numbers = #tpu.dot_dimension_numbers<[1], [0], [0], [1], [0, 0, 1, 1], [], []>, precision = #tpu.contract_precision<fp32>} : vector<8x256xf32>, vector<256x4xf32>, vector<8x4xf32> -> vector<8x4xf32>
    %cst_48 = arith.constant dense<0.000000e+00> : vector<2x4xf32>
    %84 = tpu.matmul %2, %83, %cst_48 {dimension_numbers = #tpu.dot_dimension_numbers<[1], [0], [0], [1], [0, 0, 1, 1], [], []>, precision = #tpu.contract_precision<fp32>} : vector<2x8xf32>, vector<8x4xf32>, vector<2x4xf32> -> vector<2x4xf32>
    %85 = vector.broadcast %3 : vector<2x1xf32> to vector<2x4xf32>
    %86 = arith.addf %84, %85 : vector<2x4xf32>
    %87 = vector.shape_cast %86 : vector<2x4xf32> to vector<1x2x4xf32>
    %cst_49 = arith.constant dense<0.000000e+00> : vector<1xf32>
    %88 = vector.multi_reduction <add>, %87, %cst_49 [1, 2] : vector<1x2x4xf32> to vector<1xf32>
    %89 = vector.shape_cast %88 : vector<1xf32> to vector<1x1x1xf32>
    %90 = vector.extract %89[0, 0, 0] : f32 from vector<1x1x1xf32>
    %cst_50 = arith.constant 8.000000e+00 : f32
    %91 = arith.divf %90, %cst_50 : f32
    %92 = vector.broadcast %91 : f32 to vector<2x4xf32>
    %93 = arith.subf %86, %92 : vector<2x4xf32>
    %94 = arith.mulf %93, %93 : vector<2x4xf32>
    %95 = vector.shape_cast %94 : vector<2x4xf32> to vector<1x2x4xf32>
    %cst_51 = arith.constant dense<0.000000e+00> : vector<1xf32>
    %96 = vector.multi_reduction <add>, %95, %cst_51 [1, 2] : vector<1x2x4xf32> to vector<1xf32>
    %97 = vector.shape_cast %96 : vector<1xf32> to vector<1x1x1xf32>
    %98 = vector.extract %97[0, 0, 0] : f32 from vector<1x1x1xf32>
    %cst_52 = arith.constant 8.000000e+00 : f32
    %99 = arith.divf %98, %cst_52 : f32
    %100 = vector.broadcast %91 : f32 to vector<2x4xf32>
    %101 = arith.subf %86, %100 : vector<2x4xf32>
    %cst_53 = arith.constant 9.99999974E-6 : f32
    %102 = arith.addf %99, %cst_53 : f32
    %103 = math.rsqrt %102 : f32
    %104 = vector.broadcast %103 : f32 to vector<2x4xf32>
    %105 = arith.mulf %101, %104 : vector<2x4xf32>
    %cst_54 = arith.constant 0.000000e+00 : f32
    %106 = vector.broadcast %cst_54 : f32 to vector<2x4xf32>
    %107 = arith.maximumf %105, %106 : vector<2x4xf32>
    %cst_55 = arith.constant dense<0.000000e+00> : vector<8x4xf32>
    %108 = tpu.matmul %4, %107, %cst_55 {dimension_numbers = #tpu.dot_dimension_numbers<[1], [0], [0], [1], [0, 0, 1, 1], [], []>, precision = #tpu.contract_precision<fp32>} : vector<8x2xf32>, vector<2x4xf32>, vector<8x4xf32> -> vector<8x4xf32>
    %109 = vector.broadcast %5 : vector<8x1xf32> to vector<8x4xf32>
    %110 = arith.addf %108, %109 : vector<8x4xf32>
    %c1_56 = arith.constant 1 : index
    %c0_57 = arith.constant 0 : index
    %c0_58 = arith.constant 0 : index
    %111 = vector.load %arg10[%c1_56, %c0_57, %c0_58] : memref<2x8x256xf32, #tpu.memory_space<vmem>>, vector<1x8x256xf32>
    %112 = vector.shape_cast %111 : vector<1x8x256xf32> to vector<8x256xf32>
    %cst_59 = arith.constant dense<0.000000e+00> : vector<8x256xf32>
    %113 = tpu.matmul %110, %7, %cst_59 {dimension_numbers = #tpu.dot_dimension_numbers<[1], [0], [0], [1], [0, 0, 1, 1], [], []>, precision = #tpu.contract_precision<fp32>} : vector<8x4xf32>, vector<4x256xf32>, vector<8x256xf32> -> vector<8x256xf32>
    %114 = arith.addf %112, %113 : vector<8x256xf32>
    %c1_60 = arith.constant 1 : index
    %c0_61 = arith.constant 0 : index
    %c0_62 = arith.constant 0 : index
    %115 = vector.load %arg10[%c1_60, %c0_61, %c0_62] : memref<2x8x256xf32, #tpu.memory_space<vmem>>, vector<1x8x256xf32>
    %116 = vector.shape_cast %115 : vector<1x8x256xf32> to vector<8x256xf32>
    %117 = vector.shape_cast %114 : vector<8x256xf32> to vector<1x8x256xf32>
    tpu.vector_store %arg10[%c1_60, %c0_61, %c0_62], %117 {strides = array<i32>} : memref<2x8x256xf32, #tpu.memory_space<vmem>>, vector<1x8x256xf32>,
    return
  }
  func.func @transform_0(%arg0: i32) -> (i32, i32, i32) {
    %c0_i32 = arith.constant 0 : i32
    %c0_i32_0 = arith.constant 0 : i32
    %c0_i32_1 = arith.constant 0 : i32
    return %arg0, %c0_i32, %c0_i32_0 : i32, i32, i32
  }
  func.func @transform_1(%arg0: i32) -> (i32, i32) {
    %c0_i32 = arith.constant 0 : i32
    %c0_i32_0 = arith.constant 0 : i32
    %c0_i32_1 = arith.constant 0 : i32
    return %c0_i32, %c0_i32_0 : i32, i32
  }
  func.func @transform_2(%arg0: i32) -> (i32, i32) {
    %c0_i32 = arith.constant 0 : i32
    %c0_i32_0 = arith.constant 0 : i32
    %c0_i32_1 = arith.constant 0 : i32
    return %c0_i32, %c0_i32_0 : i32, i32
  }
  func.func @transform_3(%arg0: i32) -> (i32, i32) {
    %c0_i32 = arith.constant 0 : i32
    %c0_i32_0 = arith.constant 0 : i32
    %c0_i32_1 = arith.constant 0 : i32
    return %c0_i32, %c0_i32_0 : i32, i32
  }
  func.func @transform_4(%arg0: i32) -> (i32, i32) {
    %c0_i32 = arith.constant 0 : i32
    %c0_i32_0 = arith.constant 0 : i32
    %c0_i32_1 = arith.constant 0 : i32
    return %c0_i32, %c0_i32_0 : i32, i32
  }
  func.func @transform_5(%arg0: i32) -> (i32, i32) {
    %c0_i32 = arith.constant 0 : i32
    %c0_i32_0 = arith.constant 0 : i32
    %c0_i32_1 = arith.constant 0 : i32
    return %c0_i32, %c0_i32_0 : i32, i32
  }
  func.func @transform_6(%arg0: i32) -> (i32, i32) {
    %c0_i32 = arith.constant 0 : i32
    %c0_i32_0 = arith.constant 0 : i32
    %c0_i32_1 = arith.constant 0 : i32
    return %c0_i32, %c0_i32_0 : i32, i32
  }
  func.func @transform_7(%arg0: i32) -> (i32, i32) {
    %c0_i32 = arith.constant 0 : i32
    %c0_i32_0 = arith.constant 0 : i32
    %c0_i32_1 = arith.constant 0 : i32
    return %c0_i32, %c0_i32_0 : i32, i32
  }
  func.func @transform_8(%arg0: i32) -> (i32, i32) {
    %c0_i32 = arith.constant 0 : i32
    %c0_i32_0 = arith.constant 0 : i32
    %c0_i32_1 = arith.constant 0 : i32
    return %c0_i32, %c0_i32_0 : i32, i32
  }
  func.func @transform_9(%arg0: i32) -> (i32, i32, i32) {
    %c0_i32 = arith.constant 0 : i32
    %c0_i32_0 = arith.constant 0 : i32
    %c0_i32_1 = arith.constant 0 : i32
    return %arg0, %c0_i32, %c0_i32_0 : i32, i32, i32
  }
}

</mosaic_0001>

<llo_original>
// kernel: tpu_custom_call.1
$region0: #{tpu_custom_call.1}
  #allocation0 [shape = 'u32[]', space=smem, size = 0x4, offset = 0x4, fixed_abs, tag = 'smem constant byte address 0x4 - core index']
  #allocation1 [shape = 'u32[144,128]{1,0:T(1,128)}', space=vmem, size = 0x12000, scoped, tag = 'internal scratch']
  #allocation2 [shape = 'f32[1,1]{1,0:T(1,128)S(1)}', space=vmem, size = 0x200, scoped, tag = 'scoped memory for tpu_custom_call.1']
  %s0 = inlined_call_operand.vmem [shape: f32[4,8,256], index: 0, kind: input, shape index: {}]
  %s1 = inlined_call_operand.vmem [shape: f32[1,8], index: 1, kind: input, shape index: {}]
  %s2 = inlined_call_operand.<no memory space> [shape: f32[1,1], index: 2, kind: input, shape index: {}]
  %s3 = inlined_call_operand.vmem [shape: f32[2,8], index: 3, kind: input, shape index: {}]
  %s4 = inlined_call_operand.vmem [shape: f32[2,1], index: 4, kind: input, shape index: {}]
  %s5 = inlined_call_operand.vmem [shape: f32[8,2], index: 5, kind: input, shape index: {}]
  %s6 = inlined_call_operand.vmem [shape: f32[8,1], index: 6, kind: input, shape index: {}]
  %s7 = inlined_call_operand.vmem [shape: f32[256,4], index: 7, kind: input, shape index: {}]
  %s8 = inlined_call_operand.vmem [shape: f32[4,256], index: 8, kind: input, shape index: {}]
  %s9 = inlined_call_operand.hbm [shape: f32[4,8,256], index: 9, kind: output, shape index: {}]
  %s10 = sld [smem:[#allocation0]]
  $region69: #{tpu_custom_call.1} parent=0
    _
  %s12 = ssub.s32 1, %s10
  %s13 = scalar_select 0, %s12, %s10
  %v14 = vstv %s2
  %15 = vst [vmem:[#allocation2] sm:$0x1] %v14
  $region1: #{tpu_custom_call.1} parent=0
    #allocation3 [shape = 'u8[32768]{0}', space=vmem, size = 0x8000, scoped, tag = 'output window, operand 0']
    #allocation4 [shape = 's32[2]{0}', space=sflag, size = 0x8, scoped, tag = 'scoped memory for tpu_custom_call.1']
    %16 = vsyncpa [#allocation4], 0
    %s17 = scalar_lea.sflag [#allocation4], 1
    %18 = vsyncpa %s17, 0
    loop: start=0, step=1, limit=4
    $region2: #{tpu_custom_call.1} parent=1 // loop_pre_header
      _
    $region3: #{tpu_custom_call.1} parent=1 // loop_header
      %s20 = sphi 0, %s24
      %p21 = scmp.ge.s32.totalorder %s20, 4
      %s30 = sphi 0, %s32
      %s33 = sphi 0, %s30
      %s34 = sphi 0, %s33
      %s50 = sphi 0, %s34
      %s54 = sphi 0, %s54
      %s56 = sphi 0, %s54
      %s57 = sphi 0, %s56
      %s71 = sphi 0, %s57
      %s75 = sphi 0, %s75
      %s77 = sphi 0, %s75
      %s78 = sphi 0, %s77
      %s92 = sphi 0, %s78
      %s96 = sphi 0, %s96
      %s98 = sphi 0, %s96
      %s99 = sphi 0, %s98
      %s113 = sphi 0, %s99
      %s117 = sphi 0, %s117
      %s119 = sphi 0, %s117
      %s120 = sphi 0, %s119
      %s134 = sphi 0, %s120
      %s138 = sphi 0, %s138
      %s140 = sphi 0, %s138
      %s141 = sphi 0, %s140
      %s155 = sphi 0, %s141
      %s159 = sphi 0, %s159
      %s161 = sphi 0, %s159
      %s162 = sphi 0, %s161
      %s176 = sphi 0, %s162
      %s180 = sphi 0, %s180
      %s182 = sphi 0, %s180
      %s183 = sphi 0, %s182
      %s197 = sphi 0, %s183
      %s201 = sphi 0, %s201
      %s203 = sphi 0, %s201
      %s204 = sphi 0, %s203
      %s218 = sphi 0, %s204
      %s224 = sphi 0, %s226
      %s227 = sphi 0, %s224
      %s228 = sphi 0, %s227
      %s244 = sphi 0, %s228
    $region4: #{tpu_custom_call.1} parent=1 // loop_header_branch
      %23 = sbr.rel (%p21) target = $region8
    $region5: #{tpu_custom_call.1} parent=1 // loop_body
      %s25 = ssub.s32 %s20, 1
      %s26 = ssub.s32 %s20, 2
      %s27 = sadd.s32 %s20, 1
      %s28 = ssub.s32 %s20, %s27
      %p29 = scmp.eq.s32.totalorder %s28, 0
      %s31 = sadd.s32 %s30, 1
      %s32 = scalar_select %p29, %s30, %s31
      %p35 = pneg %p29
      %p36 = scmp.eq.s32.totalorder %s20, 1
      %p37 = por %p35, %p36
      %p38 = scmp.ne.s32.totalorder %s30, %s33
      %p39 = scmp.eq.s32.totalorder %s20, 0
      %p40 = por %p38, %p39
      %p41 = scmp.ne.s32.totalorder %s30, %s33
      %p42 = scmp.eq.s32.totalorder %s25, 1
      %p43 = por %p41, %p42
      %p44 = scmp.ne.s32.totalorder %s33, %s34
      %p45 = scmp.eq.s32.totalorder %s25, 0
      %p46 = por %p44, %p45
      %p47 = scmp.ne.s32.totalorder %s33, %s34
      %p48 = scmp.eq.s32.totalorder %s26, 1
      %p49 = por %p47, %p48
      %p51 = scmp.ne.s32.totalorder %s34, %s50
      %p52 = scmp.eq.s32.totalorder %s26, 0
      %p53 = por %p51, %p52
      %s55 = sadd.s32 %s54, 1
      %p58 = scmp.eq.s32.totalorder %s20, 1
      %p59 = scmp.ne.s32.totalorder %s54, %s56
      %p60 = scmp.eq.s32.totalorder %s20, 0
      %p61 = por %p59, %p60
      %p62 = scmp.ne.s32.totalorder %s54, %s56
      %p63 = scmp.eq.s32.totalorder %s25, 1
      %p64 = por %p62, %p63
      %p65 = scmp.ne.s32.totalorder %s56, %s57
      %p66 = scmp.eq.s32.totalorder %s25, 0
      %p67 = por %p65, %p66
      %p68 = scmp.ne.s32.totalorder %s56, %s57
      %p69 = scmp.eq.s32.totalorder %s26, 1
      %p70 = por %p68, %p69
      %p72 = scmp.ne.s32.totalorder %s57, %s71
      %p73 = scmp.eq.s32.totalorder %s26, 0
      %p74 = por %p72, %p73
      %s76 = sadd.s32 %s75, 1
      %p79 = scmp.eq.s32.totalorder %s20, 1
      %p80 = scmp.ne.s32.totalorder %s75, %s77
      %p81 = scmp.eq.s32.totalorder %s20, 0
      %p82 = por %p80, %p81
      %p83 = scmp.ne.s32.totalorder %s75, %s77
      %p84 = scmp.eq.s32.totalorder %s25, 1
      %p85 = por %p83, %p84
      %p86 = scmp.ne.s32.totalorder %s77, %s78
      %p87 = scmp.eq.s32.totalorder %s25, 0
      %p88 = por %p86, %p87
      %p89 = scmp.ne.s32.totalorder %s77, %s78
      %p90 = scmp.eq.s32.totalorder %s26, 1
      %p91 = por %p89, %p90
      %p93 = scmp.ne.s32.totalorder %s78, %s92
      %p94 = scmp.eq.s32.totalorder %s26, 0
      %p95 = por %p93, %p94
      %s97 = sadd.s32 %s96, 1
      %p100 = scmp.eq.s32.totalorder %s20, 1
      %p101 = scmp.ne.s32.totalorder %s96, %s98
      %p102 = scmp.eq.s32.totalorder %s20, 0
      %p103 = por %p101, %p102
      %p104 = scmp.ne.s32.totalorder %s96, %s98
      %p105 = scmp.eq.s32.totalorder %s25, 1
      %p106 = por %p104, %p105
      %p107 = scmp.ne.s32.totalorder %s98, %s99
      %p108 = scmp.eq.s32.totalorder %s25, 0
      %p109 = por %p107, %p108
      %p110 = scmp.ne.s32.totalorder %s98, %s99
      %p111 = scmp.eq.s32.totalorder %s26, 1
      %p112 = por %p110, %p111
      %p114 = scmp.ne.s32.totalorder %s99, %s113
      %p115 = scmp.eq.s32.totalorder %s26, 0
      %p116 = por %p114, %p115
      %s118 = sadd.s32 %s117, 1
      %p121 = scmp.eq.s32.totalorder %s20, 1
      %p122 = scmp.ne.s32.totalorder %s117, %s119
      %p123 = scmp.eq.s32.totalorder %s20, 0
      %p124 = por %p122, %p123
      %p125 = scmp.ne.s32.totalorder %s117, %s119
      %p126 = scmp.eq.s32.totalorder %s25, 1
      %p127 = por %p125, %p126
      %p128 = scmp.ne.s32.totalorder %s119, %s120
      %p129 = scmp.eq.s32.totalorder %s25, 0
      %p130 = por %p128, %p129
      %p131 = scmp.ne.s32.totalorder %s119, %s120
      %p132 = scmp.eq.s32.totalorder %s26, 1
      %p133 = por %p131, %p132
      %p135 = scmp.ne.s32.totalorder %s120, %s134
      %p136 = scmp.eq.s32.totalorder %s26, 0
      %p137 = por %p135, %p136
      %s139 = sadd.s32 %s138, 1
      %p142 = scmp.eq.s32.totalorder %s20, 1
      %p143 = scmp.ne.s32.totalorder %s138, %s140
      %p144 = scmp.eq.s32.totalorder %s20, 0
      %p145 = por %p143, %p144
      %p146 = scmp.ne.s32.totalorder %s138, %s140
      %p147 = scmp.eq.s32.totalorder %s25, 1
      %p148 = por %p146, %p147
      %p149 = scmp.ne.s32.totalorder %s140, %s141
      %p150 = scmp.eq.s32.totalorder %s25, 0
      %p151 = por %p149, %p150
      %p152 = scmp.ne.s32.totalorder %s140, %s141
      %p153 = scmp.eq.s32.totalorder %s26, 1
      %p154 = por %p152, %p153
      %p156 = scmp.ne.s32.totalorder %s141, %s155
      %p157 = scmp.eq.s32.totalorder %s26, 0
      %p158 = por %p156, %p157
      %s160 = sadd.s32 %s159, 1
      %p163 = scmp.eq.s32.totalorder %s20, 1
      %p164 = scmp.ne.s32.totalorder %s159, %s161
      %p165 = scmp.eq.s32.totalorder %s20, 0
      %p166 = por %p164, %p165
      %p167 = scmp.ne.s32.totalorder %s159, %s161
      %p168 = scmp.eq.s32.totalorder %s25, 1
      %p169 = por %p167, %p168
      %p170 = scmp.ne.s32.totalorder %s161, %s162
      %p171 = scmp.eq.s32.totalorder %s25, 0
      %p172 = por %p170, %p171
      %p173 = scmp.ne.s32.totalorder %s161, %s162
      %p174 = scmp.eq.s32.totalorder %s26, 1
      %p175 = por %p173, %p174
      %p177 = scmp.ne.s32.totalorder %s162, %s176
      %p178 = scmp.eq.s32.totalorder %s26, 0
      %p179 = por %p177, %p178
      %s181 = sadd.s32 %s180, 1
      %p184 = scmp.eq.s32.totalorder %s20, 1
      %p185 = scmp.ne.s32.totalorder %s180, %s182
      %p186 = scmp.eq.s32.totalorder %s20, 0
      %p187 = por %p185, %p186
      %p188 = scmp.ne.s32.totalorder %s180, %s182
      %p189 = scmp.eq.s32.totalorder %s25, 1
      %p190 = por %p188, %p189
      %p191 = scmp.ne.s32.totalorder %s182, %s183
      %p192 = scmp.eq.s32.totalorder %s25, 0
      %p193 = por %p191, %p192
      %p194 = scmp.ne.s32.totalorder %s182, %s183
      %p195 = scmp.eq.s32.totalorder %s26, 1
      %p196 = por %p194, %p195
      %p198 = scmp.ne.s32.totalorder %s183, %s197
      %p199 = scmp.eq.s32.totalorder %s26, 0
      %p200 = por %p198, %p199
      %s202 = sadd.s32 %s201, 1
      %p205 = scmp.eq.s32.totalorder %s20, 1
      %p206 = scmp.ne.s32.totalorder %s201, %s203
      %p207 = scmp.eq.s32.totalorder %s20, 0
      %p208 = por %p206, %p207
      %p209 = scmp.ne.s32.totalorder %s201, %s203
      %p210 = scmp.eq.s32.totalorder %s25, 1
      %p211 = por %p209, %p210
      %p212 = scmp.ne.s32.totalorder %s203, %s204
      %p213 = scmp.eq.s32.totalorder %s25, 0
      %p214 = por %p212, %p213
      %p215 = scmp.ne.s32.totalorder %s203, %s204
      %p216 = scmp.eq.s32.totalorder %s26, 1
      %p217 = por %p215, %p216
      %p219 = scmp.ne.s32.totalorder %s204, %s218
      %p220 = scmp.eq.s32.totalorder %s26, 0
      %p221 = por %p219, %p220
      %s222 = ssub.s32 %s20, %s27
      %p223 = scmp.eq.s32.totalorder %s222, 0
      %s225 = sadd.s32 %s224, 1
      %s226 = scalar_select %p223, %s224, %s225
      %p229 = pneg %p223
      %p230 = scmp.eq.s32.totalorder %s20, 1
      %p231 = por %p229, %p230
      %p232 = scmp.ne.s32.totalorder %s224, %s227
      %p233 = scmp.eq.s32.totalorder %s20, 0
      %p234 = por %p232, %p233
      %p235 = scmp.ne.s32.totalorder %s224, %s227
      %p236 = scmp.eq.s32.totalorder %s25, 1
      %p237 = por %p235, %p236
      %p238 = scmp.ne.s32.totalorder %s227, %s228
      %p239 = scmp.eq.s32.totalorder %s25, 0
      %p240 = por %p238, %p239
      %p241 = scmp.ne.s32.totalorder %s227, %s228
      %p242 = scmp.eq.s32.totalorder %s26, 1
      %p243 = por %p241, %p242
      %p245 = scmp.ne.s32.totalorder %s228, %s244
      %p246 = scmp.eq.s32.totalorder %s26, 0
      %p247 = por %p245, %p246
      %p248 = scmp.le.s32.totalorder 1, %s20
      %p249 = scmp.lt.s32.totalorder %s20, 3
      %p250 = pnand %p248, %p249
      %p251 = pneg %p250
      // Predicated region
      $region9: #{tpu_custom_call.1} parent=5 // pred_check
        _
      $region10: #{tpu_custom_call.1} parent=5 // pred_check_branch
        %253 = sbr.rel (%p250) target = $region12
      $region11: #{tpu_custom_call.1} parent=5 // pred_region
        %s254 = ssub.s32 %s20, 1
        // Predicated region
        $region13: #{tpu_custom_call.1} parent=11 // pred_check
          %p255 = pneg %p67
        $region14: #{tpu_custom_call.1} parent=11 // pred_check_branch
          %257 = sbr.rel (%p255) target = $region16
        $region15: #{tpu_custom_call.1} parent=11 // pred_region
          _
        $region16: #{tpu_custom_call.1} parent=11 // pred_fallthru
          _
        // Predicated region
        $region17: #{tpu_custom_call.1} parent=11 // pred_check
          %p258 = pneg %p88
        $region18: #{tpu_custom_call.1} parent=11 // pred_check_branch
          %260 = sbr.rel (%p258) target = $region20
        $region19: #{tpu_custom_call.1} parent=11 // pred_region
          _
        $region20: #{tpu_custom_call.1} parent=11 // pred_fallthru
          _
        // Predicated region
        $region21: #{tpu_custom_call.1} parent=11 // pred_check
          %p261 = pneg %p109
        $region22: #{tpu_custom_call.1} parent=11 // pred_check_branch
          %263 = sbr.rel (%p261) target = $region24
        $region23: #{tpu_custom_call.1} parent=11 // pred_region
          _
        $region24: #{tpu_custom_call.1} parent=11 // pred_fallthru
          _
        // Predicated region
        $region25: #{tpu_custom_call.1} parent=11 // pred_check
          %p264 = pneg %p130
        $region26: #{tpu_custom_call.1} parent=11 // pred_check_branch
          %266 = sbr.rel (%p264) target = $region28
        $region27: #{tpu_custom_call.1} parent=11 // pred_region
          _
        $region28: #{tpu_custom_call.1} parent=11 // pred_fallthru
          _
        // Predicated region
        $region29: #{tpu_custom_call.1} parent=11 // pred_check
          %p267 = pneg %p151
        $region30: #{tpu_custom_call.1} parent=11 // pred_check_branch
          %269 = sbr.rel (%p267) target = $region32
        $region31: #{tpu_custom_call.1} parent=11 // pred_region
          _
        $region32: #{tpu_custom_call.1} parent=11 // pred_fallthru
          _
        // Predicated region
        $region33: #{tpu_custom_call.1} parent=11 // pred_check
          %p270 = pneg %p172
        $region34: #{tpu_custom_call.1} parent=11 // pred_check_branch
          %272 = sbr.rel (%p270) target = $region36
        $region35: #{tpu_custom_call.1} parent=11 // pred_region
          _
        $region36: #{tpu_custom_call.1} parent=11 // pred_fallthru
          _
        // Predicated region
        $region37: #{tpu_custom_call.1} parent=11 // pred_check
          %p273 = pneg %p193
        $region38: #{tpu_custom_call.1} parent=11 // pred_check_branch
          %275 = sbr.rel (%p273) target = $region40
        $region39: #{tpu_custom_call.1} parent=11 // pred_region
          _
        $region40: #{tpu_custom_call.1} parent=11 // pred_fallthru
          _
        // Predicated region
        $region41: #{tpu_custom_call.1} parent=11 // pred_check
          %p276 = pneg %p214
        $region42: #{tpu_custom_call.1} parent=11 // pred_check_branch
          %278 = sbr.rel (%p276) target = $region44
        $region43: #{tpu_custom_call.1} parent=11 // pred_region
          _
        $region44: #{tpu_custom_call.1} parent=11 // pred_fallthru
          _
      $region12: #{tpu_custom_call.1} parent=5 // pred_fallthru
        _
      %p279 = scmp.lt.s32.totalorder %s20, 2
      // Predicated region
      $region45: #{tpu_custom_call.1} parent=5 // pred_check
        %p280 = pneg %p279
      $region46: #{tpu_custom_call.1} parent=5 // pred_check_branch
        %282 = sbr.rel (%p280) target = $region48
      $region47: #{tpu_custom_call.1} parent=5 // pred_region
        // Predicated region
        $region49: #{tpu_custom_call.1} parent=47 // pred_check
          %p283 = pneg %p40
        $region50: #{tpu_custom_call.1} parent=47 // pred_check_branch
          %285 = sbr.rel (%p283) target = $region52
        $region51: #{tpu_custom_call.1} parent=47 // pred_region
          %s286 = smul.u32 2, %s20
          %p287 = scmp.lt.s32.totalorder %s286, 3
          %s288 = scalar_select %p287, %s286, 3
          %s289 = smul.addr %s288, 2
          %s290 = smul.addr %s289, 8
          %s291 = scalar_lea.vmem %s0, %s290
          %s292 = smul.u32 2, %s20
        $region52: #{tpu_custom_call.1} parent=47 // pred_fallthru
          _
      $region48: #{tpu_custom_call.1} parent=5 // pred_fallthru
        _
      %p293 = scmp.le.s32.totalorder 1, %s20
      %p294 = scmp.lt.s32.totalorder %s20, 3
      %p295 = pnand %p293, %p294
      %p296 = pneg %p295
      // Predicated region
      $region53: #{tpu_custom_call.1} parent=5 // pred_check
        _
      $region54: #{tpu_custom_call.1} parent=5 // pred_check_branch
        %298 = sbr.rel (%p295) target = $region56
      $region55: #{tpu_custom_call.1} parent=5 // pred_region
        %s299 = ssub.s32 %s20, 1
        %s300 = smul.u32 2, %s25
        %p301 = scmp.lt.s32.totalorder %s300, 3
        %s302 = scalar_select %p301, %s300, 3
        %s303 = smul.addr %s302, 2
        %s304 = smul.addr %s303, 8
        %s305 = scalar_lea.vmem %s0, %s304
        %p306 = pneg %p46
        %p307 = pneg %p43
        %p308 = pneg %p67
        %p309 = pneg %p64
        %p310 = pneg %p88
        %p311 = pneg %p85
        %p312 = pneg %p109
        %p313 = pneg %p106
        %p314 = pneg %p130
        %p315 = pneg %p127
        %p316 = pneg %p151
        %p317 = pneg %p148
        %p318 = pneg %p172
        %p319 = pneg %p169
        %p320 = pneg %p193
        %p321 = pneg %p190
        %p322 = pneg %p214
        %p323 = pneg %p211
        %p324 = pneg %p240
        %p325 = pneg %p237
        %s326 = sand.u32 %s227, 1
        %s327 = scalar_lea.sflag [#allocation4], %s326
        %s328 = sand.u32 %s227, 1
        %s329 = smul.addr %s328, 32
        %s330 = scalar_lea.vmem [#allocation3], %s329
        %s331 = smul.u32 2, %s25
        %p332 = scmp.lt.s32.totalorder %s331, 3
        %s333 = scalar_select %p332, %s331, 3
        %s334 = smul.addr %s333, 2
        %s335 = smul.addr %s334, 8
        %s336 = scalar_lea.vmem %s0, %s335
        %s337 = smul.u32 2, %s25
        %s338 = smul.u32 2, %s25
        %v339 = vld [vmem:[%s1] sm:$0x1]
        %v340 = vld [vmem:[#allocation2] sm:$0x1]
        %v341 = vld [vmem:[%s3] sm:$0x3]
        %v342 = vld [vmem:[%s4] sm:$0x3]
        %v343 = vld [vmem:[%s5] sm:$0xff]
        %v344 = vld [vmem:[%s6] sm:$0xff]
        %v345 = vld [vmem:[%s7] sm:$0xff]
        %v346 = vld [vmem:[%s7 + $0x8] sm:$0xff]
        %v347 = vld [vmem:[%s7 + $0x10] sm:$0xff]
        %v348 = vld [vmem:[%s7 + $0x18] sm:$0xff]
        %v349 = vld [vmem:[%s7 + $0x20] sm:$0xff]
        %v350 = vld [vmem:[%s7 + $0x28] sm:$0xff]
        %v351 = vld [vmem:[%s7 + $0x30] sm:$0xff]
        %v352 = vld [vmem:[%s7 + $0x38] sm:$0xff]
        %v353 = vld [vmem:[%s7 + $0x40] sm:$0xff]
        %v354 = vld [vmem:[%s7 + $0x48] sm:$0xff]
        %v355 = vld [vmem:[%s7 + $0x50] sm:$0xff]
        %v356 = vld [vmem:[%s7 + $0x58] sm:$0xff]
        %v357 = vld [vmem:[%s7 + $0x60] sm:$0xff]
        %v358 = vld [vmem:[%s7 + $0x68] sm:$0xff]
        %v359 = vld [vmem:[%s7 + $0x70] sm:$0xff]
        %v360 = vld [vmem:[%s7 + $0x78] sm:$0xff]
        %v361 = vld [vmem:[%s7 + $0x80] sm:$0xff]
        %v362 = vld [vmem:[%s7 + $0x88] sm:$0xff]
        %v363 = vld [vmem:[%s7 + $0x90] sm:$0xff]
        %v364 = vld [vmem:[%s7 + $0x98] sm:$0xff]
        %v365 = vld [vmem:[%s7 + $0xa0] sm:$0xff]
        %v366 = vld [vmem:[%s7 + $0xa8] sm:$0xff]
        %v367 = vld [vmem:[%s7 + $0xb0] sm:$0xff]
        %v368 = vld [vmem:[%s7 + $0xb8] sm:$0xff]
        %v369 = vld [vmem:[%s7 + $0xc0] sm:$0xff]
        %v370 = vld [vmem:[%s7 + $0xc8] sm:$0xff]
        %v371 = vld [vmem:[%s7 + $0xd0] sm:$0xff]
        %v372 = vld [vmem:[%s7 + $0xd8] sm:$0xff]
        %v373 = vld [vmem:[%s7 + $0xe0] sm:$0xff]
        %v374 = vld [vmem:[%s7 + $0xe8] sm:$0xff]
        %v375 = vld [vmem:[%s7 + $0xf0] sm:$0xff]
        %v376 = vld [vmem:[%s7 + $0xf8] sm:$0xff]
        %v377 = vld [vmem:[%s8] sm:$0xff]
        %v378 = vld [vmem:[%s336] sm:$0xff]
        %v379 = vld [vmem:[%s336 + $0x8] sm:$0xff]
        %381 = vset.pattern.permute.xlu0 0
        %382 = vperm.xlu0 %381, %v340
        %v383 = vpop.permute.xlu0 %382
        %v385 = vlaneseq
        %v386 = vshrl.u32 %v385, 7
        %v387 = vsub.s32 0, %v386
        %v388 = vrot.slane %v383, %v387
        %vm389 = vcmask 64512
        %v391 = vsel %vm389, %v339, 0
        %v393 = vand.u32 %v379, 4294901760
        %394 = vmatprep.subr.mxu0 %v393
        %v395 = vand.u32 %v378, 4294901760
        %396 = vmatpush1.msra.mxu0 %v395
        %397 = vmatprep.subr.mxu0 0.0
        %398 = vmatpush1.msra.mxu0 0.0
        %399 = vmatprep.subr.mxu0 0.0
        %400 = vmatpush1.msra.mxu0 0.0
        %401 = vmatprep.subr.mxu0 0.0
        %402 = vmatpush1.msra.mxu0 0.0
        %403 = vmatprep.subr.mxu0 0.0
        %404 = vmatpush1.msra.mxu0 0.0
        %405 = vmatprep.subr.mxu0 0.0
        %406 = vmatpush1.msra.mxu0 0.0
        %407 = vmatprep.subr.mxu0 0.0
        %408 = vmatpush1.msra.mxu0 0.0
        %409 = vmatprep.subr.mxu0 0.0
        %410 = vmatpush1.msra.mxu0 0.0
        %411 = vmatprep.subr.mxu0 0.0
        %412 = vmatpush1.msra.mxu0 0.0
        %413 = vmatprep.subr.mxu0 0.0
        %414 = vmatpush1.msra.mxu0 0.0
        %415 = vmatprep.subr.mxu0 0.0
        %416 = vmatpush1.msra.mxu0 0.0
        %417 = vmatprep.subr.mxu0 0.0
        %418 = vmatpush1.msra.mxu0 0.0
        %419 = vmatprep.subr.mxu0 0.0
        %420 = vmatpush1.msra.mxu0 0.0
        %421 = vmatprep.subr.mxu0 0.0
        %422 = vmatpush1.msra.mxu0 0.0
        %423 = vmatprep.subr.mxu0 0.0
        %424 = vmatpush1.msra.mxu0 0.0
        %425 = vmatprep.subr.mxu0 0.0
        %426 = vmatpush1.msra.mxu0 0.0
        %427 = vmatprep.subr.mxu0 0.0
        %428 = vmatpush1.msra.mxu0 0.0
        %429 = vmatprep.subr.mxu0 0.0
        %430 = vmatpush1.msra.mxu0 0.0
        %431 = vmatprep.subr.mxu0 0.0
        %432 = vmatpush1.msra.mxu0 0.0
        %433 = vmatprep.subr.mxu0 0.0
        %434 = vmatpush1.msra.mxu0 0.0
        %435 = vmatprep.subr.mxu0 0.0
        %436 = vmatpush1.msra.mxu0 0.0
        %437 = vmatprep.subr.mxu0 0.0
        %438 = vmatpush1.msra.mxu0 0.0
        %439 = vmatprep.subr.mxu0 0.0
        %440 = vmatpush1.msra.mxu0 0.0
        %441 = vmatprep.subr.mxu0 0.0
        %442 = vmatpush1.msra.mxu0 0.0
        %443 = vmatprep.subr.mxu0 0.0
        %444 = vmatpush1.msra.mxu0 0.0
        %445 = vmatprep.subr.mxu0 0.0
        %446 = vmatpush1.msra.mxu0 0.0
        %447 = vmatprep.subr.mxu0 0.0
        %448 = vmatpush1.msra.mxu0 0.0
        %449 = vmatprep.subr.mxu0 0.0
        %450 = vmatpush1.msra.mxu0 0.0
        %451 = vmatprep.subr.mxu0 0.0
        %452 = vmatpush1.msra.mxu0 0.0
        %453 = vmatprep.subr.mxu0 0.0
        %454 = vmatpush1.msra.mxu0 0.0
        %455 = vmatprep.subr.mxu0 0.0
        %456 = vmatpush1.msra.mxu0 0.0
        %457 = vmatprep.subr.mxu0 0.0
        %458 = vmatpush1.msra.mxu0 0.0
        %459 = vmatprep.mubr.f32.mxu0 0.0
        %v460 = vand.u32 %v391, 4294901760
        %v461 = vsub.f32 %v391, %v460
        %v462 = vand.u32 %v461, 4294901760
        %v463 = vsub.f32 %v461, %v462
        %v464 = vand.u32 %v463, 4294901760
        %465 = vmatmul.mubr.f32.gmra.mrb[0].mxu0 %v464
        %v466 = vpop.f32.mrb[0].mxu0
        %v467 = vadd.f32 %v388, %v466
        %v468 = vpop.f32.mrb[0].mxu0
        %v469 = vadd.f32 %v388, %v468
        %470 = vdwg.mxu0
        %v471 = vand.u32 %v379, 4294901760
        %v472 = vsub.f32 %v379, %v471
        %v473 = vand.u32 %v472, 4294901760
        %v474 = vsub.f32 %v472, %v473
        %v475 = vand.u32 %v474, 4294901760
        %476 = vmatprep.subr.mxu0 %v475
        %v477 = vand.u32 %v378, 4294901760
        %v478 = vsub.f32 %v378, %v477
        %v479 = vand.u32 %v478, 4294901760
        %v480 = vsub.f32 %v478, %v479
        %v481 = vand.u32 %v480, 4294901760
        %482 = vmatpush1.msra.mxu0 %v481
        %483 = vmatprep.subr.mxu0 0.0
        %484 = vmatpush1.msra.mxu0 0.0
        %485 = vmatprep.subr.mxu0 0.0
        %486 = vmatpush1.msra.mxu0 0.0
        %487 = vmatprep.subr.mxu0 0.0
        %488 = vmatpush1.msra.mxu0 0.0
        %489 = vmatprep.subr.mxu0 0.0
        %490 = vmatpush1.msra.mxu0 0.0
        %491 = vmatprep.subr.mxu0 0.0
        %492 = vmatpush1.msra.mxu0 0.0
        %493 = vmatprep.subr.mxu0 0.0
        %494 = vmatpush1.msra.mxu0 0.0
        %495 = vmatprep.subr.mxu0 0.0
        %496 = vmatpush1.msra.mxu0 0.0
        %497 = vmatprep.subr.mxu0 0.0
        %498 = vmatpush1.msra.mxu0 0.0
        %499 = vmatprep.subr.mxu0 0.0
        %500 = vmatpush1.msra.mxu0 0.0
        %501 = vmatprep.subr.mxu0 0.0
        %502 = vmatpush1.msra.mxu0 0.0
        %503 = vmatprep.subr.mxu0 0.0
        %504 = vmatpush1.msra.mxu0 0.0
        %505 = vmatprep.subr.mxu0 0.0
        %506 = vmatpush1.msra.mxu0 0.0
        %507 = vmatprep.subr.mxu0 0.0
        %508 = vmatpush1.msra.mxu0 0.0
        %509 = vmatprep.subr.mxu0 0.0
        %510 = vmatpush1.msra.mxu0 0.0
        %511 = vmatprep.subr.mxu0 0.0
        %512 = vmatpush1.msra.mxu0 0.0
        %513 = vmatprep.subr.mxu0 0.0
        %514 = vmatpush1.msra.mxu0 0.0
        %515 = vmatprep.subr.mxu0 0.0
        %516 = vmatpush1.msra.mxu0 0.0
        %517 = vmatprep.subr.mxu0 0.0
        %518 = vmatpush1.msra.mxu0 0.0
        %519 = vmatprep.subr.mxu0 0.0
        %520 = vmatpush1.msra.mxu0 0.0
        %521 = vmatprep.subr.mxu0 0.0
        %522 = vmatpush1.msra.mxu0 0.0
        %523 = vmatprep.subr.mxu0 0.0
        %524 = vmatpush1.msra.mxu0 0.0
        %525 = vmatprep.subr.mxu0 0.0
        %526 = vmatpush1.msra.mxu0 0.0
        %527 = vmatprep.subr.mxu0 0.0
        %528 = vmatpush1.msra.mxu0 0.0
        %529 = vmatprep.subr.mxu0 0.0
        %530 = vmatpush1.msra.mxu0 0.0
        %531 = vmatprep.subr.mxu0 0.0
        %532 = vmatpush1.msra.mxu0 0.0
        %533 = vmatprep.subr.mxu0 0.0
        %534 = vmatpush1.msra.mxu0 0.0
        %535 = vmatprep.subr.mxu0 0.0
        %536 = vmatpush1.msra.mxu0 0.0
        %537 = vmatprep.subr.mxu0 0.0
        %538 = vmatpush1.msra.mxu0 0.0
        %539 = vmatprep.subr.mxu0 0.0
        %540 = vmatpush1.msra.mxu0 0.0
        %541 = vmatprep.subr.mxu0 0.0
        %542 = vmatpush1.msra.mxu0 0.0
        %543 = vmatprep.subr.mxu0 0.0
        %544 = vmatpush1.msra.mxu0 0.0
        %545 = vmatprep.mubr.f32.mxu0 0.0
        %v546 = vand.u32 %v391, 4294901760
        %547 = vmatmul.mubr.f32.gmra.mrb[0].mxu0 %v546
        %v548 = vpop.f32.mrb[0].mxu0
        %v549 = vadd.f32 %v467, %v548
        %v550 = vpop.f32.mrb[0].mxu0
        %v551 = vadd.f32 %v469, %v550
        %552 = vdwg.mxu0
        %v553 = vand.u32 %v379, 4294901760
        %v554 = vsub.f32 %v379, %v553
        %555 = vmatprep.subr.mxu0 %v554
        %v556 = vand.u32 %v378, 4294901760
        %v557 = vsub.f32 %v378, %v556
        %558 = vmatpush1.msra.mxu0 %v557
        %559 = vmatprep.subr.mxu0 0.0
        %560 = vmatpush1.msra.mxu0 0.0
        %561 = vmatprep.subr.mxu0 0.0
        %562 = vmatpush1.msra.mxu0 0.0
        %563 = vmatprep.subr.mxu0 0.0
        %564 = vmatpush1.msra.mxu0 0.0
        %565 = vmatprep.subr.mxu0 0.0
        %566 = vmatpush1.msra.mxu0 0.0
        %567 = vmatprep.subr.mxu0 0.0
        %568 = vmatpush1.msra.mxu0 0.0
        %569 = vmatprep.subr.mxu0 0.0
        %570 = vmatpush1.msra.mxu0 0.0
        %571 = vmatprep.subr.mxu0 0.0
        %572 = vmatpush1.msra.mxu0 0.0
        %573 = vmatprep.subr.mxu0 0.0
        %574 = vmatpush1.msra.mxu0 0.0
        %575 = vmatprep.subr.mxu0 0.0
        %576 = vmatpush1.msra.mxu0 0.0
        %577 = vmatprep.subr.mxu0 0.0
        %578 = vmatpush1.msra.mxu0 0.0
        %579 = vmatprep.subr.mxu0 0.0
        %580 = vmatpush1.msra.mxu0 0.0
        %581 = vmatprep.subr.mxu0 0.0
        %582 = vmatpush1.msra.mxu0 0.0
        %583 = vmatprep.subr.mxu0 0.0
        %584 = vmatpush1.msra.mxu0 0.0
        %585 = vmatprep.subr.mxu0 0.0
        %586 = vmatpush1.msra.mxu0 0.0
        %587 = vmatprep.subr.mxu0 0.0
        %588 = vmatpush1.msra.mxu0 0.0
        %589 = vmatprep.subr.mxu0 0.0
        %590 = vmatpush1.msra.mxu0 0.0
        %591 = vmatprep.subr.mxu0 0.0
        %592 = vmatpush1.msra.mxu0 0.0
        %593 = vmatprep.subr.mxu0 0.0
        %594 = vmatpush1.msra.mxu0 0.0
        %595 = vmatprep.subr.mxu0 0.0
        %596 = vmatpush1.msra.mxu0 0.0
        %597 = vmatprep.subr.mxu0 0.0
        %598 = vmatpush1.msra.mxu0 0.0
        %599 = vmatprep.subr.mxu0 0.0
        %600 = vmatpush1.msra.mxu0 0.0
        %601 = vmatprep.subr.mxu0 0.0
        %602 = vmatpush1.msra.mxu0 0.0
        %603 = vmatprep.subr.mxu0 0.0
        %604 = vmatpush1.msra.mxu0 0.0
        %605 = vmatprep.subr.mxu0 0.0
        %606 = vmatpush1.msra.mxu0 0.0
        %607 = vmatprep.subr.mxu0 0.0
        %608 = vmatpush1.msra.mxu0 0.0
        %609 = vmatprep.subr.mxu0 0.0
        %610 = vmatpush1.msra.mxu0 0.0
        %611 = vmatprep.subr.mxu0 0.0
        %612 = vmatpush1.msra.mxu0 0.0
        %613 = vmatprep.subr.mxu0 0.0
        %614 = vmatpush1.msra.mxu0 0.0
        %615 = vmatprep.subr.mxu0 0.0
        %616 = vmatpush1.msra.mxu0 0.0
        %617 = vmatprep.subr.mxu0 0.0
        %618 = vmatpush1.msra.mxu0 0.0
        %619 = vmatprep.subr.mxu0 0.0
        %620 = vmatpush1.msra.mxu0 0.0
        %621 = vmatprep.mubr.f32.mxu0 0.0
        %v622 = vand.u32 %v391, 4294901760
        %v623 = vsub.f32 %v391, %v622
        %624 = vmatmul.mubr.f32.gmra.mrb[0].mxu0 %v623
        %v625 = vpop.f32.mrb[0].mxu0
        %v626 = vadd.f32 %v549, %v625
        %v627 = vpop.f32.mrb[0].mxu0
        %v628 = vadd.f32 %v551, %v627
        %629 = vdwg.mxu0
        %v630 = vand.u32 %v379, 4294901760
        %631 = vmatprep.subr.mxu0 %v630
        %v632 = vand.u32 %v378, 4294901760
        %633 = vmatpush1.msra.mxu0 %v632
        %634 = vmatprep.subr.mxu0 0.0
        %635 = vmatpush1.msra.mxu0 0.0
        %636 = vmatprep.subr.mxu0 0.0
        %637 = vmatpush1.msra.mxu0 0.0
        %638 = vmatprep.subr.mxu0 0.0
        %639 = vmatpush1.msra.mxu0 0.0
        %640 = vmatprep.subr.mxu0 0.0
        %641 = vmatpush1.msra.mxu0 0.0
        %642 = vmatprep.subr.mxu0 0.0
        %643 = vmatpush1.msra.mxu0 0.0
        %644 = vmatprep.subr.mxu0 0.0
        %645 = vmatpush1.msra.mxu0 0.0
        %646 = vmatprep.subr.mxu0 0.0
        %647 = vmatpush1.msra.mxu0 0.0
        %648 = vmatprep.subr.mxu0 0.0
        %649 = vmatpush1.msra.mxu0 0.0
        %650 = vmatprep.subr.mxu0 0.0
        %651 = vmatpush1.msra.mxu0 0.0
        %652 = vmatprep.subr.mxu0 0.0
        %653 = vmatpush1.msra.mxu0 0.0
        %654 = vmatprep.subr.mxu0 0.0
        %655 = vmatpush1.msra.mxu0 0.0
        %656 = vmatprep.subr.mxu0 0.0
        %657 = vmatpush1.msra.mxu0 0.0
        %658 = vmatprep.subr.mxu0 0.0
        %659 = vmatpush1.msra.mxu0 0.0
        %660 = vmatprep.subr.mxu0 0.0
        %661 = vmatpush1.msra.mxu0 0.0
        %662 = vmatprep.subr.mxu0 0.0
        %663 = vmatpush1.msra.mxu0 0.0
        %664 = vmatprep.subr.mxu0 0.0
        %665 = vmatpush1.msra.mxu0 0.0
        %666 = vmatprep.subr.mxu0 0.0
        %667 = vmatpush1.msra.mxu0 0.0
        %668 = vmatprep.subr.mxu0 0.0
        %669 = vmatpush1.msra.mxu0 0.0
        %670 = vmatprep.subr.mxu0 0.0
        %671 = vmatpush1.msra.mxu0 0.0
        %672 = vmatprep.subr.mxu0 0.0
        %673 = vmatpush1.msra.mxu0 0.0
        %674 = vmatprep.subr.mxu0 0.0
        %675 = vmatpush1.msra.mxu0 0.0
        %676 = vmatprep.subr.mxu0 0.0
        %677 = vmatpush1.msra.mxu0 0.0
        %678 = vmatprep.subr.mxu0 0.0
        %679 = vmatpush1.msra.mxu0 0.0
        %680 = vmatprep.subr.mxu0 0.0
        %681 = vmatpush1.msra.mxu0 0.0
        %682 = vmatprep.subr.mxu0 0.0
        %683 = vmatpush1.msra.mxu0 0.0
        %684 = vmatprep.subr.mxu0 0.0
        %685 = vmatpush1.msra.mxu0 0.0
        %686 = vmatprep.subr.mxu0 0.0
        %687 = vmatpush1.msra.mxu0 0.0
        %688 = vmatprep.subr.mxu0 0.0
        %689 = vmatpush1.msra.mxu0 0.0
        %690 = vmatprep.subr.mxu0 0.0
        %691 = vmatpush1.msra.mxu0 0.0
        %692 = vmatprep.subr.mxu0 0.0
        %693 = vmatpush1.msra.mxu0 0.0
        %694 = vmatprep.subr.mxu0 0.0
        %695 = vmatpush1.msra.mxu0 0.0
        %696 = vmatprep.mubr.f32.mxu0 0.0
        %v697 = vand.u32 %v391, 4294901760
        %v698 = vsub.f32 %v391, %v697
        %v699 = vand.u32 %v698, 4294901760
        %700 = vmatmul.mubr.f32.gmra.mrb[0].mxu0 %v699
        %v701 = vpop.f32.mrb[0].mxu0
        %v702 = vadd.f32 %v626, %v701
        %v703 = vpop.f32.mrb[0].mxu0
        %v704 = vadd.f32 %v628, %v703
        %705 = vdwg.mxu0
        %v706 = vand.u32 %v379, 4294901760
        %v707 = vsub.f32 %v379, %v706
        %v708 = vand.u32 %v707, 4294901760
        %709 = vmatprep.subr.mxu0 %v708
        %v710 = vand.u32 %v378, 4294901760
        %v711 = vsub.f32 %v378, %v710
        %v712 = vand.u32 %v711, 4294901760
        %713 = vmatpush1.msra.mxu0 %v712
        %714 = vmatprep.subr.mxu0 0.0
        %715 = vmatpush1.msra.mxu0 0.0
        %716 = vmatprep.subr.mxu0 0.0
        %717 = vmatpush1.msra.mxu0 0.0
        %718 = vmatprep.subr.mxu0 0.0
        %719 = vmatpush1.msra.mxu0 0.0
        %720 = vmatprep.subr.mxu0 0.0
        %721 = vmatpush1.msra.mxu0 0.0
        %722 = vmatprep.subr.mxu0 0.0
        %723 = vmatpush1.msra.mxu0 0.0
        %724 = vmatprep.subr.mxu0 0.0
        %725 = vmatpush1.msra.mxu0 0.0
        %726 = vmatprep.subr.mxu0 0.0
        %727 = vmatpush1.msra.mxu0 0.0
        %728 = vmatprep.subr.mxu0 0.0
        %729 = vmatpush1.msra.mxu0 0.0
        %730 = vmatprep.subr.mxu0 0.0
        %731 = vmatpush1.msra.mxu0 0.0
        %732 = vmatprep.subr.mxu0 0.0
        %733 = vmatpush1.msra.mxu0 0.0
        %734 = vmatprep.subr.mxu0 0.0
        %735 = vmatpush1.msra.mxu0 0.0
        %736 = vmatprep.subr.mxu0 0.0
        %737 = vmatpush1.msra.mxu0 0.0
        %738 = vmatprep.subr.mxu0 0.0
        %739 = vmatpush1.msra.mxu0 0.0
        %740 = vmatprep.subr.mxu0 0.0
        %741 = vmatpush1.msra.mxu0 0.0
        %742 = vmatprep.subr.mxu0 0.0
        %743 = vmatpush1.msra.mxu0 0.0
        %744 = vmatprep.subr.mxu0 0.0
        %745 = vmatpush1.msra.mxu0 0.0
        %746 = vmatprep.subr.mxu0 0.0
        %747 = vmatpush1.msra.mxu0 0.0
        %748 = vmatprep.subr.mxu0 0.0
        %749 = vmatpush1.msra.mxu0 0.0
        %750 = vmatprep.subr.mxu0 0.0
        %751 = vmatpush1.msra.mxu0 0.0
        %752 = vmatprep.subr.mxu0 0.0
        %753 = vmatpush1.msra.mxu0 0.0
        %754 = vmatprep.subr.mxu0 0.0
        %755 = vmatpush1.msra.mxu0 0.0
        %756 = vmatprep.subr.mxu0 0.0
        %757 = vmatpush1.msra.mxu0 0.0
        %758 = vmatprep.subr.mxu0 0.0
        %759 = vmatpush1.msra.mxu0 0.0
        %760 = vmatprep.subr.mxu0 0.0
        %761 = vmatpush1.msra.mxu0 0.0
        %762 = vmatprep.subr.mxu0 0.0
        %763 = vmatpush1.msra.mxu0 0.0
        %764 = vmatprep.subr.mxu0 0.0
        %765 = vmatpush1.msra.mxu0 0.0
        %766 = vmatprep.subr.mxu0 0.0
        %767 = vmatpush1.msra.mxu0 0.0
        %768 = vmatprep.subr.mxu0 0.0
        %769 = vmatpush1.msra.mxu0 0.0
        %770 = vmatprep.subr.mxu0 0.0
        %771 = vmatpush1.msra.mxu0 0.0
        %772 = vmatprep.subr.mxu0 0.0
        %773 = vmatpush1.msra.mxu0 0.0
        %774 = vmatprep.subr.mxu0 0.0
        %775 = vmatpush1.msra.mxu0 0.0
        %776 = vmatprep.mubr.f32.mxu0 0.0
        %v777 = vand.u32 %v391, 4294901760
        %778 = vmatmul.mubr.f32.gmra.mrb[0].mxu0 %v777
        %v779 = vpop.f32.mrb[0].mxu0
        %v780 = vadd.f32 %v702, %v779
        %v781 = vpop.f32.mrb[0].mxu0
        %v782 = vadd.f32 %v704, %v781
        %783 = vdwg.mxu0
        %v784 = vand.u32 %v379, 4294901760
        %785 = vmatprep.subr.mxu0 %v784
        %v786 = vand.u32 %v378, 4294901760
        %787 = vmatpush1.msra.mxu0 %v786
        %788 = vmatprep.subr.mxu0 0.0
        %789 = vmatpush1.msra.mxu0 0.0
        %790 = vmatprep.subr.mxu0 0.0
        %791 = vmatpush1.msra.mxu0 0.0
        %792 = vmatprep.subr.mxu0 0.0
        %793 = vmatpush1.msra.mxu0 0.0
        %794 = vmatprep.subr.mxu0 0.0
        %795 = vmatpush1.msra.mxu0 0.0
        %796 = vmatprep.subr.mxu0 0.0
        %797 = vmatpush1.msra.mxu0 0.0
        %798 = vmatprep.subr.mxu0 0.0
        %799 = vmatpush1.msra.mxu0 0.0
        %800 = vmatprep.subr.mxu0 0.0
        %801 = vmatpush1.msra.mxu0 0.0
        %802 = vmatprep.subr.mxu0 0.0
        %803 = vmatpush1.msra.mxu0 0.0
        %804 = vmatprep.subr.mxu0 0.0
        %805 = vmatpush1.msra.mxu0 0.0
        %806 = vmatprep.subr.mxu0 0.0
        %807 = vmatpush1.msra.mxu0 0.0
        %808 = vmatprep.subr.mxu0 0.0
        %809 = vmatpush1.msra.mxu0 0.0
        %810 = vmatprep.subr.mxu0 0.0
        %811 = vmatpush1.msra.mxu0 0.0
        %812 = vmatprep.subr.mxu0 0.0
        %813 = vmatpush1.msra.mxu0 0.0
        %814 = vmatprep.subr.mxu0 0.0
        %815 = vmatpush1.msra.mxu0 0.0
        %816 = vmatprep.subr.mxu0 0.0
        %817 = vmatpush1.msra.mxu0 0.0
        %818 = vmatprep.subr.mxu0 0.0
        %819 = vmatpush1.msra.mxu0 0.0
        %820 = vmatprep.subr.mxu0 0.0
        %821 = vmatpush1.msra.mxu0 0.0
        %822 = vmatprep.subr.mxu0 0.0
        %823 = vmatpush1.msra.mxu0 0.0
        %824 = vmatprep.subr.mxu0 0.0
        %825 = vmatpush1.msra.mxu0 0.0
        %826 = vmatprep.subr.mxu0 0.0
        %827 = vmatpush1.msra.mxu0 0.0
        %828 = vmatprep.subr.mxu0 0.0
        %829 = vmatpush1.msra.mxu0 0.0
        %830 = vmatprep.subr.mxu0 0.0
        %831 = vmatpush1.msra.mxu0 0.0
        %832 = vmatprep.subr.mxu0 0.0
        %833 = vmatpush1.msra.mxu0 0.0
        %834 = vmatprep.subr.mxu0 0.0
        %835 = vmatpush1.msra.mxu0 0.0
        %836 = vmatprep.subr.mxu0 0.0
        %837 = vmatpush1.msra.mxu0 0.0
        %838 = vmatprep.subr.mxu0 0.0
        %839 = vmatpush1.msra.mxu0 0.0
        %840 = vmatprep.subr.mxu0 0.0
        %841 = vmatpush1.msra.mxu0 0.0
        %842 = vmatprep.subr.mxu0 0.0
        %843 = vmatpush1.msra.mxu0 0.0
        %844 = vmatprep.subr.mxu0 0.0
        %845 = vmatpush1.msra.mxu0 0.0
        %846 = vmatprep.subr.mxu0 0.0
        %847 = vmatpush1.msra.mxu0 0.0
        %848 = vmatprep.subr.mxu0 0.0
        %849 = vmatpush1.msra.mxu0 0.0
        %850 = vmatprep.mubr.f32.mxu0 0.0
        %v851 = vand.u32 %v391, 4294901760
        %852 = vmatmul.mubr.f32.gmra.mrb[0].mxu0 %v851
        %v853 = vpop.f32.mrb[0].mxu0
        %v854 = vadd.f32 %v780, %v853
        %v855 = vpop.f32.mrb[0].mxu0
        %v856 = vadd.f32 %v782, %v855
        %857 = vdwg.mxu0
        %v858 = vrot.slane %v378, 4
        %v859 = vmax.f32 %v378, %v858
        %v860 = vrot.slane %v859, 2
        %v861 = vmax.f32 %v859, %v860
        %v862 = vrot.slane %v861, 1
        %v863 = vmax.f32 %v861, %v862
        %v864 = vrot.slane %v379, 4
        %v865 = vmax.f32 %v379, %v864
        %v866 = vrot.slane %v865, 2
        %v867 = vmax.f32 %v865, %v866
        %v868 = vrot.slane %v867, 1
        %v869 = vmax.f32 %v867, %v868
        %v870 = vsub.f32 %v378, %v863
        %v871 = vsub.f32 %v379, %v869
        %v872 = vmul.f32 %v870, 1.442695
        %v873 = vpow.pop %v872
        %v874 = vmul.f32 %v871, 1.442695
        %v875 = vpow.pop %v874
        %v876 = vrot.slane %v873, 4
        %v877 = vadd.f32 %v873, %v876
        %v878 = vrot.slane %v877, 2
        %v879 = vadd.f32 %v877, %v878
        %v880 = vrot.slane %v879, 1
        %v881 = vadd.f32 %v879, %v880
        %v882 = vrot.slane %v875, 4
        %v883 = vadd.f32 %v875, %v882
        %v884 = vrot.slane %v883, 2
        %v885 = vadd.f32 %v883, %v884
        %v886 = vrot.slane %v885, 1
        %v887 = vadd.f32 %v885, %v886
        %v888 = vrcp.pop %v881
        %v889 = vrcp.pop %v887
        %v890 = vmul.f32 %v873, %v888
        %v891 = vmul.f32 %v875, %v889
        %892 = vst [vmem:[%s330] sm:$0xff] %v890
        %893 = vst [vmem:[%s330 + $0x8] sm:$0xff] %v891
        %v894 = vlaneseq
        %v895 = vshrl.u32 %v894, 7
        %v896 = vsub.s32 0, %v895
        %v897 = vrot.slane %v854, %v896
        %v898 = vlaneseq
        %v899 = vshrl.u32 %v898, 7
        %v900 = vsub.s32 0, %v899
        %v901 = vrot.slane %v856, %v900
        %v902 = vmul.f32 %v890, %v897
        %v903 = vmul.f32 %v891, %v901
        %904 = vmatprep.subr.mxu0 0.0
        %v905 = vand.u32 %v345, 4294901760
        %906 = vmatpush1.msra.mxu0 %v905
        %907 = vmatprep.subr.mxu0 0.0
        %v908 = vand.u32 %v346, 4294901760
        %909 = vmatpush1.msra.mxu0 %v908
        %910 = vmatprep.subr.mxu0 0.0
        %v911 = vand.u32 %v347, 4294901760
        %912 = vmatpush1.msra.mxu0 %v911
        %913 = vmatprep.subr.mxu0 0.0
        %v914 = vand.u32 %v348, 4294901760
        %915 = vmatpush1.msra.mxu0 %v914
        %916 = vmatprep.subr.mxu0 0.0
        %v917 = vand.u32 %v349, 4294901760
        %918 = vmatpush1.msra.mxu0 %v917
        %919 = vmatprep.subr.mxu0 0.0
        %v920 = vand.u32 %v350, 4294901760
        %921 = vmatpush1.msra.mxu0 %v920
        %922 = vmatprep.subr.mxu0 0.0
        %v923 = vand.u32 %v351, 4294901760
        %924 = vmatpush1.msra.mxu0 %v923
        %925 = vmatprep.subr.mxu0 0.0
        %v926 = vand.u32 %v352, 4294901760
        %927 = vmatpush1.msra.mxu0 %v926
        %928 = vmatprep.subr.mxu0 0.0
        %v929 = vand.u32 %v353, 4294901760
        %930 = vmatpush1.msra.mxu0 %v929
        %931 = vmatprep.subr.mxu0 0.0
        %v932 = vand.u32 %v354, 4294901760
        %933 = vmatpush1.msra.mxu0 %v932
        %934 = vmatprep.subr.mxu0 0.0
        %v935 = vand.u32 %v355, 4294901760
        %936 = vmatpush1.msra.mxu0 %v935
        %937 = vmatprep.subr.mxu0 0.0
        %v938 = vand.u32 %v356, 4294901760
        %939 = vmatpush1.msra.mxu0 %v938
        %940 = vmatprep.subr.mxu0 0.0
        %v941 = vand.u32 %v357, 4294901760
        %942 = vmatpush1.msra.mxu0 %v941
        %943 = vmatprep.subr.mxu0 0.0
        %v944 = vand.u32 %v358, 4294901760
        %945 = vmatpush1.msra.mxu0 %v944
        %946 = vmatprep.subr.mxu0 0.0
        %v947 = vand.u32 %v359, 4294901760
        %948 = vmatpush1.msra.mxu0 %v947
        %949 = vmatprep.subr.mxu0 0.0
        %v950 = vand.u32 %v360, 4294901760
        %951 = vmatpush1.msra.mxu0 %v950
        %952 = vmatprep.subr.mxu0 0.0
        %v953 = vand.u32 %v361, 4294901760
        %954 = vmatpush1.msra.mxu0 %v953
        %955 = vmatprep.subr.mxu0 0.0
        %v956 = vand.u32 %v362, 4294901760
        %957 = vmatpush1.msra.mxu0 %v956
        %958 = vmatprep.subr.mxu0 0.0
        %v959 = vand.u32 %v363, 4294901760
        %960 = vmatpush1.msra.mxu0 %v959
        %961 = vmatprep.subr.mxu0 0.0
        %v962 = vand.u32 %v364, 4294901760
        %963 = vmatpush1.msra.mxu0 %v962
        %964 = vmatprep.subr.mxu0 0.0
        %v965 = vand.u32 %v365, 4294901760
        %966 = vmatpush1.msra.mxu0 %v965
        %967 = vmatprep.subr.mxu0 0.0
        %v968 = vand.u32 %v366, 4294901760
        %969 = vmatpush1.msra.mxu0 %v968
        %970 = vmatprep.subr.mxu0 0.0
        %v971 = vand.u32 %v367, 4294901760
        %972 = vmatpush1.msra.mxu0 %v971
        %973 = vmatprep.subr.mxu0 0.0
        %v974 = vand.u32 %v368, 4294901760
        %975 = vmatpush1.msra.mxu0 %v974
        %976 = vmatprep.subr.mxu0 0.0
        %v977 = vand.u32 %v369, 4294901760
        %978 = vmatpush1.msra.mxu0 %v977
        %979 = vmatprep.subr.mxu0 0.0
        %v980 = vand.u32 %v370, 4294901760
        %981 = vmatpush1.msra.mxu0 %v980
        %982 = vmatprep.subr.mxu0 0.0
        %v983 = vand.u32 %v371, 4294901760
        %984 = vmatpush1.msra.mxu0 %v983
        %985 = vmatprep.subr.mxu0 0.0
        %v986 = vand.u32 %v372, 4294901760
        %987 = vmatpush1.msra.mxu0 %v986
        %988 = vmatprep.subr.mxu0 0.0
        %v989 = vand.u32 %v373, 4294901760
        %990 = vmatpush1.msra.mxu0 %v989
        %991 = vmatprep.subr.mxu0 0.0
        %v992 = vand.u32 %v374, 4294901760
        %993 = vmatpush1.msra.mxu0 %v992
        %994 = vmatprep.subr.mxu0 0.0
        %v995 = vand.u32 %v375, 4294901760
        %996 = vmatpush1.msra.mxu0 %v995
        %997 = vmatprep.subr.mxu0 0.0
        %v998 = vand.u32 %v376, 4294901760
        %999 = vmatpush1.msra.mxu0 %v998
        %v1000 = vand.u32 %v903, 4294901760
        %v1001 = vsub.f32 %v903, %v1000
        %v1002 = vand.u32 %v1001, 4294901760
        %v1003 = vsub.f32 %v1001, %v1002
        %v1004 = vand.u32 %v1003, 4294901760
        %1005 = vmatprep.mubr.f32.mxu0 %v1004
        %v1006 = vand.u32 %v902, 4294901760
        %v1007 = vsub.f32 %v902, %v1006
        %v1008 = vand.u32 %v1007, 4294901760
        %v1009 = vsub.f32 %v1007, %v1008
        %v1010 = vand.u32 %v1009, 4294901760
        %1011 = vmatmul.mubr.f32.gmra.mrb[0].mxu0 %v1010
        %v1012 = vpop.f32.mrb[0].mxu0
        %v1013 = vadd.f32 0.0, %v1012
        %v1014 = vpop.f32.mrb[0].mxu0
        %1015 = vdwg.mxu0
        %1016 = vmatprep.subr.mxu0 0.0
        %v1017 = vand.u32 %v345, 4294901760
        %v1018 = vsub.f32 %v345, %v1017
        %v1019 = vand.u32 %v1018, 4294901760
        %v1020 = vsub.f32 %v1018, %v1019
        %v1021 = vand.u32 %v1020, 4294901760
        %1022 = vmatpush1.msra.mxu0 %v1021
        %1023 = vmatprep.subr.mxu0 0.0
        %v1024 = vand.u32 %v346, 4294901760
        %v1025 = vsub.f32 %v346, %v1024
        %v1026 = vand.u32 %v1025, 4294901760
        %v1027 = vsub.f32 %v1025, %v1026
        %v1028 = vand.u32 %v1027, 4294901760
        %1029 = vmatpush1.msra.mxu0 %v1028
        %1030 = vmatprep.subr.mxu0 0.0
        %v1031 = vand.u32 %v347, 4294901760
        %v1032 = vsub.f32 %v347, %v1031
        %v1033 = vand.u32 %v1032, 4294901760
        %v1034 = vsub.f32 %v1032, %v1033
        %v1035 = vand.u32 %v1034, 4294901760
        %1036 = vmatpush1.msra.mxu0 %v1035
        %1037 = vmatprep.subr.mxu0 0.0
        %v1038 = vand.u32 %v348, 4294901760
        %v1039 = vsub.f32 %v348, %v1038
        %v1040 = vand.u32 %v1039, 4294901760
        %v1041 = vsub.f32 %v1039, %v1040
        %v1042 = vand.u32 %v1041, 4294901760
        %1043 = vmatpush1.msra.mxu0 %v1042
        %1044 = vmatprep.subr.mxu0 0.0
        %v1045 = vand.u32 %v349, 4294901760
        %v1046 = vsub.f32 %v349, %v1045
        %v1047 = vand.u32 %v1046, 4294901760
        %v1048 = vsub.f32 %v1046, %v1047
        %v1049 = vand.u32 %v1048, 4294901760
        %1050 = vmatpush1.msra.mxu0 %v1049
        %1051 = vmatprep.subr.mxu0 0.0
        %v1052 = vand.u32 %v350, 4294901760
        %v1053 = vsub.f32 %v350, %v1052
        %v1054 = vand.u32 %v1053, 4294901760
        %v1055 = vsub.f32 %v1053, %v1054
        %v1056 = vand.u32 %v1055, 4294901760
        %1057 = vmatpush1.msra.mxu0 %v1056
        %1058 = vmatprep.subr.mxu0 0.0
        %v1059 = vand.u32 %v351, 4294901760
        %v1060 = vsub.f32 %v351, %v1059
        %v1061 = vand.u32 %v1060, 4294901760
        %v1062 = vsub.f32 %v1060, %v1061
        %v1063 = vand.u32 %v1062, 4294901760
        %1064 = vmatpush1.msra.mxu0 %v1063
        %1065 = vmatprep.subr.mxu0 0.0
        %v1066 = vand.u32 %v352, 4294901760
        %v1067 = vsub.f32 %v352, %v1066
        %v1068 = vand.u32 %v1067, 4294901760
        %v1069 = vsub.f32 %v1067, %v1068
        %v1070 = vand.u32 %v1069, 4294901760
        %1071 = vmatpush1.msra.mxu0 %v1070
        %1072 = vmatprep.subr.mxu0 0.0
        %v1073 = vand.u32 %v353, 4294901760
        %v1074 = vsub.f32 %v353, %v1073
        %v1075 = vand.u32 %v1074, 4294901760
        %v1076 = vsub.f32 %v1074, %v1075
        %v1077 = vand.u32 %v1076, 4294901760
        %1078 = vmatpush1.msra.mxu0 %v1077
        %1079 = vmatprep.subr.mxu0 0.0
        %v1080 = vand.u32 %v354, 4294901760
        %v1081 = vsub.f32 %v354, %v1080
        %v1082 = vand.u32 %v1081, 4294901760
        %v1083 = vsub.f32 %v1081, %v1082
        %v1084 = vand.u32 %v1083, 4294901760
        %1085 = vmatpush1.msra.mxu0 %v1084
        %1086 = vmatprep.subr.mxu0 0.0
        %v1087 = vand.u32 %v355, 4294901760
        %v1088 = vsub.f32 %v355, %v1087
        %v1089 = vand.u32 %v1088, 4294901760
        %v1090 = vsub.f32 %v1088, %v1089
        %v1091 = vand.u32 %v1090, 4294901760
        %1092 = vmatpush1.msra.mxu0 %v1091
        %1093 = vmatprep.subr.mxu0 0.0
        %v1094 = vand.u32 %v356, 4294901760
        %v1095 = vsub.f32 %v356, %v1094
        %v1096 = vand.u32 %v1095, 4294901760
        %v1097 = vsub.f32 %v1095, %v1096
        %v1098 = vand.u32 %v1097, 4294901760
        %1099 = vmatpush1.msra.mxu0 %v1098
        %1100 = vmatprep.subr.mxu0 0.0
        %v1101 = vand.u32 %v357, 4294901760
        %v1102 = vsub.f32 %v357, %v1101
        %v1103 = vand.u32 %v1102, 4294901760
        %v1104 = vsub.f32 %v1102, %v1103
        %v1105 = vand.u32 %v1104, 4294901760
        %1106 = vmatpush1.msra.mxu0 %v1105
        %1107 = vmatprep.subr.mxu0 0.0
        %v1108 = vand.u32 %v358, 4294901760
        %v1109 = vsub.f32 %v358, %v1108
        %v1110 = vand.u32 %v1109, 4294901760
        %v1111 = vsub.f32 %v1109, %v1110
        %v1112 = vand.u32 %v1111, 4294901760
        %1113 = vmatpush1.msra.mxu0 %v1112
        %1114 = vmatprep.subr.mxu0 0.0
        %v1115 = vand.u32 %v359, 4294901760
        %v1116 = vsub.f32 %v359, %v1115
        %v1117 = vand.u32 %v1116, 4294901760
        %v1118 = vsub.f32 %v1116, %v1117
        %v1119 = vand.u32 %v1118, 4294901760
        %1120 = vmatpush1.msra.mxu0 %v1119
        %1121 = vmatprep.subr.mxu0 0.0
        %v1122 = vand.u32 %v360, 4294901760
        %v1123 = vsub.f32 %v360, %v1122
        %v1124 = vand.u32 %v1123, 4294901760
        %v1125 = vsub.f32 %v1123, %v1124
        %v1126 = vand.u32 %v1125, 4294901760
        %1127 = vmatpush1.msra.mxu0 %v1126
        %1128 = vmatprep.subr.mxu0 0.0
        %v1129 = vand.u32 %v361, 4294901760
        %v1130 = vsub.f32 %v361, %v1129
        %v1131 = vand.u32 %v1130, 4294901760
        %v1132 = vsub.f32 %v1130, %v1131
        %v1133 = vand.u32 %v1132, 4294901760
        %1134 = vmatpush1.msra.mxu0 %v1133
        %1135 = vmatprep.subr.mxu0 0.0
        %v1136 = vand.u32 %v362, 4294901760
        %v1137 = vsub.f32 %v362, %v1136
        %v1138 = vand.u32 %v1137, 4294901760
        %v1139 = vsub.f32 %v1137, %v1138
        %v1140 = vand.u32 %v1139, 4294901760
        %1141 = vmatpush1.msra.mxu0 %v1140
        %1142 = vmatprep.subr.mxu0 0.0
        %v1143 = vand.u32 %v363, 4294901760
        %v1144 = vsub.f32 %v363, %v1143
        %v1145 = vand.u32 %v1144, 4294901760
        %v1146 = vsub.f32 %v1144, %v1145
        %v1147 = vand.u32 %v1146, 4294901760
        %1148 = vmatpush1.msra.mxu0 %v1147
        %1149 = vmatprep.subr.mxu0 0.0
        %v1150 = vand.u32 %v364, 4294901760
        %v1151 = vsub.f32 %v364, %v1150
        %v1152 = vand.u32 %v1151, 4294901760
        %v1153 = vsub.f32 %v1151, %v1152
        %v1154 = vand.u32 %v1153, 4294901760
        %1155 = vmatpush1.msra.mxu0 %v1154
        %1156 = vmatprep.subr.mxu0 0.0
        %v1157 = vand.u32 %v365, 4294901760
        %v1158 = vsub.f32 %v365, %v1157
        %v1159 = vand.u32 %v1158, 4294901760
        %v1160 = vsub.f32 %v1158, %v1159
        %v1161 = vand.u32 %v1160, 4294901760
        %1162 = vmatpush1.msra.mxu0 %v1161
        %1163 = vmatprep.subr.mxu0 0.0
        %v1164 = vand.u32 %v366, 4294901760
        %v1165 = vsub.f32 %v366, %v1164
        %v1166 = vand.u32 %v1165, 4294901760
        %v1167 = vsub.f32 %v1165, %v1166
        %v1168 = vand.u32 %v1167, 4294901760
        %1169 = vmatpush1.msra.mxu0 %v1168
        %1170 = vmatprep.subr.mxu0 0.0
        %v1171 = vand.u32 %v367, 4294901760
        %v1172 = vsub.f32 %v367, %v1171
        %v1173 = vand.u32 %v1172, 4294901760
        %v1174 = vsub.f32 %v1172, %v1173
        %v1175 = vand.u32 %v1174, 4294901760
        %1176 = vmatpush1.msra.mxu0 %v1175
        %1177 = vmatprep.subr.mxu0 0.0
        %v1178 = vand.u32 %v368, 4294901760
        %v1179 = vsub.f32 %v368, %v1178
        %v1180 = vand.u32 %v1179, 4294901760
        %v1181 = vsub.f32 %v1179, %v1180
        %v1182 = vand.u32 %v1181, 4294901760
        %1183 = vmatpush1.msra.mxu0 %v1182
        %1184 = vmatprep.subr.mxu0 0.0
        %v1185 = vand.u32 %v369, 4294901760
        %v1186 = vsub.f32 %v369, %v1185
        %v1187 = vand.u32 %v1186, 4294901760
        %v1188 = vsub.f32 %v1186, %v1187
        %v1189 = vand.u32 %v1188, 4294901760
        %1190 = vmatpush1.msra.mxu0 %v1189
        %1191 = vmatprep.subr.mxu0 0.0
        %v1192 = vand.u32 %v370, 4294901760
        %v1193 = vsub.f32 %v370, %v1192
        %v1194 = vand.u32 %v1193, 4294901760
        %v1195 = vsub.f32 %v1193, %v1194
        %v1196 = vand.u32 %v1195, 4294901760
        %1197 = vmatpush1.msra.mxu0 %v1196
        %1198 = vmatprep.subr.mxu0 0.0
        %v1199 = vand.u32 %v371, 4294901760
        %v1200 = vsub.f32 %v371, %v1199
        %v1201 = vand.u32 %v1200, 4294901760
        %v1202 = vsub.f32 %v1200, %v1201
        %v1203 = vand.u32 %v1202, 4294901760
        %1204 = vmatpush1.msra.mxu0 %v1203
        %1205 = vmatprep.subr.mxu0 0.0
        %v1206 = vand.u32 %v372, 4294901760
        %v1207 = vsub.f32 %v372, %v1206
        %v1208 = vand.u32 %v1207, 4294901760
        %v1209 = vsub.f32 %v1207, %v1208
        %v1210 = vand.u32 %v1209, 4294901760
        %1211 = vmatpush1.msra.mxu0 %v1210
        %1212 = vmatprep.subr.mxu0 0.0
        %v1213 = vand.u32 %v373, 4294901760
        %v1214 = vsub.f32 %v373, %v1213
        %v1215 = vand.u32 %v1214, 4294901760
        %v1216 = vsub.f32 %v1214, %v1215
        %v1217 = vand.u32 %v1216, 4294901760
        %1218 = vmatpush1.msra.mxu0 %v1217
        %1219 = vmatprep.subr.mxu0 0.0
        %v1220 = vand.u32 %v374, 4294901760
        %v1221 = vsub.f32 %v374, %v1220
        %v1222 = vand.u32 %v1221, 4294901760
        %v1223 = vsub.f32 %v1221, %v1222
        %v1224 = vand.u32 %v1223, 4294901760
        %1225 = vmatpush1.msra.mxu0 %v1224
        %1226 = vmatprep.subr.mxu0 0.0
        %v1227 = vand.u32 %v375, 4294901760
        %v1228 = vsub.f32 %v375, %v1227
        %v1229 = vand.u32 %v1228, 4294901760
        %v1230 = vsub.f32 %v1228, %v1229
        %v1231 = vand.u32 %v1230, 4294901760
        %1232 = vmatpush1.msra.mxu0 %v1231
        %1233 = vmatprep.subr.mxu0 0.0
        %v1234 = vand.u32 %v376, 4294901760
        %v1235 = vsub.f32 %v376, %v1234
        %v1236 = vand.u32 %v1235, 4294901760
        %v1237 = vsub.f32 %v1235, %v1236
        %v1238 = vand.u32 %v1237, 4294901760
        %1239 = vmatpush1.msra.mxu0 %v1238
        %v1240 = vand.u32 %v903, 4294901760
        %1241 = vmatprep.mubr.f32.mxu0 %v1240
        %v1242 = vand.u32 %v902, 4294901760
        %1243 = vmatmul.mubr.f32.gmra.mrb[0].mxu0 %v1242
        %v1244 = vpop.f32.mrb[0].mxu0
        %v1245 = vadd.f32 %v1013, %v1244
        %v1246 = vpop.f32.mrb[0].mxu0
        %1247 = vdwg.mxu0
        %1248 = vmatprep.subr.mxu0 0.0
        %v1249 = vand.u32 %v345, 4294901760
        %v1250 = vsub.f32 %v345, %v1249
        %1251 = vmatpush1.msra.mxu0 %v1250
        %1252 = vmatprep.subr.mxu0 0.0
        %v1253 = vand.u32 %v346, 4294901760
        %v1254 = vsub.f32 %v346, %v1253
        %1255 = vmatpush1.msra.mxu0 %v1254
        %1256 = vmatprep.subr.mxu0 0.0
        %v1257 = vand.u32 %v347, 4294901760
        %v1258 = vsub.f32 %v347, %v1257
        %1259 = vmatpush1.msra.mxu0 %v1258
        %1260 = vmatprep.subr.mxu0 0.0
        %v1261 = vand.u32 %v348, 4294901760
        %v1262 = vsub.f32 %v348, %v1261
        %1263 = vmatpush1.msra.mxu0 %v1262
        %1264 = vmatprep.subr.mxu0 0.0
        %v1265 = vand.u32 %v349, 4294901760
        %v1266 = vsub.f32 %v349, %v1265
        %1267 = vmatpush1.msra.mxu0 %v1266
        %1268 = vmatprep.subr.mxu0 0.0
        %v1269 = vand.u32 %v350, 4294901760
        %v1270 = vsub.f32 %v350, %v1269
        %1271 = vmatpush1.msra.mxu0 %v1270
        %1272 = vmatprep.subr.mxu0 0.0
        %v1273 = vand.u32 %v351, 4294901760
        %v1274 = vsub.f32 %v351, %v1273
        %1275 = vmatpush1.msra.mxu0 %v1274
        %1276 = vmatprep.subr.mxu0 0.0
        %v1277 = vand.u32 %v352, 4294901760
        %v1278 = vsub.f32 %v352, %v1277
        %1279 = vmatpush1.msra.mxu0 %v1278
        %1280 = vmatprep.subr.mxu0 0.0
        %v1281 = vand.u32 %v353, 4294901760
        %v1282 = vsub.f32 %v353, %v1281
        %1283 = vmatpush1.msra.mxu0 %v1282
        %1284 = vmatprep.subr.mxu0 0.0
        %v1285 = vand.u32 %v354, 4294901760
        %v1286 = vsub.f32 %v354, %v1285
        %1287 = vmatpush1.msra.mxu0 %v1286
        %1288 = vmatprep.subr.mxu0 0.0
        %v1289 = vand.u32 %v355, 4294901760
        %v1290 = vsub.f32 %v355, %v1289
        %1291 = vmatpush1.msra.mxu0 %v1290
        %1292 = vmatprep.subr.mxu0 0.0
        %v1293 = vand.u32 %v356, 4294901760
        %v1294 = vsub.f32 %v356, %v1293
        %1295 = vmatpush1.msra.mxu0 %v1294
        %1296 = vmatprep.subr.mxu0 0.0
        %v1297 = vand.u32 %v357, 4294901760
        %v1298 = vsub.f32 %v357, %v1297
        %1299 = vmatpush1.msra.mxu0 %v1298
        %1300 = vmatprep.subr.mxu0 0.0
        %v1301 = vand.u32 %v358, 4294901760
        %v1302 = vsub.f32 %v358, %v1301
        %1303 = vmatpush1.msra.mxu0 %v1302
        %1304 = vmatprep.subr.mxu0 0.0
        %v1305 = vand.u32 %v359, 4294901760
        %v1306 = vsub.f32 %v359, %v1305
        %1307 = vmatpush1.msra.mxu0 %v1306
        %1308 = vmatprep.subr.mxu0 0.0
        %v1309 = vand.u32 %v360, 4294901760
        %v1310 = vsub.f32 %v360, %v1309
        %1311 = vmatpush1.msra.mxu0 %v1310
        %1312 = vmatprep.subr.mxu0 0.0
        %v1313 = vand.u32 %v361, 4294901760
        %v1314 = vsub.f32 %v361, %v1313
        %1315 = vmatpush1.msra.mxu0 %v1314
        %1316 = vmatprep.subr.mxu0 0.0
        %v1317 = vand.u32 %v362, 4294901760
        %v1318 = vsub.f32 %v362, %v1317
        %1319 = vmatpush1.msra.mxu0 %v1318
        %1320 = vmatprep.subr.mxu0 0.0
        %v1321 = vand.u32 %v363, 4294901760
        %v1322 = vsub.f32 %v363, %v1321
        %1323 = vmatpush1.msra.mxu0 %v1322
        %1324 = vmatprep.subr.mxu0 0.0
        %v1325 = vand.u32 %v364, 4294901760
        %v1326 = vsub.f32 %v364, %v1325
        %1327 = vmatpush1.msra.mxu0 %v1326
        %1328 = vmatprep.subr.mxu0 0.0
        %v1329 = vand.u32 %v365, 4294901760
        %v1330 = vsub.f32 %v365, %v1329
        %1331 = vmatpush1.msra.mxu0 %v1330
        %1332 = vmatprep.subr.mxu0 0.0
        %v1333 = vand.u32 %v366, 4294901760
        %v1334 = vsub.f32 %v366, %v1333
        %1335 = vmatpush1.msra.mxu0 %v1334
        %1336 = vmatprep.subr.mxu0 0.0
        %v1337 = vand.u32 %v367, 4294901760
        %v1338 = vsub.f32 %v367, %v1337
        %1339 = vmatpush1.msra.mxu0 %v1338
        %1340 = vmatprep.subr.mxu0 0.0
        %v1341 = vand.u32 %v368, 4294901760
        %v1342 = vsub.f32 %v368, %v1341
        %1343 = vmatpush1.msra.mxu0 %v1342
        %1344 = vmatprep.subr.mxu0 0.0
        %v1345 = vand.u32 %v369, 4294901760
        %v1346 = vsub.f32 %v369, %v1345
        %1347 = vmatpush1.msra.mxu0 %v1346
        %1348 = vmatprep.subr.mxu0 0.0
        %v1349 = vand.u32 %v370, 4294901760
        %v1350 = vsub.f32 %v370, %v1349
        %1351 = vmatpush1.msra.mxu0 %v1350
        %1352 = vmatprep.subr.mxu0 0.0
        %v1353 = vand.u32 %v371, 4294901760
        %v1354 = vsub.f32 %v371, %v1353
        %1355 = vmatpush1.msra.mxu0 %v1354
        %1356 = vmatprep.subr.mxu0 0.0
        %v1357 = vand.u32 %v372, 4294901760
        %v1358 = vsub.f32 %v372, %v1357
        %1359 = vmatpush1.msra.mxu0 %v1358
        %1360 = vmatprep.subr.mxu0 0.0
        %v1361 = vand.u32 %v373, 4294901760
        %v1362 = vsub.f32 %v373, %v1361
        %1363 = vmatpush1.msra.mxu0 %v1362
        %1364 = vmatprep.subr.mxu0 0.0
        %v1365 = vand.u32 %v374, 4294901760
        %v1366 = vsub.f32 %v374, %v1365
        %1367 = vmatpush1.msra.mxu0 %v1366
        %1368 = vmatprep.subr.mxu0 0.0
        %v1369 = vand.u32 %v375, 4294901760
        %v1370 = vsub.f32 %v375, %v1369
        %1371 = vmatpush1.msra.mxu0 %v1370
        %1372 = vmatprep.subr.mxu0 0.0
        %v1373 = vand.u32 %v376, 4294901760
        %v1374 = vsub.f32 %v376, %v1373
        %1375 = vmatpush1.msra.mxu0 %v1374
        %v1376 = vand.u32 %v903, 4294901760
        %v1377 = vsub.f32 %v903, %v1376
        %1378 = vmatprep.mubr.f32.mxu0 %v1377
        %v1379 = vand.u32 %v902, 4294901760
        %v1380 = vsub.f32 %v902, %v1379
        %1381 = vmatmul.mubr.f32.gmra.mrb[0].mxu0 %v1380
        %v1382 = vpop.f32.mrb[0].mxu0
        %v1383 = vadd.f32 %v1245, %v1382
        %v1384 = vpop.f32.mrb[0].mxu0
        %1385 = vdwg.mxu0
        %1386 = vmatprep.subr.mxu0 0.0
        %v1387 = vand.u32 %v345, 4294901760
        %1388 = vmatpush1.msra.mxu0 %v1387
        %1389 = vmatprep.subr.mxu0 0.0
        %v1390 = vand.u32 %v346, 4294901760
        %1391 = vmatpush1.msra.mxu0 %v1390
        %1392 = vmatprep.subr.mxu0 0.0
        %v1393 = vand.u32 %v347, 4294901760
        %1394 = vmatpush1.msra.mxu0 %v1393
        %1395 = vmatprep.subr.mxu0 0.0
        %v1396 = vand.u32 %v348, 4294901760
        %1397 = vmatpush1.msra.mxu0 %v1396
        %1398 = vmatprep.subr.mxu0 0.0
        %v1399 = vand.u32 %v349, 4294901760
        %1400 = vmatpush1.msra.mxu0 %v1399
        %1401 = vmatprep.subr.mxu0 0.0
        %v1402 = vand.u32 %v350, 4294901760
        %1403 = vmatpush1.msra.mxu0 %v1402
        %1404 = vmatprep.subr.mxu0 0.0
        %v1405 = vand.u32 %v351, 4294901760
        %1406 = vmatpush1.msra.mxu0 %v1405
        %1407 = vmatprep.subr.mxu0 0.0
        %v1408 = vand.u32 %v352, 4294901760
        %1409 = vmatpush1.msra.mxu0 %v1408
        %1410 = vmatprep.subr.mxu0 0.0
        %v1411 = vand.u32 %v353, 4294901760
        %1412 = vmatpush1.msra.mxu0 %v1411
        %1413 = vmatprep.subr.mxu0 0.0
        %v1414 = vand.u32 %v354, 4294901760
        %1415 = vmatpush1.msra.mxu0 %v1414
        %1416 = vmatprep.subr.mxu0 0.0
        %v1417 = vand.u32 %v355, 4294901760
        %1418 = vmatpush1.msra.mxu0 %v1417
        %1419 = vmatprep.subr.mxu0 0.0
        %v1420 = vand.u32 %v356, 4294901760
        %1421 = vmatpush1.msra.mxu0 %v1420
        %1422 = vmatprep.subr.mxu0 0.0
        %v1423 = vand.u32 %v357, 4294901760
        %1424 = vmatpush1.msra.mxu0 %v1423
        %1425 = vmatprep.subr.mxu0 0.0
        %v1426 = vand.u32 %v358, 4294901760
        %1427 = vmatpush1.msra.mxu0 %v1426
        %1428 = vmatprep.subr.mxu0 0.0
        %v1429 = vand.u32 %v359, 4294901760
        %1430 = vmatpush1.msra.mxu0 %v1429
        %1431 = vmatprep.subr.mxu0 0.0
        %v1432 = vand.u32 %v360, 4294901760
        %1433 = vmatpush1.msra.mxu0 %v1432
        %1434 = vmatprep.subr.mxu0 0.0
        %v1435 = vand.u32 %v361, 4294901760
        %1436 = vmatpush1.msra.mxu0 %v1435
        %1437 = vmatprep.subr.mxu0 0.0
        %v1438 = vand.u32 %v362, 4294901760
        %1439 = vmatpush1.msra.mxu0 %v1438
        %1440 = vmatprep.subr.mxu0 0.0
        %v1441 = vand.u32 %v363, 4294901760
        %1442 = vmatpush1.msra.mxu0 %v1441
        %1443 = vmatprep.subr.mxu0 0.0
        %v1444 = vand.u32 %v364, 4294901760
        %1445 = vmatpush1.msra.mxu0 %v1444
        %1446 = vmatprep.subr.mxu0 0.0
        %v1447 = vand.u32 %v365, 4294901760
        %1448 = vmatpush1.msra.mxu0 %v1447
        %1449 = vmatprep.subr.mxu0 0.0
        %v1450 = vand.u32 %v366, 4294901760
        %1451 = vmatpush1.msra.mxu0 %v1450
        %1452 = vmatprep.subr.mxu0 0.0
        %v1453 = vand.u32 %v367, 4294901760
        %1454 = vmatpush1.msra.mxu0 %v1453
        %1455 = vmatprep.subr.mxu0 0.0
        %v1456 = vand.u32 %v368, 4294901760
        %1457 = vmatpush1.msra.mxu0 %v1456
        %1458 = vmatprep.subr.mxu0 0.0
        %v1459 = vand.u32 %v369, 4294901760
        %1460 = vmatpush1.msra.mxu0 %v1459
        %1461 = vmatprep.subr.mxu0 0.0
        %v1462 = vand.u32 %v370, 4294901760
        %1463 = vmatpush1.msra.mxu0 %v1462
        %1464 = vmatprep.subr.mxu0 0.0
        %v1465 = vand.u32 %v371, 4294901760
        %1466 = vmatpush1.msra.mxu0 %v1465
        %1467 = vmatprep.subr.mxu0 0.0
        %v1468 = vand.u32 %v372, 4294901760
        %1469 = vmatpush1.msra.mxu0 %v1468
        %1470 = vmatprep.subr.mxu0 0.0
        %v1471 = vand.u32 %v373, 4294901760
        %1472 = vmatpush1.msra.mxu0 %v1471
        %1473 = vmatprep.subr.mxu0 0.0
        %v1474 = vand.u32 %v374, 4294901760
        %1475 = vmatpush1.msra.mxu0 %v1474
        %1476 = vmatprep.subr.mxu0 0.0
        %v1477 = vand.u32 %v375, 4294901760
        %1478 = vmatpush1.msra.mxu0 %v1477
        %1479 = vmatprep.subr.mxu0 0.0
        %v1480 = vand.u32 %v376, 4294901760
        %1481 = vmatpush1.msra.mxu0 %v1480
        %v1482 = vand.u32 %v903, 4294901760
        %v1483 = vsub.f32 %v903, %v1482
        %v1484 = vand.u32 %v1483, 4294901760
        %1485 = vmatprep.mubr.f32.mxu0 %v1484
        %v1486 = vand.u32 %v902, 4294901760
        %v1487 = vsub.f32 %v902, %v1486
        %v1488 = vand.u32 %v1487, 4294901760
        %1489 = vmatmul.mubr.f32.gmra.mrb[0].mxu0 %v1488
        %v1490 = vpop.f32.mrb[0].mxu0
        %v1491 = vadd.f32 %v1383, %v1490
        %v1492 = vpop.f32.mrb[0].mxu0
        %1493 = vdwg.mxu0
        %1494 = vmatprep.subr.mxu0 0.0
        %v1495 = vand.u32 %v345, 4294901760
        %v1496 = vsub.f32 %v345, %v1495
        %v1497 = vand.u32 %v1496, 4294901760
        %1498 = vmatpush1.msra.mxu0 %v1497
        %1499 = vmatprep.subr.mxu0 0.0
        %v1500 = vand.u32 %v346, 4294901760
        %v1501 = vsub.f32 %v346, %v1500
        %v1502 = vand.u32 %v1501, 4294901760
        %1503 = vmatpush1.msra.mxu0 %v1502
        %1504 = vmatprep.subr.mxu0 0.0
        %v1505 = vand.u32 %v347, 4294901760
        %v1506 = vsub.f32 %v347, %v1505
        %v1507 = vand.u32 %v1506, 4294901760
        %1508 = vmatpush1.msra.mxu0 %v1507
        %1509 = vmatprep.subr.mxu0 0.0
        %v1510 = vand.u32 %v348, 4294901760
        %v1511 = vsub.f32 %v348, %v1510
        %v1512 = vand.u32 %v1511, 4294901760
        %1513 = vmatpush1.msra.mxu0 %v1512
        %1514 = vmatprep.subr.mxu0 0.0
        %v1515 = vand.u32 %v349, 4294901760
        %v1516 = vsub.f32 %v349, %v1515
        %v1517 = vand.u32 %v1516, 4294901760
        %1518 = vmatpush1.msra.mxu0 %v1517
        %1519 = vmatprep.subr.mxu0 0.0
        %v1520 = vand.u32 %v350, 4294901760
        %v1521 = vsub.f32 %v350, %v1520
        %v1522 = vand.u32 %v1521, 4294901760
        %1523 = vmatpush1.msra.mxu0 %v1522
        %1524 = vmatprep.subr.mxu0 0.0
        %v1525 = vand.u32 %v351, 4294901760
        %v1526 = vsub.f32 %v351, %v1525
        %v1527 = vand.u32 %v1526, 4294901760
        %1528 = vmatpush1.msra.mxu0 %v1527
        %1529 = vmatprep.subr.mxu0 0.0
        %v1530 = vand.u32 %v352, 4294901760
        %v1531 = vsub.f32 %v352, %v1530
        %v1532 = vand.u32 %v1531, 4294901760
        %1533 = vmatpush1.msra.mxu0 %v1532
        %1534 = vmatprep.subr.mxu0 0.0
        %v1535 = vand.u32 %v353, 4294901760
        %v1536 = vsub.f32 %v353, %v1535
        %v1537 = vand.u32 %v1536, 4294901760
        %1538 = vmatpush1.msra.mxu0 %v1537
        %1539 = vmatprep.subr.mxu0 0.0
        %v1540 = vand.u32 %v354, 4294901760
        %v1541 = vsub.f32 %v354, %v1540
        %v1542 = vand.u32 %v1541, 4294901760
        %1543 = vmatpush1.msra.mxu0 %v1542
        %1544 = vmatprep.subr.mxu0 0.0
        %v1545 = vand.u32 %v355, 4294901760
        %v1546 = vsub.f32 %v355, %v1545
        %v1547 = vand.u32 %v1546, 4294901760
        %1548 = vmatpush1.msra.mxu0 %v1547
        %1549 = vmatprep.subr.mxu0 0.0
        %v1550 = vand.u32 %v356, 4294901760
        %v1551 = vsub.f32 %v356, %v1550
        %v1552 = vand.u32 %v1551, 4294901760
        %1553 = vmatpush1.msra.mxu0 %v1552
        %1554 = vmatprep.subr.mxu0 0.0
        %v1555 = vand.u32 %v357, 4294901760
        %v1556 = vsub.f32 %v357, %v1555
        %v1557 = vand.u32 %v1556, 4294901760
        %1558 = vmatpush1.msra.mxu0 %v1557
        %1559 = vmatprep.subr.mxu0 0.0
        %v1560 = vand.u32 %v358, 4294901760
        %v1561 = vsub.f32 %v358, %v1560
        %v1562 = vand.u32 %v1561, 4294901760
        %1563 = vmatpush1.msra.mxu0 %v1562
        %1564 = vmatprep.subr.mxu0 0.0
        %v1565 = vand.u32 %v359, 4294901760
        %v1566 = vsub.f32 %v359, %v1565
        %v1567 = vand.u32 %v1566, 4294901760
        %1568 = vmatpush1.msra.mxu0 %v1567
        %1569 = vmatprep.subr.mxu0 0.0
        %v1570 = vand.u32 %v360, 4294901760
        %v1571 = vsub.f32 %v360, %v1570
        %v1572 = vand.u32 %v1571, 4294901760
        %1573 = vmatpush1.msra.mxu0 %v1572
        %1574 = vmatprep.subr.mxu0 0.0
        %v1575 = vand.u32 %v361, 4294901760
        %v1576 = vsub.f32 %v361, %v1575
        %v1577 = vand.u32 %v1576, 4294901760
        %1578 = vmatpush1.msra.mxu0 %v1577
        %1579 = vmatprep.subr.mxu0 0.0
        %v1580 = vand.u32 %v362, 4294901760
        %v1581 = vsub.f32 %v362, %v1580
        %v1582 = vand.u32 %v1581, 4294901760
        %1583 = vmatpush1.msra.mxu0 %v1582
        %1584 = vmatprep.subr.mxu0 0.0
        %v1585 = vand.u32 %v363, 4294901760
        %v1586 = vsub.f32 %v363, %v1585
        %v1587 = vand.u32 %v1586, 4294901760
        %1588 = vmatpush1.msra.mxu0 %v1587
        %1589 = vmatprep.subr.mxu0 0.0
        %v1590 = vand.u32 %v364, 4294901760
        %v1591 = vsub.f32 %v364, %v1590
        %v1592 = vand.u32 %v1591, 4294901760
        %1593 = vmatpush1.msra.mxu0 %v1592
        %1594 = vmatprep.subr.mxu0 0.0
        %v1595 = vand.u32 %v365, 4294901760
        %v1596 = vsub.f32 %v365, %v1595
        %v1597 = vand.u32 %v1596, 4294901760
        %1598 = vmatpush1.msra.mxu0 %v1597
        %1599 = vmatprep.subr.mxu0 0.0
        %v1600 = vand.u32 %v366, 4294901760
        %v1601 = vsub.f32 %v366, %v1600
        %v1602 = vand.u32 %v1601, 4294901760
        %1603 = vmatpush1.msra.mxu0 %v1602
        %1604 = vmatprep.subr.mxu0 0.0
        %v1605 = vand.u32 %v367, 4294901760
        %v1606 = vsub.f32 %v367, %v1605
        %v1607 = vand.u32 %v1606, 4294901760
        %1608 = vmatpush1.msra.mxu0 %v1607
        %1609 = vmatprep.subr.mxu0 0.0
        %v1610 = vand.u32 %v368, 4294901760
        %v1611 = vsub.f32 %v368, %v1610
        %v1612 = vand.u32 %v1611, 4294901760
        %1613 = vmatpush1.msra.mxu0 %v1612
        %1614 = vmatprep.subr.mxu0 0.0
        %v1615 = vand.u32 %v369, 4294901760
        %v1616 = vsub.f32 %v369, %v1615
        %v1617 = vand.u32 %v1616, 4294901760
        %1618 = vmatpush1.msra.mxu0 %v1617
        %1619 = vmatprep.subr.mxu0 0.0
        %v1620 = vand.u32 %v370, 4294901760
        %v1621 = vsub.f32 %v370, %v1620
        %v1622 = vand.u32 %v1621, 4294901760
        %1623 = vmatpush1.msra.mxu0 %v1622
        %1624 = vmatprep.subr.mxu0 0.0
        %v1625 = vand.u32 %v371, 4294901760
        %v1626 = vsub.f32 %v371, %v1625
        %v1627 = vand.u32 %v1626, 4294901760
        %1628 = vmatpush1.msra.mxu0 %v1627
        %1629 = vmatprep.subr.mxu0 0.0
        %v1630 = vand.u32 %v372, 4294901760
        %v1631 = vsub.f32 %v372, %v1630
        %v1632 = vand.u32 %v1631, 4294901760
        %1633 = vmatpush1.msra.mxu0 %v1632
        %1634 = vmatprep.subr.mxu0 0.0
        %v1635 = vand.u32 %v373, 4294901760
        %v1636 = vsub.f32 %v373, %v1635
        %v1637 = vand.u32 %v1636, 4294901760
        %1638 = vmatpush1.msra.mxu0 %v1637
        %1639 = vmatprep.subr.mxu0 0.0
        %v1640 = vand.u32 %v374, 4294901760
        %v1641 = vsub.f32 %v374, %v1640
        %v1642 = vand.u32 %v1641, 4294901760
        %1643 = vmatpush1.msra.mxu0 %v1642
        %1644 = vmatprep.subr.mxu0 0.0
        %v1645 = vand.u32 %v375, 4294901760
        %v1646 = vsub.f32 %v375, %v1645
        %v1647 = vand.u32 %v1646, 4294901760
        %1648 = vmatpush1.msra.mxu0 %v1647
        %1649 = vmatprep.subr.mxu0 0.0
        %v1650 = vand.u32 %v376, 4294901760
        %v1651 = vsub.f32 %v376, %v1650
        %v1652 = vand.u32 %v1651, 4294901760
        %1653 = vmatpush1.msra.mxu0 %v1652
        %v1654 = vand.u32 %v903, 4294901760
        %1655 = vmatprep.mubr.f32.mxu0 %v1654
        %v1656 = vand.u32 %v902, 4294901760
        %1657 = vmatmul.mubr.f32.gmra.mrb[0].mxu0 %v1656
        %v1658 = vpop.f32.mrb[0].mxu0
        %v1659 = vadd.f32 %v1491, %v1658
        %v1660 = vpop.f32.mrb[0].mxu0
        %1661 = vdwg.mxu0
        %1662 = vmatprep.subr.mxu0 0.0
        %v1663 = vand.u32 %v345, 4294901760
        %1664 = vmatpush1.msra.mxu0 %v1663
        %1665 = vmatprep.subr.mxu0 0.0
        %v1666 = vand.u32 %v346, 4294901760
        %1667 = vmatpush1.msra.mxu0 %v1666
        %1668 = vmatprep.subr.mxu0 0.0
        %v1669 = vand.u32 %v347, 4294901760
        %1670 = vmatpush1.msra.mxu0 %v1669
        %1671 = vmatprep.subr.mxu0 0.0
        %v1672 = vand.u32 %v348, 4294901760
        %1673 = vmatpush1.msra.mxu0 %v1672
        %1674 = vmatprep.subr.mxu0 0.0
        %v1675 = vand.u32 %v349, 4294901760
        %1676 = vmatpush1.msra.mxu0 %v1675
        %1677 = vmatprep.subr.mxu0 0.0
        %v1678 = vand.u32 %v350, 4294901760
        %1679 = vmatpush1.msra.mxu0 %v1678
        %1680 = vmatprep.subr.mxu0 0.0
        %v1681 = vand.u32 %v351, 4294901760
        %1682 = vmatpush1.msra.mxu0 %v1681
        %1683 = vmatprep.subr.mxu0 0.0
        %v1684 = vand.u32 %v352, 4294901760
        %1685 = vmatpush1.msra.mxu0 %v1684
        %1686 = vmatprep.subr.mxu0 0.0
        %v1687 = vand.u32 %v353, 4294901760
        %1688 = vmatpush1.msra.mxu0 %v1687
        %1689 = vmatprep.subr.mxu0 0.0
        %v1690 = vand.u32 %v354, 4294901760
        %1691 = vmatpush1.msra.mxu0 %v1690
        %1692 = vmatprep.subr.mxu0 0.0
        %v1693 = vand.u32 %v355, 4294901760
        %1694 = vmatpush1.msra.mxu0 %v1693
        %1695 = vmatprep.subr.mxu0 0.0
        %v1696 = vand.u32 %v356, 4294901760
        %1697 = vmatpush1.msra.mxu0 %v1696
        %1698 = vmatprep.subr.mxu0 0.0
        %v1699 = vand.u32 %v357, 4294901760
        %1700 = vmatpush1.msra.mxu0 %v1699
        %1701 = vmatprep.subr.mxu0 0.0
        %v1702 = vand.u32 %v358, 4294901760
        %1703 = vmatpush1.msra.mxu0 %v1702
        %1704 = vmatprep.subr.mxu0 0.0
        %v1705 = vand.u32 %v359, 4294901760
        %1706 = vmatpush1.msra.mxu0 %v1705
        %1707 = vmatprep.subr.mxu0 0.0
        %v1708 = vand.u32 %v360, 4294901760
        %1709 = vmatpush1.msra.mxu0 %v1708
        %1710 = vmatprep.subr.mxu0 0.0
        %v1711 = vand.u32 %v361, 4294901760
        %1712 = vmatpush1.msra.mxu0 %v1711
        %1713 = vmatprep.subr.mxu0 0.0
        %v1714 = vand.u32 %v362, 4294901760
        %1715 = vmatpush1.msra.mxu0 %v1714
        %1716 = vmatprep.subr.mxu0 0.0
        %v1717 = vand.u32 %v363, 4294901760
        %1718 = vmatpush1.msra.mxu0 %v1717
        %1719 = vmatprep.subr.mxu0 0.0
        %v1720 = vand.u32 %v364, 4294901760
        %1721 = vmatpush1.msra.mxu0 %v1720
        %1722 = vmatprep.subr.mxu0 0.0
        %v1723 = vand.u32 %v365, 4294901760
        %1724 = vmatpush1.msra.mxu0 %v1723
        %1725 = vmatprep.subr.mxu0 0.0
        %v1726 = vand.u32 %v366, 4294901760
        %1727 = vmatpush1.msra.mxu0 %v1726
        %1728 = vmatprep.subr.mxu0 0.0
        %v1729 = vand.u32 %v367, 4294901760
        %1730 = vmatpush1.msra.mxu0 %v1729
        %1731 = vmatprep.subr.mxu0 0.0
        %v1732 = vand.u32 %v368, 4294901760
        %1733 = vmatpush1.msra.mxu0 %v1732
        %1734 = vmatprep.subr.mxu0 0.0
        %v1735 = vand.u32 %v369, 4294901760
        %1736 = vmatpush1.msra.mxu0 %v1735
        %1737 = vmatprep.subr.mxu0 0.0
        %v1738 = vand.u32 %v370, 4294901760
        %1739 = vmatpush1.msra.mxu0 %v1738
        %1740 = vmatprep.subr.mxu0 0.0
        %v1741 = vand.u32 %v371, 4294901760
        %1742 = vmatpush1.msra.mxu0 %v1741
        %1743 = vmatprep.subr.mxu0 0.0
        %v1744 = vand.u32 %v372, 4294901760
        %1745 = vmatpush1.msra.mxu0 %v1744
        %1746 = vmatprep.subr.mxu0 0.0
        %v1747 = vand.u32 %v373, 4294901760
        %1748 = vmatpush1.msra.mxu0 %v1747
        %1749 = vmatprep.subr.mxu0 0.0
        %v1750 = vand.u32 %v374, 4294901760
        %1751 = vmatpush1.msra.mxu0 %v1750
        %1752 = vmatprep.subr.mxu0 0.0
        %v1753 = vand.u32 %v375, 4294901760
        %1754 = vmatpush1.msra.mxu0 %v1753
        %1755 = vmatprep.subr.mxu0 0.0
        %v1756 = vand.u32 %v376, 4294901760
        %1757 = vmatpush1.msra.mxu0 %v1756
        %v1758 = vand.u32 %v903, 4294901760
        %1759 = vmatprep.mubr.f32.mxu0 %v1758
        %v1760 = vand.u32 %v902, 4294901760
        %1761 = vmatmul.mubr.f32.gmra.mrb[0].mxu0 %v1760
        %v1762 = vpop.f32.mrb[0].mxu0
        %v1763 = vadd.f32 %v1659, %v1762
        %v1764 = vpop.f32.mrb[0].mxu0
        %1765 = vdwg.mxu0
        %1767 = vset.pattern.permute.xlu0 0
        %1768 = vperm.xlu0 %1767, %v342
        %v1769 = vpop.permute.xlu0 %1768
        %v1772 = vsel %vm389, %v341, 0
        %1774 = vmatprep.subr.mxu0 0.0
        %v1775 = vand.u32 %v1763, 4294901760
        %1776 = vmatpush1.msra.mxu0 %v1775
        %1777 = vmatprep.subr.mxu0 0.0
        %1778 = vmatpush1.msra.mxu0 0.0
        %1779 = vmatprep.subr.mxu0 0.0
        %1780 = vmatpush1.msra.mxu0 0.0
        %1781 = vmatprep.subr.mxu0 0.0
        %1782 = vmatpush1.msra.mxu0 0.0
        %1783 = vmatprep.subr.mxu0 0.0
        %1784 = vmatpush1.msra.mxu0 0.0
        %1785 = vmatprep.subr.mxu0 0.0
        %1786 = vmatpush1.msra.mxu0 0.0
        %1787 = vmatprep.subr.mxu0 0.0
        %1788 = vmatpush1.msra.mxu0 0.0
        %1789 = vmatprep.subr.mxu0 0.0
        %1790 = vmatpush1.msra.mxu0 0.0
        %1791 = vmatprep.subr.mxu0 0.0
        %1792 = vmatpush1.msra.mxu0 0.0
        %1793 = vmatprep.subr.mxu0 0.0
        %1794 = vmatpush1.msra.mxu0 0.0
        %1795 = vmatprep.subr.mxu0 0.0
        %1796 = vmatpush1.msra.mxu0 0.0
        %1797 = vmatprep.subr.mxu0 0.0
        %1798 = vmatpush1.msra.mxu0 0.0
        %1799 = vmatprep.subr.mxu0 0.0
        %1800 = vmatpush1.msra.mxu0 0.0
        %1801 = vmatprep.subr.mxu0 0.0
        %1802 = vmatpush1.msra.mxu0 0.0
        %1803 = vmatprep.subr.mxu0 0.0
        %1804 = vmatpush1.msra.mxu0 0.0
        %1805 = vmatprep.subr.mxu0 0.0
        %1806 = vmatpush1.msra.mxu0 0.0
        %1807 = vmatprep.subr.mxu0 0.0
        %1808 = vmatpush1.msra.mxu0 0.0
        %1809 = vmatprep.subr.mxu0 0.0
        %1810 = vmatpush1.msra.mxu0 0.0
        %1811 = vmatprep.subr.mxu0 0.0
        %1812 = vmatpush1.msra.mxu0 0.0
        %1813 = vmatprep.subr.mxu0 0.0
        %1814 = vmatpush1.msra.mxu0 0.0
        %1815 = vmatprep.subr.mxu0 0.0
        %1816 = vmatpush1.msra.mxu0 0.0
        %1817 = vmatprep.subr.mxu0 0.0
        %1818 = vmatpush1.msra.mxu0 0.0
        %1819 = vmatprep.subr.mxu0 0.0
        %1820 = vmatpush1.msra.mxu0 0.0
        %1821 = vmatprep.subr.mxu0 0.0
        %1822 = vmatpush1.msra.mxu0 0.0
        %1823 = vmatprep.subr.mxu0 0.0
        %1824 = vmatpush1.msra.mxu0 0.0
        %1825 = vmatprep.subr.mxu0 0.0
        %1826 = vmatpush1.msra.mxu0 0.0
        %1827 = vmatprep.subr.mxu0 0.0
        %1828 = vmatpush1.msra.mxu0 0.0
        %1829 = vmatprep.subr.mxu0 0.0
        %1830 = vmatpush1.msra.mxu0 0.0
        %1831 = vmatprep.subr.mxu0 0.0
        %1832 = vmatpush1.msra.mxu0 0.0
        %1833 = vmatprep.subr.mxu0 0.0
        %1834 = vmatpush1.msra.mxu0 0.0
        %1835 = vmatprep.subr.mxu0 0.0
        %1836 = vmatpush1.msra.mxu0 0.0
        %1837 = vmatprep.subr.mxu0 0.0
        %1838 = vmatpush1.msra.mxu0 0.0
        %1839 = vmatprep.mubr.f32.mxu0 0.0
        %v1840 = vand.u32 %v1772, 4294901760
        %v1841 = vsub.f32 %v1772, %v1840
        %v1842 = vand.u32 %v1841, 4294901760
        %v1843 = vsub.f32 %v1841, %v1842
        %v1844 = vand.u32 %v1843, 4294901760
        %1845 = vmatmul.mubr.f32.gmra.mrb[0].mxu0 %v1844
        %v1846 = vpop.f32.mrb[0].mxu0
        %v1847 = vadd.f32 %v1769, %v1846
        %v1848 = vpop.f32.mrb[0].mxu0
        %1849 = vdwg.mxu0
        %1850 = vmatprep.subr.mxu0 0.0
        %v1851 = vand.u32 %v1763, 4294901760
        %v1852 = vsub.f32 %v1763, %v1851
        %v1853 = vand.u32 %v1852, 4294901760
        %v1854 = vsub.f32 %v1852, %v1853
        %v1855 = vand.u32 %v1854, 4294901760
        %1856 = vmatpush1.msra.mxu0 %v1855
        %1857 = vmatprep.subr.mxu0 0.0
        %1858 = vmatpush1.msra.mxu0 0.0
        %1859 = vmatprep.subr.mxu0 0.0
        %1860 = vmatpush1.msra.mxu0 0.0
        %1861 = vmatprep.subr.mxu0 0.0
        %1862 = vmatpush1.msra.mxu0 0.0
        %1863 = vmatprep.subr.mxu0 0.0
        %1864 = vmatpush1.msra.mxu0 0.0
        %1865 = vmatprep.subr.mxu0 0.0
        %1866 = vmatpush1.msra.mxu0 0.0
        %1867 = vmatprep.subr.mxu0 0.0
        %1868 = vmatpush1.msra.mxu0 0.0
        %1869 = vmatprep.subr.mxu0 0.0
        %1870 = vmatpush1.msra.mxu0 0.0
        %1871 = vmatprep.subr.mxu0 0.0
        %1872 = vmatpush1.msra.mxu0 0.0
        %1873 = vmatprep.subr.mxu0 0.0
        %1874 = vmatpush1.msra.mxu0 0.0
        %1875 = vmatprep.subr.mxu0 0.0
        %1876 = vmatpush1.msra.mxu0 0.0
        %1877 = vmatprep.subr.mxu0 0.0
        %1878 = vmatpush1.msra.mxu0 0.0
        %1879 = vmatprep.subr.mxu0 0.0
        %1880 = vmatpush1.msra.mxu0 0.0
        %1881 = vmatprep.subr.mxu0 0.0
        %1882 = vmatpush1.msra.mxu0 0.0
        %1883 = vmatprep.subr.mxu0 0.0
        %1884 = vmatpush1.msra.mxu0 0.0
        %1885 = vmatprep.subr.mxu0 0.0
        %1886 = vmatpush1.msra.mxu0 0.0
        %1887 = vmatprep.subr.mxu0 0.0
        %1888 = vmatpush1.msra.mxu0 0.0
        %1889 = vmatprep.subr.mxu0 0.0
        %1890 = vmatpush1.msra.mxu0 0.0
        %1891 = vmatprep.subr.mxu0 0.0
        %1892 = vmatpush1.msra.mxu0 0.0
        %1893 = vmatprep.subr.mxu0 0.0
        %1894 = vmatpush1.msra.mxu0 0.0
        %1895 = vmatprep.subr.mxu0 0.0
        %1896 = vmatpush1.msra.mxu0 0.0
        %1897 = vmatprep.subr.mxu0 0.0
        %1898 = vmatpush1.msra.mxu0 0.0
        %1899 = vmatprep.subr.mxu0 0.0
        %1900 = vmatpush1.msra.mxu0 0.0
        %1901 = vmatprep.subr.mxu0 0.0
        %1902 = vmatpush1.msra.mxu0 0.0
        %1903 = vmatprep.subr.mxu0 0.0
        %1904 = vmatpush1.msra.mxu0 0.0
        %1905 = vmatprep.subr.mxu0 0.0
        %1906 = vmatpush1.msra.mxu0 0.0
        %1907 = vmatprep.subr.mxu0 0.0
        %1908 = vmatpush1.msra.mxu0 0.0
        %1909 = vmatprep.subr.mxu0 0.0
        %1910 = vmatpush1.msra.mxu0 0.0
        %1911 = vmatprep.subr.mxu0 0.0
        %1912 = vmatpush1.msra.mxu0 0.0
        %1913 = vmatprep.subr.mxu0 0.0
        %1914 = vmatpush1.msra.mxu0 0.0
        %1915 = vmatprep.subr.mxu0 0.0
        %1916 = vmatpush1.msra.mxu0 0.0
        %1917 = vmatprep.subr.mxu0 0.0
        %1918 = vmatpush1.msra.mxu0 0.0
        %1919 = vmatprep.mubr.f32.mxu0 0.0
        %v1920 = vand.u32 %v1772, 4294901760
        %1921 = vmatmul.mubr.f32.gmra.mrb[0].mxu0 %v1920
        %v1922 = vpop.f32.mrb[0].mxu0
        %v1923 = vadd.f32 %v1847, %v1922
        %v1924 = vpop.f32.mrb[0].mxu0
        %1925 = vdwg.mxu0
        %1926 = vmatprep.subr.mxu0 0.0
        %v1927 = vand.u32 %v1763, 4294901760
        %v1928 = vsub.f32 %v1763, %v1927
        %1929 = vmatpush1.msra.mxu0 %v1928
        %1930 = vmatprep.subr.mxu0 0.0
        %1931 = vmatpush1.msra.mxu0 0.0
        %1932 = vmatprep.subr.mxu0 0.0
        %1933 = vmatpush1.msra.mxu0 0.0
        %1934 = vmatprep.subr.mxu0 0.0
        %1935 = vmatpush1.msra.mxu0 0.0
        %1936 = vmatprep.subr.mxu0 0.0
        %1937 = vmatpush1.msra.mxu0 0.0
        %1938 = vmatprep.subr.mxu0 0.0
        %1939 = vmatpush1.msra.mxu0 0.0
        %1940 = vmatprep.subr.mxu0 0.0
        %1941 = vmatpush1.msra.mxu0 0.0
        %1942 = vmatprep.subr.mxu0 0.0
        %1943 = vmatpush1.msra.mxu0 0.0
        %1944 = vmatprep.subr.mxu0 0.0
        %1945 = vmatpush1.msra.mxu0 0.0
        %1946 = vmatprep.subr.mxu0 0.0
        %1947 = vmatpush1.msra.mxu0 0.0
        %1948 = vmatprep.subr.mxu0 0.0
        %1949 = vmatpush1.msra.mxu0 0.0
        %1950 = vmatprep.subr.mxu0 0.0
        %1951 = vmatpush1.msra.mxu0 0.0
        %1952 = vmatprep.subr.mxu0 0.0
        %1953 = vmatpush1.msra.mxu0 0.0
        %1954 = vmatprep.subr.mxu0 0.0
        %1955 = vmatpush1.msra.mxu0 0.0
        %1956 = vmatprep.subr.mxu0 0.0
        %1957 = vmatpush1.msra.mxu0 0.0
        %1958 = vmatprep.subr.mxu0 0.0
        %1959 = vmatpush1.msra.mxu0 0.0
        %1960 = vmatprep.subr.mxu0 0.0
        %1961 = vmatpush1.msra.mxu0 0.0
        %1962 = vmatprep.subr.mxu0 0.0
        %1963 = vmatpush1.msra.mxu0 0.0
        %1964 = vmatprep.subr.mxu0 0.0
        %1965 = vmatpush1.msra.mxu0 0.0
        %1966 = vmatprep.subr.mxu0 0.0
        %1967 = vmatpush1.msra.mxu0 0.0
        %1968 = vmatprep.subr.mxu0 0.0
        %1969 = vmatpush1.msra.mxu0 0.0
        %1970 = vmatprep.subr.mxu0 0.0
        %1971 = vmatpush1.msra.mxu0 0.0
        %1972 = vmatprep.subr.mxu0 0.0
        %1973 = vmatpush1.msra.mxu0 0.0
        %1974 = vmatprep.subr.mxu0 0.0
        %1975 = vmatpush1.msra.mxu0 0.0
        %1976 = vmatprep.subr.mxu0 0.0
        %1977 = vmatpush1.msra.mxu0 0.0
        %1978 = vmatprep.subr.mxu0 0.0
        %1979 = vmatpush1.msra.mxu0 0.0
        %1980 = vmatprep.subr.mxu0 0.0
        %1981 = vmatpush1.msra.mxu0 0.0
        %1982 = vmatprep.subr.mxu0 0.0
        %1983 = vmatpush1.msra.mxu0 0.0
        %1984 = vmatprep.subr.mxu0 0.0
        %1985 = vmatpush1.msra.mxu0 0.0
        %1986 = vmatprep.subr.mxu0 0.0
        %1987 = vmatpush1.msra.mxu0 0.0
        %1988 = vmatprep.subr.mxu0 0.0
        %1989 = vmatpush1.msra.mxu0 0.0
        %1990 = vmatprep.subr.mxu0 0.0
        %1991 = vmatpush1.msra.mxu0 0.0
        %1992 = vmatprep.mubr.f32.mxu0 0.0
        %v1993 = vand.u32 %v1772, 4294901760
        %v1994 = vsub.f32 %v1772, %v1993
        %1995 = vmatmul.mubr.f32.gmra.mrb[0].mxu0 %v1994
        %v1996 = vpop.f32.mrb[0].mxu0
        %v1997 = vadd.f32 %v1923, %v1996
        %v1998 = vpop.f32.mrb[0].mxu0
        %1999 = vdwg.mxu0
        %2000 = vmatprep.subr.mxu0 0.0
        %v2001 = vand.u32 %v1763, 4294901760
        %2002 = vmatpush1.msra.mxu0 %v2001
        %2003 = vmatprep.subr.mxu0 0.0
        %2004 = vmatpush1.msra.mxu0 0.0
        %2005 = vmatprep.subr.mxu0 0.0
        %2006 = vmatpush1.msra.mxu0 0.0
        %2007 = vmatprep.subr.mxu0 0.0
        %2008 = vmatpush1.msra.mxu0 0.0
        %2009 = vmatprep.subr.mxu0 0.0
        %2010 = vmatpush1.msra.mxu0 0.0
        %2011 = vmatprep.subr.mxu0 0.0
        %2012 = vmatpush1.msra.mxu0 0.0
        %2013 = vmatprep.subr.mxu0 0.0
        %2014 = vmatpush1.msra.mxu0 0.0
        %2015 = vmatprep.subr.mxu0 0.0
        %2016 = vmatpush1.msra.mxu0 0.0
        %2017 = vmatprep.subr.mxu0 0.0
        %2018 = vmatpush1.msra.mxu0 0.0
        %2019 = vmatprep.subr.mxu0 0.0
        %2020 = vmatpush1.msra.mxu0 0.0
        %2021 = vmatprep.subr.mxu0 0.0
        %2022 = vmatpush1.msra.mxu0 0.0
        %2023 = vmatprep.subr.mxu0 0.0
        %2024 = vmatpush1.msra.mxu0 0.0
        %2025 = vmatprep.subr.mxu0 0.0
        %2026 = vmatpush1.msra.mxu0 0.0
        %2027 = vmatprep.subr.mxu0 0.0
        %2028 = vmatpush1.msra.mxu0 0.0
        %2029 = vmatprep.subr.mxu0 0.0
        %2030 = vmatpush1.msra.mxu0 0.0
        %2031 = vmatprep.subr.mxu0 0.0
        %2032 = vmatpush1.msra.mxu0 0.0
        %2033 = vmatprep.subr.mxu0 0.0
        %2034 = vmatpush1.msra.mxu0 0.0
        %2035 = vmatprep.subr.mxu0 0.0
        %2036 = vmatpush1.msra.mxu0 0.0
        %2037 = vmatprep.subr.mxu0 0.0
        %2038 = vmatpush1.msra.mxu0 0.0
        %2039 = vmatprep.subr.mxu0 0.0
        %2040 = vmatpush1.msra.mxu0 0.0
        %2041 = vmatprep.subr.mxu0 0.0
        %2042 = vmatpush1.msra.mxu0 0.0
        %2043 = vmatprep.subr.mxu0 0.0
        %2044 = vmatpush1.msra.mxu0 0.0
        %2045 = vmatprep.subr.mxu0 0.0
        %2046 = vmatpush1.msra.mxu0 0.0
        %2047 = vmatprep.subr.mxu0 0.0
        %2048 = vmatpush1.msra.mxu0 0.0
        %2049 = vmatprep.subr.mxu0 0.0
        %2050 = vmatpush1.msra.mxu0 0.0
        %2051 = vmatprep.subr.mxu0 0.0
        %2052 = vmatpush1.msra.mxu0 0.0
        %2053 = vmatprep.subr.mxu0 0.0
        %2054 = vmatpush1.msra.mxu0 0.0
        %2055 = vmatprep.subr.mxu0 0.0
        %2056 = vmatpush1.msra.mxu0 0.0
        %2057 = vmatprep.subr.mxu0 0.0
        %2058 = vmatpush1.msra.mxu0 0.0
        %2059 = vmatprep.subr.mxu0 0.0
        %2060 = vmatpush1.msra.mxu0 0.0
        %2061 = vmatprep.subr.mxu0 0.0
        %2062 = vmatpush1.msra.mxu0 0.0
        %2063 = vmatprep.subr.mxu0 0.0
        %2064 = vmatpush1.msra.mxu0 0.0
        %2065 = vmatprep.mubr.f32.mxu0 0.0
        %v2066 = vand.u32 %v1772, 4294901760
        %v2067 = vsub.f32 %v1772, %v2066
        %v2068 = vand.u32 %v2067, 4294901760
        %2069 = vmatmul.mubr.f32.gmra.mrb[0].mxu0 %v2068
        %v2070 = vpop.f32.mrb[0].mxu0
        %v2071 = vadd.f32 %v1997, %v2070
        %v2072 = vpop.f32.mrb[0].mxu0
        %2073 = vdwg.mxu0
        %2074 = vmatprep.subr.mxu0 0.0
        %v2075 = vand.u32 %v1763, 4294901760
        %v2076 = vsub.f32 %v1763, %v2075
        %v2077 = vand.u32 %v2076, 4294901760
        %2078 = vmatpush1.msra.mxu0 %v2077
        %2079 = vmatprep.subr.mxu0 0.0
        %2080 = vmatpush1.msra.mxu0 0.0
        %2081 = vmatprep.subr.mxu0 0.0
        %2082 = vmatpush1.msra.mxu0 0.0
        %2083 = vmatprep.subr.mxu0 0.0
        %2084 = vmatpush1.msra.mxu0 0.0
        %2085 = vmatprep.subr.mxu0 0.0
        %2086 = vmatpush1.msra.mxu0 0.0
        %2087 = vmatprep.subr.mxu0 0.0
        %2088 = vmatpush1.msra.mxu0 0.0
        %2089 = vmatprep.subr.mxu0 0.0
        %2090 = vmatpush1.msra.mxu0 0.0
        %2091 = vmatprep.subr.mxu0 0.0
        %2092 = vmatpush1.msra.mxu0 0.0
        %2093 = vmatprep.subr.mxu0 0.0
        %2094 = vmatpush1.msra.mxu0 0.0
        %2095 = vmatprep.subr.mxu0 0.0
        %2096 = vmatpush1.msra.mxu0 0.0
        %2097 = vmatprep.subr.mxu0 0.0
        %2098 = vmatpush1.msra.mxu0 0.0
        %2099 = vmatprep.subr.mxu0 0.0
        %2100 = vmatpush1.msra.mxu0 0.0
        %2101 = vmatprep.subr.mxu0 0.0
        %2102 = vmatpush1.msra.mxu0 0.0
        %2103 = vmatprep.subr.mxu0 0.0
        %2104 = vmatpush1.msra.mxu0 0.0
        %2105 = vmatprep.subr.mxu0 0.0
        %2106 = vmatpush1.msra.mxu0 0.0
        %2107 = vmatprep.subr.mxu0 0.0
        %2108 = vmatpush1.msra.mxu0 0.0
        %2109 = vmatprep.subr.mxu0 0.0
        %2110 = vmatpush1.msra.mxu0 0.0
        %2111 = vmatprep.subr.mxu0 0.0
        %2112 = vmatpush1.msra.mxu0 0.0
        %2113 = vmatprep.subr.mxu0 0.0
        %2114 = vmatpush1.msra.mxu0 0.0
        %2115 = vmatprep.subr.mxu0 0.0
        %2116 = vmatpush1.msra.mxu0 0.0
        %2117 = vmatprep.subr.mxu0 0.0
        %2118 = vmatpush1.msra.mxu0 0.0
        %2119 = vmatprep.subr.mxu0 0.0
        %2120 = vmatpush1.msra.mxu0 0.0
        %2121 = vmatprep.subr.mxu0 0.0
        %2122 = vmatpush1.msra.mxu0 0.0
        %2123 = vmatprep.subr.mxu0 0.0
        %2124 = vmatpush1.msra.mxu0 0.0
        %2125 = vmatprep.subr.mxu0 0.0
        %2126 = vmatpush1.msra.mxu0 0.0
        %2127 = vmatprep.subr.mxu0 0.0
        %2128 = vmatpush1.msra.mxu0 0.0
        %2129 = vmatprep.subr.mxu0 0.0
        %2130 = vmatpush1.msra.mxu0 0.0
        %2131 = vmatprep.subr.mxu0 0.0
        %2132 = vmatpush1.msra.mxu0 0.0
        %2133 = vmatprep.subr.mxu0 0.0
        %2134 = vmatpush1.msra.mxu0 0.0
        %2135 = vmatprep.subr.mxu0 0.0
        %2136 = vmatpush1.msra.mxu0 0.0
        %2137 = vmatprep.subr.mxu0 0.0
        %2138 = vmatpush1.msra.mxu0 0.0
        %2139 = vmatprep.subr.mxu0 0.0
        %2140 = vmatpush1.msra.mxu0 0.0
        %2141 = vmatprep.mubr.f32.mxu0 0.0
        %v2142 = vand.u32 %v1772, 4294901760
        %2143 = vmatmul.mubr.f32.gmra.mrb[0].mxu0 %v2142
        %v2144 = vpop.f32.mrb[0].mxu0
        %v2145 = vadd.f32 %v2071, %v2144
        %v2146 = vpop.f32.mrb[0].mxu0
        %2147 = vdwg.mxu0
        %2148 = vmatprep.subr.mxu0 0.0
        %v2149 = vand.u32 %v1763, 4294901760
        %2150 = vmatpush1.msra.mxu0 %v2149
        %2151 = vmatprep.subr.mxu0 0.0
        %2152 = vmatpush1.msra.mxu0 0.0
        %2153 = vmatprep.subr.mxu0 0.0
        %2154 = vmatpush1.msra.mxu0 0.0
        %2155 = vmatprep.subr.mxu0 0.0
        %2156 = vmatpush1.msra.mxu0 0.0
        %2157 = vmatprep.subr.mxu0 0.0
        %2158 = vmatpush1.msra.mxu0 0.0
        %2159 = vmatprep.subr.mxu0 0.0
        %2160 = vmatpush1.msra.mxu0 0.0
        %2161 = vmatprep.subr.mxu0 0.0
        %2162 = vmatpush1.msra.mxu0 0.0
        %2163 = vmatprep.subr.mxu0 0.0
        %2164 = vmatpush1.msra.mxu0 0.0
        %2165 = vmatprep.subr.mxu0 0.0
        %2166 = vmatpush1.msra.mxu0 0.0
        %2167 = vmatprep.subr.mxu0 0.0
        %2168 = vmatpush1.msra.mxu0 0.0
        %2169 = vmatprep.subr.mxu0 0.0
        %2170 = vmatpush1.msra.mxu0 0.0
        %2171 = vmatprep.subr.mxu0 0.0
        %2172 = vmatpush1.msra.mxu0 0.0
        %2173 = vmatprep.subr.mxu0 0.0
        %2174 = vmatpush1.msra.mxu0 0.0
        %2175 = vmatprep.subr.mxu0 0.0
        %2176 = vmatpush1.msra.mxu0 0.0
        %2177 = vmatprep.subr.mxu0 0.0
        %2178 = vmatpush1.msra.mxu0 0.0
        %2179 = vmatprep.subr.mxu0 0.0
        %2180 = vmatpush1.msra.mxu0 0.0
        %2181 = vmatprep.subr.mxu0 0.0
        %2182 = vmatpush1.msra.mxu0 0.0
        %2183 = vmatprep.subr.mxu0 0.0
        %2184 = vmatpush1.msra.mxu0 0.0
        %2185 = vmatprep.subr.mxu0 0.0
        %2186 = vmatpush1.msra.mxu0 0.0
        %2187 = vmatprep.subr.mxu0 0.0
        %2188 = vmatpush1.msra.mxu0 0.0
        %2189 = vmatprep.subr.mxu0 0.0
        %2190 = vmatpush1.msra.mxu0 0.0
        %2191 = vmatprep.subr.mxu0 0.0
        %2192 = vmatpush1.msra.mxu0 0.0
        %2193 = vmatprep.subr.mxu0 0.0
        %2194 = vmatpush1.msra.mxu0 0.0
        %2195 = vmatprep.subr.mxu0 0.0
        %2196 = vmatpush1.msra.mxu0 0.0
        %2197 = vmatprep.subr.mxu0 0.0
        %2198 = vmatpush1.msra.mxu0 0.0
        %2199 = vmatprep.subr.mxu0 0.0
        %2200 = vmatpush1.msra.mxu0 0.0
        %2201 = vmatprep.subr.mxu0 0.0
        %2202 = vmatpush1.msra.mxu0 0.0
        %2203 = vmatprep.subr.mxu0 0.0
        %2204 = vmatpush1.msra.mxu0 0.0
        %2205 = vmatprep.subr.mxu0 0.0
        %2206 = vmatpush1.msra.mxu0 0.0
        %2207 = vmatprep.subr.mxu0 0.0
        %2208 = vmatpush1.msra.mxu0 0.0
        %2209 = vmatprep.subr.mxu0 0.0
        %2210 = vmatpush1.msra.mxu0 0.0
        %2211 = vmatprep.subr.mxu0 0.0
        %2212 = vmatpush1.msra.mxu0 0.0
        %2213 = vmatprep.mubr.f32.mxu0 0.0
        %v2214 = vand.u32 %v1772, 4294901760
        %2215 = vmatmul.mubr.f32.gmra.mrb[0].mxu0 %v2214
        %v2216 = vpop.f32.mrb[0].mxu0
        %v2217 = vadd.f32 %v2145, %v2216
        %v2218 = vpop.f32.mrb[0].mxu0
        %2219 = vdwg.mxu0
        %vm2220 = vcmask 25600
        %v2221 = vsel %vm2220, %v2217, 0.0
        %2222 = vadd.xlane.f32.xlu0 %v2221
        %v2223 = vpop.xlane.xlu0 %2222
        %v2224 = vrot.slane %v2223, 4
        %v2225 = vadd.f32 %v2223, %v2224
        %v2226 = vrot.slane %v2225, 2
        %v2227 = vadd.f32 %v2225, %v2226
        %v2228 = vrot.slane %v2227, 1
        %v2229 = vadd.f32 %v2227, %v2228
        %s2230 = vtos %v2229
        %v2231 = vrcp.pop 8.0
        %s2232 = vtos %v2231
        %s2233 = smul.f32 %s2230, %s2232
        %v2234 = vstv %s2233
        %v2235 = vsub.f32 %v2217, %v2234
        %v2236 = vmul.f32 %v2235, %v2235
        %v2237 = vsel %vm2220, %v2236, 0.0
        %2238 = vadd.xlane.f32.xlu0 %v2237
        %v2239 = vpop.xlane.xlu0 %2238
        %v2240 = vrot.slane %v2239, 4
        %v2241 = vadd.f32 %v2239, %v2240
        %v2242 = vrot.slane %v2241, 2
        %v2243 = vadd.f32 %v2241, %v2242
        %v2244 = vrot.slane %v2243, 1
        %v2245 = vadd.f32 %v2243, %v2244
        %s2246 = vtos %v2245
        %v2247 = vrcp.pop 8.0
        %s2248 = vtos %v2247
        %s2249 = smul.f32 %s2246, %s2248
        %s2250 = sadd.f32 %s2249, 1e-05
        %v2251 = vstv %s2250
        %v2252 = vrsqrt.pop %v2251
        %s2253 = vtos %v2252
        %v2254 = vstv %s2253
        %v2255 = vmul.f32 %v2235, %v2254
        %v2256 = vmax.f32 %v2255, 0.0
        %2258 = vset.pattern.permute.xlu0 0
        %2259 = vperm.xlu0 %2258, %v344
        %v2260 = vpop.permute.xlu0 %2259
        %vm2262 = vcmask 15360
        %v2264 = vsel %vm2262, %v343, 0
        %vm2266 = vcmask 1041408
        %v2268 = vsel %vm2266, %v2256, 0
        %2270 = vmatprep.subr.mxu0 0.0
        %v2271 = vand.u32 %v2268, 4294901760
        %2272 = vmatpush1.msra.mxu0 %v2271
        %2273 = vmatprep.subr.mxu0 0.0
        %2274 = vmatpush1.msra.mxu0 0.0
        %2275 = vmatprep.subr.mxu0 0.0
        %2276 = vmatpush1.msra.mxu0 0.0
        %2277 = vmatprep.subr.mxu0 0.0
        %2278 = vmatpush1.msra.mxu0 0.0
        %2279 = vmatprep.subr.mxu0 0.0
        %2280 = vmatpush1.msra.mxu0 0.0
        %2281 = vmatprep.subr.mxu0 0.0
        %2282 = vmatpush1.msra.mxu0 0.0
        %2283 = vmatprep.subr.mxu0 0.0
        %2284 = vmatpush1.msra.mxu0 0.0
        %2285 = vmatprep.subr.mxu0 0.0
        %2286 = vmatpush1.msra.mxu0 0.0
        %2287 = vmatprep.subr.mxu0 0.0
        %2288 = vmatpush1.msra.mxu0 0.0
        %2289 = vmatprep.subr.mxu0 0.0
        %2290 = vmatpush1.msra.mxu0 0.0
        %2291 = vmatprep.subr.mxu0 0.0
        %2292 = vmatpush1.msra.mxu0 0.0
        %2293 = vmatprep.subr.mxu0 0.0
        %2294 = vmatpush1.msra.mxu0 0.0
        %2295 = vmatprep.subr.mxu0 0.0
        %2296 = vmatpush1.msra.mxu0 0.0
        %2297 = vmatprep.subr.mxu0 0.0
        %2298 = vmatpush1.msra.mxu0 0.0
        %2299 = vmatprep.subr.mxu0 0.0
        %2300 = vmatpush1.msra.mxu0 0.0
        %2301 = vmatprep.subr.mxu0 0.0
        %2302 = vmatpush1.msra.mxu0 0.0
        %2303 = vmatprep.subr.mxu0 0.0
        %2304 = vmatpush1.msra.mxu0 0.0
        %2305 = vmatprep.subr.mxu0 0.0
        %2306 = vmatpush1.msra.mxu0 0.0
        %2307 = vmatprep.subr.mxu0 0.0
        %2308 = vmatpush1.msra.mxu0 0.0
        %2309 = vmatprep.subr.mxu0 0.0
        %2310 = vmatpush1.msra.mxu0 0.0
        %2311 = vmatprep.subr.mxu0 0.0
        %2312 = vmatpush1.msra.mxu0 0.0
        %2313 = vmatprep.subr.mxu0 0.0
        %2314 = vmatpush1.msra.mxu0 0.0
        %2315 = vmatprep.subr.mxu0 0.0
        %2316 = vmatpush1.msra.mxu0 0.0
        %2317 = vmatprep.subr.mxu0 0.0
        %2318 = vmatpush1.msra.mxu0 0.0
        %2319 = vmatprep.subr.mxu0 0.0
        %2320 = vmatpush1.msra.mxu0 0.0
        %2321 = vmatprep.subr.mxu0 0.0
        %2322 = vmatpush1.msra.mxu0 0.0
        %2323 = vmatprep.subr.mxu0 0.0
        %2324 = vmatpush1.msra.mxu0 0.0
        %2325 = vmatprep.subr.mxu0 0.0
        %2326 = vmatpush1.msra.mxu0 0.0
        %2327 = vmatprep.subr.mxu0 0.0
        %2328 = vmatpush1.msra.mxu0 0.0
        %2329 = vmatprep.subr.mxu0 0.0
        %2330 = vmatpush1.msra.mxu0 0.0
        %2331 = vmatprep.subr.mxu0 0.0
        %2332 = vmatpush1.msra.mxu0 0.0
        %2333 = vmatprep.subr.mxu0 0.0
        %2334 = vmatpush1.msra.mxu0 0.0
        %2335 = vmatprep.mubr.f32.mxu0 0.0
        %v2336 = vand.u32 %v2264, 4294901760
        %v2337 = vsub.f32 %v2264, %v2336
        %v2338 = vand.u32 %v2337, 4294901760
        %v2339 = vsub.f32 %v2337, %v2338
        %v2340 = vand.u32 %v2339, 4294901760
        %2341 = vmatmul.mubr.f32.gmra.mrb[0].mxu0 %v2340
        %v2342 = vpop.f32.mrb[0].mxu0
        %v2343 = vadd.f32 %v2260, %v2342
        %v2344 = vpop.f32.mrb[0].mxu0
        %2345 = vdwg.mxu0
        %2346 = vmatprep.subr.mxu0 0.0
        %v2347 = vand.u32 %v2268, 4294901760
        %v2348 = vsub.f32 %v2268, %v2347
        %v2349 = vand.u32 %v2348, 4294901760
        %v2350 = vsub.f32 %v2348, %v2349
        %v2351 = vand.u32 %v2350, 4294901760
        %2352 = vmatpush1.msra.mxu0 %v2351
        %2353 = vmatprep.subr.mxu0 0.0
        %2354 = vmatpush1.msra.mxu0 0.0
        %2355 = vmatprep.subr.mxu0 0.0
        %2356 = vmatpush1.msra.mxu0 0.0
        %2357 = vmatprep.subr.mxu0 0.0
        %2358 = vmatpush1.msra.mxu0 0.0
        %2359 = vmatprep.subr.mxu0 0.0
        %2360 = vmatpush1.msra.mxu0 0.0
        %2361 = vmatprep.subr.mxu0 0.0
        %2362 = vmatpush1.msra.mxu0 0.0
        %2363 = vmatprep.subr.mxu0 0.0
        %2364 = vmatpush1.msra.mxu0 0.0
        %2365 = vmatprep.subr.mxu0 0.0
        %2366 = vmatpush1.msra.mxu0 0.0
        %2367 = vmatprep.subr.mxu0 0.0
        %2368 = vmatpush1.msra.mxu0 0.0
        %2369 = vmatprep.subr.mxu0 0.0
        %2370 = vmatpush1.msra.mxu0 0.0
        %2371 = vmatprep.subr.mxu0 0.0
        %2372 = vmatpush1.msra.mxu0 0.0
        %2373 = vmatprep.subr.mxu0 0.0
        %2374 = vmatpush1.msra.mxu0 0.0
        %2375 = vmatprep.subr.mxu0 0.0
        %2376 = vmatpush1.msra.mxu0 0.0
        %2377 = vmatprep.subr.mxu0 0.0
        %2378 = vmatpush1.msra.mxu0 0.0
        %2379 = vmatprep.subr.mxu0 0.0
        %2380 = vmatpush1.msra.mxu0 0.0
        %2381 = vmatprep.subr.mxu0 0.0
        %2382 = vmatpush1.msra.mxu0 0.0
        %2383 = vmatprep.subr.mxu0 0.0
        %2384 = vmatpush1.msra.mxu0 0.0
        %2385 = vmatprep.subr.mxu0 0.0
        %2386 = vmatpush1.msra.mxu0 0.0
        %2387 = vmatprep.subr.mxu0 0.0
        %2388 = vmatpush1.msra.mxu0 0.0
        %2389 = vmatprep.subr.mxu0 0.0
        %2390 = vmatpush1.msra.mxu0 0.0
        %2391 = vmatprep.subr.mxu0 0.0
        %2392 = vmatpush1.msra.mxu0 0.0
        %2393 = vmatprep.subr.mxu0 0.0
        %2394 = vmatpush1.msra.mxu0 0.0
        %2395 = vmatprep.subr.mxu0 0.0
        %2396 = vmatpush1.msra.mxu0 0.0
        %2397 = vmatprep.subr.mxu0 0.0
        %2398 = vmatpush1.msra.mxu0 0.0
        %2399 = vmatprep.subr.mxu0 0.0
        %2400 = vmatpush1.msra.mxu0 0.0
        %2401 = vmatprep.subr.mxu0 0.0
        %2402 = vmatpush1.msra.mxu0 0.0
        %2403 = vmatprep.subr.mxu0 0.0
        %2404 = vmatpush1.msra.mxu0 0.0
        %2405 = vmatprep.subr.mxu0 0.0
        %2406 = vmatpush1.msra.mxu0 0.0
        %2407 = vmatprep.subr.mxu0 0.0
        %2408 = vmatpush1.msra.mxu0 0.0
        %2409 = vmatprep.subr.mxu0 0.0
        %2410 = vmatpush1.msra.mxu0 0.0
        %2411 = vmatprep.subr.mxu0 0.0
        %2412 = vmatpush1.msra.mxu0 0.0
        %2413 = vmatprep.subr.mxu0 0.0
        %2414 = vmatpush1.msra.mxu0 0.0
        %2415 = vmatprep.mubr.f32.mxu0 0.0
        %v2416 = vand.u32 %v2264, 4294901760
        %2417 = vmatmul.mubr.f32.gmra.mrb[0].mxu0 %v2416
        %v2418 = vpop.f32.mrb[0].mxu0
        %v2419 = vadd.f32 %v2343, %v2418
        %v2420 = vpop.f32.mrb[0].mxu0
        %2421 = vdwg.mxu0
        %2422 = vmatprep.subr.mxu0 0.0
        %v2423 = vand.u32 %v2268, 4294901760
        %v2424 = vsub.f32 %v2268, %v2423
        %2425 = vmatpush1.msra.mxu0 %v2424
        %2426 = vmatprep.subr.mxu0 0.0
        %2427 = vmatpush1.msra.mxu0 0.0
        %2428 = vmatprep.subr.mxu0 0.0
        %2429 = vmatpush1.msra.mxu0 0.0
        %2430 = vmatprep.subr.mxu0 0.0
        %2431 = vmatpush1.msra.mxu0 0.0
        %2432 = vmatprep.subr.mxu0 0.0
        %2433 = vmatpush1.msra.mxu0 0.0
        %2434 = vmatprep.subr.mxu0 0.0
        %2435 = vmatpush1.msra.mxu0 0.0
        %2436 = vmatprep.subr.mxu0 0.0
        %2437 = vmatpush1.msra.mxu0 0.0
        %2438 = vmatprep.subr.mxu0 0.0
        %2439 = vmatpush1.msra.mxu0 0.0
        %2440 = vmatprep.subr.mxu0 0.0
        %2441 = vmatpush1.msra.mxu0 0.0
        %2442 = vmatprep.subr.mxu0 0.0
        %2443 = vmatpush1.msra.mxu0 0.0
        %2444 = vmatprep.subr.mxu0 0.0
        %2445 = vmatpush1.msra.mxu0 0.0
        %2446 = vmatprep.subr.mxu0 0.0
        %2447 = vmatpush1.msra.mxu0 0.0
        %2448 = vmatprep.subr.mxu0 0.0
        %2449 = vmatpush1.msra.mxu0 0.0
        %2450 = vmatprep.subr.mxu0 0.0
        %2451 = vmatpush1.msra.mxu0 0.0
        %2452 = vmatprep.subr.mxu0 0.0
        %2453 = vmatpush1.msra.mxu0 0.0
        %2454 = vmatprep.subr.mxu0 0.0
        %2455 = vmatpush1.msra.mxu0 0.0
        %2456 = vmatprep.subr.mxu0 0.0
        %2457 = vmatpush1.msra.mxu0 0.0
        %2458 = vmatprep.subr.mxu0 0.0
        %2459 = vmatpush1.msra.mxu0 0.0
        %2460 = vmatprep.subr.mxu0 0.0
        %2461 = vmatpush1.msra.mxu0 0.0
        %2462 = vmatprep.subr.mxu0 0.0
        %2463 = vmatpush1.msra.mxu0 0.0
        %2464 = vmatprep.subr.mxu0 0.0
        %2465 = vmatpush1.msra.mxu0 0.0
        %2466 = vmatprep.subr.mxu0 0.0
        %2467 = vmatpush1.msra.mxu0 0.0
        %2468 = vmatprep.subr.mxu0 0.0
        %2469 = vmatpush1.msra.mxu0 0.0
        %2470 = vmatprep.subr.mxu0 0.0
        %2471 = vmatpush1.msra.mxu0 0.0
        %2472 = vmatprep.subr.mxu0 0.0
        %2473 = vmatpush1.msra.mxu0 0.0
        %2474 = vmatprep.subr.mxu0 0.0
        %2475 = vmatpush1.msra.mxu0 0.0
        %2476 = vmatprep.subr.mxu0 0.0
        %2477 = vmatpush1.msra.mxu0 0.0
        %2478 = vmatprep.subr.mxu0 0.0
        %2479 = vmatpush1.msra.mxu0 0.0
        %2480 = vmatprep.subr.mxu0 0.0
        %2481 = vmatpush1.msra.mxu0 0.0
        %2482 = vmatprep.subr.mxu0 0.0
        %2483 = vmatpush1.msra.mxu0 0.0
        %2484 = vmatprep.subr.mxu0 0.0
        %2485 = vmatpush1.msra.mxu0 0.0
        %2486 = vmatprep.subr.mxu0 0.0
        %2487 = vmatpush1.msra.mxu0 0.0
        %2488 = vmatprep.mubr.f32.mxu0 0.0
        %v2489 = vand.u32 %v2264, 4294901760
        %v2490 = vsub.f32 %v2264, %v2489
        %2491 = vmatmul.mubr.f32.gmra.mrb[0].mxu0 %v2490
        %v2492 = vpop.f32.mrb[0].mxu0
        %v2493 = vadd.f32 %v2419, %v2492
        %v2494 = vpop.f32.mrb[0].mxu0
        %2495 = vdwg.mxu0
        %2496 = vmatprep.subr.mxu0 0.0
        %v2497 = vand.u32 %v2268, 4294901760
        %2498 = vmatpush1.msra.mxu0 %v2497
        %2499 = vmatprep.subr.mxu0 0.0
        %2500 = vmatpush1.msra.mxu0 0.0
        %2501 = vmatprep.subr.mxu0 0.0
        %2502 = vmatpush1.msra.mxu0 0.0
        %2503 = vmatprep.subr.mxu0 0.0
        %2504 = vmatpush1.msra.mxu0 0.0
        %2505 = vmatprep.subr.mxu0 0.0
        %2506 = vmatpush1.msra.mxu0 0.0
        %2507 = vmatprep.subr.mxu0 0.0
        %2508 = vmatpush1.msra.mxu0 0.0
        %2509 = vmatprep.subr.mxu0 0.0
        %2510 = vmatpush1.msra.mxu0 0.0
        %2511 = vmatprep.subr.mxu0 0.0
        %2512 = vmatpush1.msra.mxu0 0.0
        %2513 = vmatprep.subr.mxu0 0.0
        %2514 = vmatpush1.msra.mxu0 0.0
        %2515 = vmatprep.subr.mxu0 0.0
        %2516 = vmatpush1.msra.mxu0 0.0
        %2517 = vmatprep.subr.mxu0 0.0
        %2518 = vmatpush1.msra.mxu0 0.0
        %2519 = vmatprep.subr.mxu0 0.0
        %2520 = vmatpush1.msra.mxu0 0.0
        %2521 = vmatprep.subr.mxu0 0.0
        %2522 = vmatpush1.msra.mxu0 0.0
        %2523 = vmatprep.subr.mxu0 0.0
        %2524 = vmatpush1.msra.mxu0 0.0
        %2525 = vmatprep.subr.mxu0 0.0
        %2526 = vmatpush1.msra.mxu0 0.0
        %2527 = vmatprep.subr.mxu0 0.0
        %2528 = vmatpush1.msra.mxu0 0.0
        %2529 = vmatprep.subr.mxu0 0.0
        %2530 = vmatpush1.msra.mxu0 0.0
        %2531 = vmatprep.subr.mxu0 0.0
        %2532 = vmatpush1.msra.mxu0 0.0
        %2533 = vmatprep.subr.mxu0 0.0
        %2534 = vmatpush1.msra.mxu0 0.0
        %2535 = vmatprep.subr.mxu0 0.0
        %2536 = vmatpush1.msra.mxu0 0.0
        %2537 = vmatprep.subr.mxu0 0.0
        %2538 = vmatpush1.msra.mxu0 0.0
        %2539 = vmatprep.subr.mxu0 0.0
        %2540 = vmatpush1.msra.mxu0 0.0
        %2541 = vmatprep.subr.mxu0 0.0
        %2542 = vmatpush1.msra.mxu0 0.0
        %2543 = vmatprep.subr.mxu0 0.0
        %2544 = vmatpush1.msra.mxu0 0.0
        %2545 = vmatprep.subr.mxu0 0.0
        %2546 = vmatpush1.msra.mxu0 0.0
        %2547 = vmatprep.subr.mxu0 0.0
        %2548 = vmatpush1.msra.mxu0 0.0
        %2549 = vmatprep.subr.mxu0 0.0
        %2550 = vmatpush1.msra.mxu0 0.0
        %2551 = vmatprep.subr.mxu0 0.0
        %2552 = vmatpush1.msra.mxu0 0.0
        %2553 = vmatprep.subr.mxu0 0.0
        %2554 = vmatpush1.msra.mxu0 0.0
        %2555 = vmatprep.subr.mxu0 0.0
        %2556 = vmatpush1.msra.mxu0 0.0
        %2557 = vmatprep.subr.mxu0 0.0
        %2558 = vmatpush1.msra.mxu0 0.0
        %2559 = vmatprep.subr.mxu0 0.0
        %2560 = vmatpush1.msra.mxu0 0.0
        %2561 = vmatprep.mubr.f32.mxu0 0.0
        %v2562 = vand.u32 %v2264, 4294901760
        %v2563 = vsub.f32 %v2264, %v2562
        %v2564 = vand.u32 %v2563, 4294901760
        %2565 = vmatmul.mubr.f32.gmra.mrb[0].mxu0 %v2564
        %v2566 = vpop.f32.mrb[0].mxu0
        %v2567 = vadd.f32 %v2493, %v2566
        %v2568 = vpop.f32.mrb[0].mxu0
        %2569 = vdwg.mxu0
        %2570 = vmatprep.subr.mxu0 0.0
        %v2571 = vand.u32 %v2268, 4294901760
        %v2572 = vsub.f32 %v2268, %v2571
        %v2573 = vand.u32 %v2572, 4294901760
        %2574 = vmatpush1.msra.mxu0 %v2573
        %2575 = vmatprep.subr.mxu0 0.0
        %2576 = vmatpush1.msra.mxu0 0.0
        %2577 = vmatprep.subr.mxu0 0.0
        %2578 = vmatpush1.msra.mxu0 0.0
        %2579 = vmatprep.subr.mxu0 0.0
        %2580 = vmatpush1.msra.mxu0 0.0
        %2581 = vmatprep.subr.mxu0 0.0
        %2582 = vmatpush1.msra.mxu0 0.0
        %2583 = vmatprep.subr.mxu0 0.0
        %2584 = vmatpush1.msra.mxu0 0.0
        %2585 = vmatprep.subr.mxu0 0.0
        %2586 = vmatpush1.msra.mxu0 0.0
        %2587 = vmatprep.subr.mxu0 0.0
        %2588 = vmatpush1.msra.mxu0 0.0
        %2589 = vmatprep.subr.mxu0 0.0
        %2590 = vmatpush1.msra.mxu0 0.0
        %2591 = vmatprep.subr.mxu0 0.0
        %2592 = vmatpush1.msra.mxu0 0.0
        %2593 = vmatprep.subr.mxu0 0.0
        %2594 = vmatpush1.msra.mxu0 0.0
        %2595 = vmatprep.subr.mxu0 0.0
        %2596 = vmatpush1.msra.mxu0 0.0
        %2597 = vmatprep.subr.mxu0 0.0
        %2598 = vmatpush1.msra.mxu0 0.0
        %2599 = vmatprep.subr.mxu0 0.0
        %2600 = vmatpush1.msra.mxu0 0.0
        %2601 = vmatprep.subr.mxu0 0.0
        %2602 = vmatpush1.msra.mxu0 0.0
        %2603 = vmatprep.subr.mxu0 0.0
        %2604 = vmatpush1.msra.mxu0 0.0
        %2605 = vmatprep.subr.mxu0 0.0
        %2606 = vmatpush1.msra.mxu0 0.0
        %2607 = vmatprep.subr.mxu0 0.0
        %2608 = vmatpush1.msra.mxu0 0.0
        %2609 = vmatprep.subr.mxu0 0.0
        %2610 = vmatpush1.msra.mxu0 0.0
        %2611 = vmatprep.subr.mxu0 0.0
        %2612 = vmatpush1.msra.mxu0 0.0
        %2613 = vmatprep.subr.mxu0 0.0
        %2614 = vmatpush1.msra.mxu0 0.0
        %2615 = vmatprep.subr.mxu0 0.0
        %2616 = vmatpush1.msra.mxu0 0.0
        %2617 = vmatprep.subr.mxu0 0.0
        %2618 = vmatpush1.msra.mxu0 0.0
        %2619 = vmatprep.subr.mxu0 0.0
        %2620 = vmatpush1.msra.mxu0 0.0
        %2621 = vmatprep.subr.mxu0 0.0
        %2622 = vmatpush1.msra.mxu0 0.0
        %2623 = vmatprep.subr.mxu0 0.0
        %2624 = vmatpush1.msra.mxu0 0.0
        %2625 = vmatprep.subr.mxu0 0.0
        %2626 = vmatpush1.msra.mxu0 0.0
        %2627 = vmatprep.subr.mxu0 0.0
        %2628 = vmatpush1.msra.mxu0 0.0
        %2629 = vmatprep.subr.mxu0 0.0
        %2630 = vmatpush1.msra.mxu0 0.0
        %2631 = vmatprep.subr.mxu0 0.0
        %2632 = vmatpush1.msra.mxu0 0.0
        %2633 = vmatprep.subr.mxu0 0.0
        %2634 = vmatpush1.msra.mxu0 0.0
        %2635 = vmatprep.subr.mxu0 0.0
        %2636 = vmatpush1.msra.mxu0 0.0
        %2637 = vmatprep.mubr.f32.mxu0 0.0
        %v2638 = vand.u32 %v2264, 4294901760
        %2639 = vmatmul.mubr.f32.gmra.mrb[0].mxu0 %v2638
        %v2640 = vpop.f32.mrb[0].mxu0
        %v2641 = vadd.f32 %v2567, %v2640
        %v2642 = vpop.f32.mrb[0].mxu0
        %2643 = vdwg.mxu0
        %2644 = vmatprep.subr.mxu0 0.0
        %v2645 = vand.u32 %v2268, 4294901760
        %2646 = vmatpush1.msra.mxu0 %v2645
        %2647 = vmatprep.subr.mxu0 0.0
        %2648 = vmatpush1.msra.mxu0 0.0
        %2649 = vmatprep.subr.mxu0 0.0
        %2650 = vmatpush1.msra.mxu0 0.0
        %2651 = vmatprep.subr.mxu0 0.0
        %2652 = vmatpush1.msra.mxu0 0.0
        %2653 = vmatprep.subr.mxu0 0.0
        %2654 = vmatpush1.msra.mxu0 0.0
        %2655 = vmatprep.subr.mxu0 0.0
        %2656 = vmatpush1.msra.mxu0 0.0
        %2657 = vmatprep.subr.mxu0 0.0
        %2658 = vmatpush1.msra.mxu0 0.0
        %2659 = vmatprep.subr.mxu0 0.0
        %2660 = vmatpush1.msra.mxu0 0.0
        %2661 = vmatprep.subr.mxu0 0.0
        %2662 = vmatpush1.msra.mxu0 0.0
        %2663 = vmatprep.subr.mxu0 0.0
        %2664 = vmatpush1.msra.mxu0 0.0
        %2665 = vmatprep.subr.mxu0 0.0
        %2666 = vmatpush1.msra.mxu0 0.0
        %2667 = vmatprep.subr.mxu0 0.0
        %2668 = vmatpush1.msra.mxu0 0.0
        %2669 = vmatprep.subr.mxu0 0.0
        %2670 = vmatpush1.msra.mxu0 0.0
        %2671 = vmatprep.subr.mxu0 0.0
        %2672 = vmatpush1.msra.mxu0 0.0
        %2673 = vmatprep.subr.mxu0 0.0
        %2674 = vmatpush1.msra.mxu0 0.0
        %2675 = vmatprep.subr.mxu0 0.0
        %2676 = vmatpush1.msra.mxu0 0.0
        %2677 = vmatprep.subr.mxu0 0.0
        %2678 = vmatpush1.msra.mxu0 0.0
        %2679 = vmatprep.subr.mxu0 0.0
        %2680 = vmatpush1.msra.mxu0 0.0
        %2681 = vmatprep.subr.mxu0 0.0
        %2682 = vmatpush1.msra.mxu0 0.0
        %2683 = vmatprep.subr.mxu0 0.0
        %2684 = vmatpush1.msra.mxu0 0.0
        %2685 = vmatprep.subr.mxu0 0.0
        %2686 = vmatpush1.msra.mxu0 0.0
        %2687 = vmatprep.subr.mxu0 0.0
        %2688 = vmatpush1.msra.mxu0 0.0
        %2689 = vmatprep.subr.mxu0 0.0
        %2690 = vmatpush1.msra.mxu0 0.0
        %2691 = vmatprep.subr.mxu0 0.0
        %2692 = vmatpush1.msra.mxu0 0.0
        %2693 = vmatprep.subr.mxu0 0.0
        %2694 = vmatpush1.msra.mxu0 0.0
        %2695 = vmatprep.subr.mxu0 0.0
        %2696 = vmatpush1.msra.mxu0 0.0
        %2697 = vmatprep.subr.mxu0 0.0
        %2698 = vmatpush1.msra.mxu0 0.0
        %2699 = vmatprep.subr.mxu0 0.0
        %2700 = vmatpush1.msra.mxu0 0.0
        %2701 = vmatprep.subr.mxu0 0.0
        %2702 = vmatpush1.msra.mxu0 0.0
        %2703 = vmatprep.subr.mxu0 0.0
        %2704 = vmatpush1.msra.mxu0 0.0
        %2705 = vmatprep.subr.mxu0 0.0
        %2706 = vmatpush1.msra.mxu0 0.0
        %2707 = vmatprep.subr.mxu0 0.0
        %2708 = vmatpush1.msra.mxu0 0.0
        %2709 = vmatprep.mubr.f32.mxu0 0.0
        %v2710 = vand.u32 %v2264, 4294901760
        %2711 = vmatmul.mubr.f32.gmra.mrb[0].mxu0 %v2710
        %v2712 = vpop.f32.mrb[0].mxu0
        %v2713 = vadd.f32 %v2641, %v2712
        %v2714 = vpop.f32.mrb[0].mxu0
        %2715 = vdwg.mxu0
        %v2716 = vld [vmem:[%s330] sm:$0xff]
        %v2717 = vld [vmem:[%s330 + $0x8] sm:$0xff]
        %v2719 = vcombine.high %v377, %v377
        %vm2720 = vcmask 31744
        %v2722 = vsel %vm2720, %v2713, 0
        %vm2724 = vcmask 1043456
        %v2725 = vsel %vm2724, %v377, 0
        %v2727 = vsel %vm2724, %v2719, 0
        %v2729 = vand.u32 %v2727, 4294901760
        %2730 = vmatprep.subr.mxu0 %v2729
        %v2731 = vand.u32 %v2725, 4294901760
        %2732 = vmatpush1.msra.mxu0 %v2731
        %2733 = vmatprep.subr.mxu0 0.0
        %2734 = vmatpush1.msra.mxu0 0.0
        %2735 = vmatprep.subr.mxu0 0.0
        %2736 = vmatpush1.msra.mxu0 0.0
        %2737 = vmatprep.subr.mxu0 0.0
        %2738 = vmatpush1.msra.mxu0 0.0
        %2739 = vmatprep.subr.mxu0 0.0
        %2740 = vmatpush1.msra.mxu0 0.0
        %2741 = vmatprep.subr.mxu0 0.0
        %2742 = vmatpush1.msra.mxu0 0.0
        %2743 = vmatprep.subr.mxu0 0.0
        %2744 = vmatpush1.msra.mxu0 0.0
        %2745 = vmatprep.subr.mxu0 0.0
        %2746 = vmatpush1.msra.mxu0 0.0
        %2747 = vmatprep.subr.mxu0 0.0
        %2748 = vmatpush1.msra.mxu0 0.0
        %2749 = vmatprep.subr.mxu0 0.0
        %2750 = vmatpush1.msra.mxu0 0.0
        %2751 = vmatprep.subr.mxu0 0.0
        %2752 = vmatpush1.msra.mxu0 0.0
        %2753 = vmatprep.subr.mxu0 0.0
        %2754 = vmatpush1.msra.mxu0 0.0
        %2755 = vmatprep.subr.mxu0 0.0
        %2756 = vmatpush1.msra.mxu0 0.0
        %2757 = vmatprep.subr.mxu0 0.0
        %2758 = vmatpush1.msra.mxu0 0.0
        %2759 = vmatprep.subr.mxu0 0.0
        %2760 = vmatpush1.msra.mxu0 0.0
        %2761 = vmatprep.subr.mxu0 0.0
        %2762 = vmatpush1.msra.mxu0 0.0
        %2763 = vmatprep.subr.mxu0 0.0
        %2764 = vmatpush1.msra.mxu0 0.0
        %2765 = vmatprep.subr.mxu0 0.0
        %2766 = vmatpush1.msra.mxu0 0.0
        %2767 = vmatprep.subr.mxu0 0.0
        %2768 = vmatpush1.msra.mxu0 0.0
        %2769 = vmatprep.subr.mxu0 0.0
        %2770 = vmatpush1.msra.mxu0 0.0
        %2771 = vmatprep.subr.mxu0 0.0
        %2772 = vmatpush1.msra.mxu0 0.0
        %2773 = vmatprep.subr.mxu0 0.0
        %2774 = vmatpush1.msra.mxu0 0.0
        %2775 = vmatprep.subr.mxu0 0.0
        %2776 = vmatpush1.msra.mxu0 0.0
        %2777 = vmatprep.subr.mxu0 0.0
        %2778 = vmatpush1.msra.mxu0 0.0
        %2779 = vmatprep.subr.mxu0 0.0
        %2780 = vmatpush1.msra.mxu0 0.0
        %2781 = vmatprep.subr.mxu0 0.0
        %2782 = vmatpush1.msra.mxu0 0.0
        %2783 = vmatprep.subr.mxu0 0.0
        %2784 = vmatpush1.msra.mxu0 0.0
        %2785 = vmatprep.subr.mxu0 0.0
        %2786 = vmatpush1.msra.mxu0 0.0
        %2787 = vmatprep.subr.mxu0 0.0
        %2788 = vmatpush1.msra.mxu0 0.0
        %2789 = vmatprep.subr.mxu0 0.0
        %2790 = vmatpush1.msra.mxu0 0.0
        %2791 = vmatprep.subr.mxu0 0.0
        %2792 = vmatpush1.msra.mxu0 0.0
        %2793 = vmatprep.subr.mxu0 0.0
        %2794 = vmatpush1.msra.mxu0 0.0
        %2795 = vmatprep.mubr.f32.mxu0 0.0
        %v2796 = vand.u32 %v2722, 4294901760
        %v2797 = vsub.f32 %v2722, %v2796
        %v2798 = vand.u32 %v2797, 4294901760
        %v2799 = vsub.f32 %v2797, %v2798
        %v2800 = vand.u32 %v2799, 4294901760
        %2801 = vmatmul.mubr.f32.gmra.mrb[0].mxu0 %v2800
        %v2802 = vpop.f32.mrb[0].mxu0
        %v2803 = vadd.f32 0.0, %v2802
        %v2804 = vpop.f32.mrb[0].mxu0
        %v2805 = vadd.f32 0.0, %v2804
        %2806 = vdwg.mxu0
        %v2807 = vand.u32 %v2727, 4294901760
        %v2808 = vsub.f32 %v2727, %v2807
        %v2809 = vand.u32 %v2808, 4294901760
        %v2810 = vsub.f32 %v2808, %v2809
        %v2811 = vand.u32 %v2810, 4294901760
        %2812 = vmatprep.subr.mxu0 %v2811
        %v2813 = vand.u32 %v2725, 4294901760
        %v2814 = vsub.f32 %v2725, %v2813
        %v2815 = vand.u32 %v2814, 4294901760
        %v2816 = vsub.f32 %v2814, %v2815
        %v2817 = vand.u32 %v2816, 4294901760
        %2818 = vmatpush1.msra.mxu0 %v2817
        %2819 = vmatprep.subr.mxu0 0.0
        %2820 = vmatpush1.msra.mxu0 0.0
        %2821 = vmatprep.subr.mxu0 0.0
        %2822 = vmatpush1.msra.mxu0 0.0
        %2823 = vmatprep.subr.mxu0 0.0
        %2824 = vmatpush1.msra.mxu0 0.0
        %2825 = vmatprep.subr.mxu0 0.0
        %2826 = vmatpush1.msra.mxu0 0.0
        %2827 = vmatprep.subr.mxu0 0.0
        %2828 = vmatpush1.msra.mxu0 0.0
        %2829 = vmatprep.subr.mxu0 0.0
        %2830 = vmatpush1.msra.mxu0 0.0
        %2831 = vmatprep.subr.mxu0 0.0
        %2832 = vmatpush1.msra.mxu0 0.0
        %2833 = vmatprep.subr.mxu0 0.0
        %2834 = vmatpush1.msra.mxu0 0.0
        %2835 = vmatprep.subr.mxu0 0.0
        %2836 = vmatpush1.msra.mxu0 0.0
        %2837 = vmatprep.subr.mxu0 0.0
        %2838 = vmatpush1.msra.mxu0 0.0
        %2839 = vmatprep.subr.mxu0 0.0
        %2840 = vmatpush1.msra.mxu0 0.0
        %2841 = vmatprep.subr.mxu0 0.0
        %2842 = vmatpush1.msra.mxu0 0.0
        %2843 = vmatprep.subr.mxu0 0.0
        %2844 = vmatpush1.msra.mxu0 0.0
        %2845 = vmatprep.subr.mxu0 0.0
        %2846 = vmatpush1.msra.mxu0 0.0
        %2847 = vmatprep.subr.mxu0 0.0
        %2848 = vmatpush1.msra.mxu0 0.0
        %2849 = vmatprep.subr.mxu0 0.0
        %2850 = vmatpush1.msra.mxu0 0.0
        %2851 = vmatprep.subr.mxu0 0.0
        %2852 = vmatpush1.msra.mxu0 0.0
        %2853 = vmatprep.subr.mxu0 0.0
        %2854 = vmatpush1.msra.mxu0 0.0
        %2855 = vmatprep.subr.mxu0 0.0
        %2856 = vmatpush1.msra.mxu0 0.0
        %2857 = vmatprep.subr.mxu0 0.0
        %2858 = vmatpush1.msra.mxu0 0.0
        %2859 = vmatprep.subr.mxu0 0.0
        %2860 = vmatpush1.msra.mxu0 0.0
        %2861 = vmatprep.subr.mxu0 0.0
        %2862 = vmatpush1.msra.mxu0 0.0
        %2863 = vmatprep.subr.mxu0 0.0
        %2864 = vmatpush1.msra.mxu0 0.0
        %2865 = vmatprep.subr.mxu0 0.0
        %2866 = vmatpush1.msra.mxu0 0.0
        %2867 = vmatprep.subr.mxu0 0.0
        %2868 = vmatpush1.msra.mxu0 0.0
        %2869 = vmatprep.subr.mxu0 0.0
        %2870 = vmatpush1.msra.mxu0 0.0
        %2871 = vmatprep.subr.mxu0 0.0
        %2872 = vmatpush1.msra.mxu0 0.0
        %2873 = vmatprep.subr.mxu0 0.0
        %2874 = vmatpush1.msra.mxu0 0.0
        %2875 = vmatprep.subr.mxu0 0.0
        %2876 = vmatpush1.msra.mxu0 0.0
        %2877 = vmatprep.subr.mxu0 0.0
        %2878 = vmatpush1.msra.mxu0 0.0
        %2879 = vmatprep.subr.mxu0 0.0
        %2880 = vmatpush1.msra.mxu0 0.0
        %2881 = vmatprep.mubr.f32.mxu0 0.0
        %v2882 = vand.u32 %v2722, 4294901760
        %2883 = vmatmul.mubr.f32.gmra.mrb[0].mxu0 %v2882
        %v2884 = vpop.f32.mrb[0].mxu0
        %v2885 = vadd.f32 %v2803, %v2884
        %v2886 = vpop.f32.mrb[0].mxu0
        %v2887 = vadd.f32 %v2805, %v2886
        %2888 = vdwg.mxu0
        %v2889 = vand.u32 %v2727, 4294901760
        %v2890 = vsub.f32 %v2727, %v2889
        %2891 = vmatprep.subr.mxu0 %v2890
        %v2892 = vand.u32 %v2725, 4294901760
        %v2893 = vsub.f32 %v2725, %v2892
        %2894 = vmatpush1.msra.mxu0 %v2893
        %2895 = vmatprep.subr.mxu0 0.0
        %2896 = vmatpush1.msra.mxu0 0.0
        %2897 = vmatprep.subr.mxu0 0.0
        %2898 = vmatpush1.msra.mxu0 0.0
        %2899 = vmatprep.subr.mxu0 0.0
        %2900 = vmatpush1.msra.mxu0 0.0
        %2901 = vmatprep.subr.mxu0 0.0
        %2902 = vmatpush1.msra.mxu0 0.0
        %2903 = vmatprep.subr.mxu0 0.0
        %2904 = vmatpush1.msra.mxu0 0.0
        %2905 = vmatprep.subr.mxu0 0.0
        %2906 = vmatpush1.msra.mxu0 0.0
        %2907 = vmatprep.subr.mxu0 0.0
        %2908 = vmatpush1.msra.mxu0 0.0
        %2909 = vmatprep.subr.mxu0 0.0
        %2910 = vmatpush1.msra.mxu0 0.0
        %2911 = vmatprep.subr.mxu0 0.0
        %2912 = vmatpush1.msra.mxu0 0.0
        %2913 = vmatprep.subr.mxu0 0.0
        %2914 = vmatpush1.msra.mxu0 0.0
        %2915 = vmatprep.subr.mxu0 0.0
        %2916 = vmatpush1.msra.mxu0 0.0
        %2917 = vmatprep.subr.mxu0 0.0
        %2918 = vmatpush1.msra.mxu0 0.0
        %2919 = vmatprep.subr.mxu0 0.0
        %2920 = vmatpush1.msra.mxu0 0.0
        %2921 = vmatprep.subr.mxu0 0.0
        %2922 = vmatpush1.msra.mxu0 0.0
        %2923 = vmatprep.subr.mxu0 0.0
        %2924 = vmatpush1.msra.mxu0 0.0
        %2925 = vmatprep.subr.mxu0 0.0
        %2926 = vmatpush1.msra.mxu0 0.0
        %2927 = vmatprep.subr.mxu0 0.0
        %2928 = vmatpush1.msra.mxu0 0.0
        %2929 = vmatprep.subr.mxu0 0.0
        %2930 = vmatpush1.msra.mxu0 0.0
        %2931 = vmatprep.subr.mxu0 0.0
        %2932 = vmatpush1.msra.mxu0 0.0
        %2933 = vmatprep.subr.mxu0 0.0
        %2934 = vmatpush1.msra.mxu0 0.0
        %2935 = vmatprep.subr.mxu0 0.0
        %2936 = vmatpush1.msra.mxu0 0.0
        %2937 = vmatprep.subr.mxu0 0.0
        %2938 = vmatpush1.msra.mxu0 0.0
        %2939 = vmatprep.subr.mxu0 0.0
        %2940 = vmatpush1.msra.mxu0 0.0
        %2941 = vmatprep.subr.mxu0 0.0
        %2942 = vmatpush1.msra.mxu0 0.0
        %2943 = vmatprep.subr.mxu0 0.0
        %2944 = vmatpush1.msra.mxu0 0.0
        %2945 = vmatprep.subr.mxu0 0.0
        %2946 = vmatpush1.msra.mxu0 0.0
        %2947 = vmatprep.subr.mxu0 0.0
        %2948 = vmatpush1.msra.mxu0 0.0
        %2949 = vmatprep.subr.mxu0 0.0
        %2950 = vmatpush1.msra.mxu0 0.0
        %2951 = vmatprep.subr.mxu0 0.0
        %2952 = vmatpush1.msra.mxu0 0.0
        %2953 = vmatprep.subr.mxu0 0.0
        %2954 = vmatpush1.msra.mxu0 0.0
        %2955 = vmatprep.subr.mxu0 0.0
        %2956 = vmatpush1.msra.mxu0 0.0
        %2957 = vmatprep.mubr.f32.mxu0 0.0
        %v2958 = vand.u32 %v2722, 4294901760
        %v2959 = vsub.f32 %v2722, %v2958
        %2960 = vmatmul.mubr.f32.gmra.mrb[0].mxu0 %v2959
        %v2961 = vpop.f32.mrb[0].mxu0
        %v2962 = vadd.f32 %v2885, %v2961
        %v2963 = vpop.f32.mrb[0].mxu0
        %v2964 = vadd.f32 %v2887, %v2963
        %2965 = vdwg.mxu0
        %v2966 = vand.u32 %v2727, 4294901760
        %2967 = vmatprep.subr.mxu0 %v2966
        %v2968 = vand.u32 %v2725, 4294901760
        %2969 = vmatpush1.msra.mxu0 %v2968
        %2970 = vmatprep.subr.mxu0 0.0
        %2971 = vmatpush1.msra.mxu0 0.0
        %2972 = vmatprep.subr.mxu0 0.0
        %2973 = vmatpush1.msra.mxu0 0.0
        %2974 = vmatprep.subr.mxu0 0.0
        %2975 = vmatpush1.msra.mxu0 0.0
        %2976 = vmatprep.subr.mxu0 0.0
        %2977 = vmatpush1.msra.mxu0 0.0
        %2978 = vmatprep.subr.mxu0 0.0
        %2979 = vmatpush1.msra.mxu0 0.0
        %2980 = vmatprep.subr.mxu0 0.0
        %2981 = vmatpush1.msra.mxu0 0.0
        %2982 = vmatprep.subr.mxu0 0.0
        %2983 = vmatpush1.msra.mxu0 0.0
        %2984 = vmatprep.subr.mxu0 0.0
        %2985 = vmatpush1.msra.mxu0 0.0
        %2986 = vmatprep.subr.mxu0 0.0
        %2987 = vmatpush1.msra.mxu0 0.0
        %2988 = vmatprep.subr.mxu0 0.0
        %2989 = vmatpush1.msra.mxu0 0.0
        %2990 = vmatprep.subr.mxu0 0.0
        %2991 = vmatpush1.msra.mxu0 0.0
        %2992 = vmatprep.subr.mxu0 0.0
        %2993 = vmatpush1.msra.mxu0 0.0
        %2994 = vmatprep.subr.mxu0 0.0
        %2995 = vmatpush1.msra.mxu0 0.0
        %2996 = vmatprep.subr.mxu0 0.0
        %2997 = vmatpush1.msra.mxu0 0.0
        %2998 = vmatprep.subr.mxu0 0.0
        %2999 = vmatpush1.msra.mxu0 0.0
        %3000 = vmatprep.subr.mxu0 0.0
        %3001 = vmatpush1.msra.mxu0 0.0
        %3002 = vmatprep.subr.mxu0 0.0
        %3003 = vmatpush1.msra.mxu0 0.0
        %3004 = vmatprep.subr.mxu0 0.0
        %3005 = vmatpush1.msra.mxu0 0.0
        %3006 = vmatprep.subr.mxu0 0.0
        %3007 = vmatpush1.msra.mxu0 0.0
        %3008 = vmatprep.subr.mxu0 0.0
        %3009 = vmatpush1.msra.mxu0 0.0
        %3010 = vmatprep.subr.mxu0 0.0
        %3011 = vmatpush1.msra.mxu0 0.0
        %3012 = vmatprep.subr.mxu0 0.0
        %3013 = vmatpush1.msra.mxu0 0.0
        %3014 = vmatprep.subr.mxu0 0.0
        %3015 = vmatpush1.msra.mxu0 0.0
        %3016 = vmatprep.subr.mxu0 0.0
        %3017 = vmatpush1.msra.mxu0 0.0
        %3018 = vmatprep.subr.mxu0 0.0
        %3019 = vmatpush1.msra.mxu0 0.0
        %3020 = vmatprep.subr.mxu0 0.0
        %3021 = vmatpush1.msra.mxu0 0.0
        %3022 = vmatprep.subr.mxu0 0.0
        %3023 = vmatpush1.msra.mxu0 0.0
        %3024 = vmatprep.subr.mxu0 0.0
        %3025 = vmatpush1.msra.mxu0 0.0
        %3026 = vmatprep.subr.mxu0 0.0
        %3027 = vmatpush1.msra.mxu0 0.0
        %3028 = vmatprep.subr.mxu0 0.0
        %3029 = vmatpush1.msra.mxu0 0.0
        %3030 = vmatprep.subr.mxu0 0.0
        %3031 = vmatpush1.msra.mxu0 0.0
        %3032 = vmatprep.mubr.f32.mxu0 0.0
        %v3033 = vand.u32 %v2722, 4294901760
        %v3034 = vsub.f32 %v2722, %v3033
        %v3035 = vand.u32 %v3034, 4294901760
        %3036 = vmatmul.mubr.f32.gmra.mrb[0].mxu0 %v3035
        %v3037 = vpop.f32.mrb[0].mxu0
        %v3038 = vadd.f32 %v2962, %v3037
        %v3039 = vpop.f32.mrb[0].mxu0
        %v3040 = vadd.f32 %v2964, %v3039
        %3041 = vdwg.mxu0
        %v3042 = vand.u32 %v2727, 4294901760
        %v3043 = vsub.f32 %v2727, %v3042
        %v3044 = vand.u32 %v3043, 4294901760
        %3045 = vmatprep.subr.mxu0 %v3044
        %v3046 = vand.u32 %v2725, 4294901760
        %v3047 = vsub.f32 %v2725, %v3046
        %v3048 = vand.u32 %v3047, 4294901760
        %3049 = vmatpush1.msra.mxu0 %v3048
        %3050 = vmatprep.subr.mxu0 0.0
        %3051 = vmatpush1.msra.mxu0 0.0
        %3052 = vmatprep.subr.mxu0 0.0
        %3053 = vmatpush1.msra.mxu0 0.0
        %3054 = vmatprep.subr.mxu0 0.0
        %3055 = vmatpush1.msra.mxu0 0.0
        %3056 = vmatprep.subr.mxu0 0.0
        %3057 = vmatpush1.msra.mxu0 0.0
        %3058 = vmatprep.subr.mxu0 0.0
        %3059 = vmatpush1.msra.mxu0 0.0
        %3060 = vmatprep.subr.mxu0 0.0
        %3061 = vmatpush1.msra.mxu0 0.0
        %3062 = vmatprep.subr.mxu0 0.0
        %3063 = vmatpush1.msra.mxu0 0.0
        %3064 = vmatprep.subr.mxu0 0.0
        %3065 = vmatpush1.msra.mxu0 0.0
        %3066 = vmatprep.subr.mxu0 0.0
        %3067 = vmatpush1.msra.mxu0 0.0
        %3068 = vmatprep.subr.mxu0 0.0
        %3069 = vmatpush1.msra.mxu0 0.0
        %3070 = vmatprep.subr.mxu0 0.0
        %3071 = vmatpush1.msra.mxu0 0.0
        %3072 = vmatprep.subr.mxu0 0.0
        %3073 = vmatpush1.msra.mxu0 0.0
        %3074 = vmatprep.subr.mxu0 0.0
        %3075 = vmatpush1.msra.mxu0 0.0
        %3076 = vmatprep.subr.mxu0 0.0
        %3077 = vmatpush1.msra.mxu0 0.0
        %3078 = vmatprep.subr.mxu0 0.0
        %3079 = vmatpush1.msra.mxu0 0.0
        %3080 = vmatprep.subr.mxu0 0.0
        %3081 = vmatpush1.msra.mxu0 0.0
        %3082 = vmatprep.subr.mxu0 0.0
        %3083 = vmatpush1.msra.mxu0 0.0
        %3084 = vmatprep.subr.mxu0 0.0
        %3085 = vmatpush1.msra.mxu0 0.0
        %3086 = vmatprep.subr.mxu0 0.0
        %3087 = vmatpush1.msra.mxu0 0.0
        %3088 = vmatprep.subr.mxu0 0.0
        %3089 = vmatpush1.msra.mxu0 0.0
        %3090 = vmatprep.subr.mxu0 0.0
        %3091 = vmatpush1.msra.mxu0 0.0
        %3092 = vmatprep.subr.mxu0 0.0
        %3093 = vmatpush1.msra.mxu0 0.0
        %3094 = vmatprep.subr.mxu0 0.0
        %3095 = vmatpush1.msra.mxu0 0.0
        %3096 = vmatprep.subr.mxu0 0.0
        %3097 = vmatpush1.msra.mxu0 0.0
        %3098 = vmatprep.subr.mxu0 0.0
        %3099 = vmatpush1.msra.mxu0 0.0
        %3100 = vmatprep.subr.mxu0 0.0
        %3101 = vmatpush1.msra.mxu0 0.0
        %3102 = vmatprep.subr.mxu0 0.0
        %3103 = vmatpush1.msra.mxu0 0.0
        %3104 = vmatprep.subr.mxu0 0.0
        %3105 = vmatpush1.msra.mxu0 0.0
        %3106 = vmatprep.subr.mxu0 0.0
        %3107 = vmatpush1.msra.mxu0 0.0
        %3108 = vmatprep.subr.mxu0 0.0
        %3109 = vmatpush1.msra.mxu0 0.0
        %3110 = vmatprep.subr.mxu0 0.0
        %3111 = vmatpush1.msra.mxu0 0.0
        %3112 = vmatprep.mubr.f32.mxu0 0.0
        %v3113 = vand.u32 %v2722, 4294901760
        %3114 = vmatmul.mubr.f32.gmra.mrb[0].mxu0 %v3113
        %v3115 = vpop.f32.mrb[0].mxu0
        %v3116 = vadd.f32 %v3038, %v3115
        %v3117 = vpop.f32.mrb[0].mxu0
        %v3118 = vadd.f32 %v3040, %v3117
        %3119 = vdwg.mxu0
        %v3120 = vand.u32 %v2727, 4294901760
        %3121 = vmatprep.subr.mxu0 %v3120
        %v3122 = vand.u32 %v2725, 4294901760
        %3123 = vmatpush1.msra.mxu0 %v3122
        %3124 = vmatprep.subr.mxu0 0.0
        %3125 = vmatpush1.msra.mxu0 0.0
        %3126 = vmatprep.subr.mxu0 0.0
        %3127 = vmatpush1.msra.mxu0 0.0
        %3128 = vmatprep.subr.mxu0 0.0
        %3129 = vmatpush1.msra.mxu0 0.0
        %3130 = vmatprep.subr.mxu0 0.0
        %3131 = vmatpush1.msra.mxu0 0.0
        %3132 = vmatprep.subr.mxu0 0.0
        %3133 = vmatpush1.msra.mxu0 0.0
        %3134 = vmatprep.subr.mxu0 0.0
        %3135 = vmatpush1.msra.mxu0 0.0
        %3136 = vmatprep.subr.mxu0 0.0
        %3137 = vmatpush1.msra.mxu0 0.0
        %3138 = vmatprep.subr.mxu0 0.0
        %3139 = vmatpush1.msra.mxu0 0.0
        %3140 = vmatprep.subr.mxu0 0.0
        %3141 = vmatpush1.msra.mxu0 0.0
        %3142 = vmatprep.subr.mxu0 0.0
        %3143 = vmatpush1.msra.mxu0 0.0
        %3144 = vmatprep.subr.mxu0 0.0
        %3145 = vmatpush1.msra.mxu0 0.0
        %3146 = vmatprep.subr.mxu0 0.0
        %3147 = vmatpush1.msra.mxu0 0.0
        %3148 = vmatprep.subr.mxu0 0.0
        %3149 = vmatpush1.msra.mxu0 0.0
        %3150 = vmatprep.subr.mxu0 0.0
        %3151 = vmatpush1.msra.mxu0 0.0
        %3152 = vmatprep.subr.mxu0 0.0
        %3153 = vmatpush1.msra.mxu0 0.0
        %3154 = vmatprep.subr.mxu0 0.0
        %3155 = vmatpush1.msra.mxu0 0.0
        %3156 = vmatprep.subr.mxu0 0.0
        %3157 = vmatpush1.msra.mxu0 0.0
        %3158 = vmatprep.subr.mxu0 0.0
        %3159 = vmatpush1.msra.mxu0 0.0
        %3160 = vmatprep.subr.mxu0 0.0
        %3161 = vmatpush1.msra.mxu0 0.0
        %3162 = vmatprep.subr.mxu0 0.0
        %3163 = vmatpush1.msra.mxu0 0.0
        %3164 = vmatprep.subr.mxu0 0.0
        %3165 = vmatpush1.msra.mxu0 0.0
        %3166 = vmatprep.subr.mxu0 0.0
        %3167 = vmatpush1.msra.mxu0 0.0
        %3168 = vmatprep.subr.mxu0 0.0
        %3169 = vmatpush1.msra.mxu0 0.0
        %3170 = vmatprep.subr.mxu0 0.0
        %3171 = vmatpush1.msra.mxu0 0.0
        %3172 = vmatprep.subr.mxu0 0.0
        %3173 = vmatpush1.msra.mxu0 0.0
        %3174 = vmatprep.subr.mxu0 0.0
        %3175 = vmatpush1.msra.mxu0 0.0
        %3176 = vmatprep.subr.mxu0 0.0
        %3177 = vmatpush1.msra.mxu0 0.0
        %3178 = vmatprep.subr.mxu0 0.0
        %3179 = vmatpush1.msra.mxu0 0.0
        %3180 = vmatprep.subr.mxu0 0.0
        %3181 = vmatpush1.msra.mxu0 0.0
        %3182 = vmatprep.subr.mxu0 0.0
        %3183 = vmatpush1.msra.mxu0 0.0
        %3184 = vmatprep.subr.mxu0 0.0
        %3185 = vmatpush1.msra.mxu0 0.0
        %3186 = vmatprep.mubr.f32.mxu0 0.0
        %v3187 = vand.u32 %v2722, 4294901760
        %3188 = vmatmul.mubr.f32.gmra.mrb[0].mxu0 %v3187
        %v3189 = vpop.f32.mrb[0].mxu0
        %v3190 = vadd.f32 %v3116, %v3189
        %v3191 = vpop.f32.mrb[0].mxu0
        %v3192 = vadd.f32 %v3118, %v3191
        %3193 = vdwg.mxu0
        %v3194 = vadd.f32 %v2716, %v3190
        %v3195 = vadd.f32 %v2717, %v3192
        %3196 = vst [vmem:[%s330] sm:$0xff] %v3194
        %3197 = vst [vmem:[%s330 + $0x8] sm:$0xff] %v3195
        %s3198 = scalar_lea.vmem %s336, 16
        %v3199 = vld [vmem:[%s3198] sm:$0xff]
        %v3200 = vld [vmem:[%s3198 + $0x8] sm:$0xff]
        %v3201 = vand.u32 %v3200, 4294901760
        %3202 = vmatprep.subr.mxu0 %v3201
        %v3203 = vand.u32 %v3199, 4294901760
        %3204 = vmatpush1.msra.mxu0 %v3203
        %3205 = vmatprep.subr.mxu0 0.0
        %3206 = vmatpush1.msra.mxu0 0.0
        %3207 = vmatprep.subr.mxu0 0.0
        %3208 = vmatpush1.msra.mxu0 0.0
        %3209 = vmatprep.subr.mxu0 0.0
        %3210 = vmatpush1.msra.mxu0 0.0
        %3211 = vmatprep.subr.mxu0 0.0
        %3212 = vmatpush1.msra.mxu0 0.0
        %3213 = vmatprep.subr.mxu0 0.0
        %3214 = vmatpush1.msra.mxu0 0.0
        %3215 = vmatprep.subr.mxu0 0.0
        %3216 = vmatpush1.msra.mxu0 0.0
        %3217 = vmatprep.subr.mxu0 0.0
        %3218 = vmatpush1.msra.mxu0 0.0
        %3219 = vmatprep.subr.mxu0 0.0
        %3220 = vmatpush1.msra.mxu0 0.0
        %3221 = vmatprep.subr.mxu0 0.0
        %3222 = vmatpush1.msra.mxu0 0.0
        %3223 = vmatprep.subr.mxu0 0.0
        %3224 = vmatpush1.msra.mxu0 0.0
        %3225 = vmatprep.subr.mxu0 0.0
        %3226 = vmatpush1.msra.mxu0 0.0
        %3227 = vmatprep.subr.mxu0 0.0
        %3228 = vmatpush1.msra.mxu0 0.0
        %3229 = vmatprep.subr.mxu0 0.0
        %3230 = vmatpush1.msra.mxu0 0.0
        %3231 = vmatprep.subr.mxu0 0.0
        %3232 = vmatpush1.msra.mxu0 0.0
        %3233 = vmatprep.subr.mxu0 0.0
        %3234 = vmatpush1.msra.mxu0 0.0
        %3235 = vmatprep.subr.mxu0 0.0
        %3236 = vmatpush1.msra.mxu0 0.0
        %3237 = vmatprep.subr.mxu0 0.0
        %3238 = vmatpush1.msra.mxu0 0.0
        %3239 = vmatprep.subr.mxu0 0.0
        %3240 = vmatpush1.msra.mxu0 0.0
        %3241 = vmatprep.subr.mxu0 0.0
        %3242 = vmatpush1.msra.mxu0 0.0
        %3243 = vmatprep.subr.mxu0 0.0
        %3244 = vmatpush1.msra.mxu0 0.0
        %3245 = vmatprep.subr.mxu0 0.0
        %3246 = vmatpush1.msra.mxu0 0.0
        %3247 = vmatprep.subr.mxu0 0.0
        %3248 = vmatpush1.msra.mxu0 0.0
        %3249 = vmatprep.subr.mxu0 0.0
        %3250 = vmatpush1.msra.mxu0 0.0
        %3251 = vmatprep.subr.mxu0 0.0
        %3252 = vmatpush1.msra.mxu0 0.0
        %3253 = vmatprep.subr.mxu0 0.0
        %3254 = vmatpush1.msra.mxu0 0.0
        %3255 = vmatprep.subr.mxu0 0.0
        %3256 = vmatpush1.msra.mxu0 0.0
        %3257 = vmatprep.subr.mxu0 0.0
        %3258 = vmatpush1.msra.mxu0 0.0
        %3259 = vmatprep.subr.mxu0 0.0
        %3260 = vmatpush1.msra.mxu0 0.0
        %3261 = vmatprep.subr.mxu0 0.0
        %3262 = vmatpush1.msra.mxu0 0.0
        %3263 = vmatprep.subr.mxu0 0.0
        %3264 = vmatpush1.msra.mxu0 0.0
        %3265 = vmatprep.subr.mxu0 0.0
        %3266 = vmatpush1.msra.mxu0 0.0
        %3267 = vmatprep.mubr.f32.mxu0 0.0
        %v3268 = vand.u32 %v391, 4294901760
        %v3269 = vsub.f32 %v391, %v3268
        %v3270 = vand.u32 %v3269, 4294901760
        %v3271 = vsub.f32 %v3269, %v3270
        %v3272 = vand.u32 %v3271, 4294901760
        %3273 = vmatmul.mubr.f32.gmra.mrb[0].mxu0 %v3272
        %v3274 = vpop.f32.mrb[0].mxu0
        %v3275 = vadd.f32 %v388, %v3274
        %v3276 = vpop.f32.mrb[0].mxu0
        %v3277 = vadd.f32 %v388, %v3276
        %3278 = vdwg.mxu0
        %v3279 = vand.u32 %v3200, 4294901760
        %v3280 = vsub.f32 %v3200, %v3279
        %v3281 = vand.u32 %v3280, 4294901760
        %v3282 = vsub.f32 %v3280, %v3281
        %v3283 = vand.u32 %v3282, 4294901760
        %3284 = vmatprep.subr.mxu0 %v3283
        %v3285 = vand.u32 %v3199, 4294901760
        %v3286 = vsub.f32 %v3199, %v3285
        %v3287 = vand.u32 %v3286, 4294901760
        %v3288 = vsub.f32 %v3286, %v3287
        %v3289 = vand.u32 %v3288, 4294901760
        %3290 = vmatpush1.msra.mxu0 %v3289
        %3291 = vmatprep.subr.mxu0 0.0
        %3292 = vmatpush1.msra.mxu0 0.0
        %3293 = vmatprep.subr.mxu0 0.0
        %3294 = vmatpush1.msra.mxu0 0.0
        %3295 = vmatprep.subr.mxu0 0.0
        %3296 = vmatpush1.msra.mxu0 0.0
        %3297 = vmatprep.subr.mxu0 0.0
        %3298 = vmatpush1.msra.mxu0 0.0
        %3299 = vmatprep.subr.mxu0 0.0
        %3300 = vmatpush1.msra.mxu0 0.0
        %3301 = vmatprep.subr.mxu0 0.0
        %3302 = vmatpush1.msra.mxu0 0.0
        %3303 = vmatprep.subr.mxu0 0.0
        %3304 = vmatpush1.msra.mxu0 0.0
        %3305 = vmatprep.subr.mxu0 0.0
        %3306 = vmatpush1.msra.mxu0 0.0
        %3307 = vmatprep.subr.mxu0 0.0
        %3308 = vmatpush1.msra.mxu0 0.0
        %3309 = vmatprep.subr.mxu0 0.0
        %3310 = vmatpush1.msra.mxu0 0.0
        %3311 = vmatprep.subr.mxu0 0.0
        %3312 = vmatpush1.msra.mxu0 0.0
        %3313 = vmatprep.subr.mxu0 0.0
        %3314 = vmatpush1.msra.mxu0 0.0
        %3315 = vmatprep.subr.mxu0 0.0
        %3316 = vmatpush1.msra.mxu0 0.0
        %3317 = vmatprep.subr.mxu0 0.0
        %3318 = vmatpush1.msra.mxu0 0.0
        %3319 = vmatprep.subr.mxu0 0.0
        %3320 = vmatpush1.msra.mxu0 0.0
        %3321 = vmatprep.subr.mxu0 0.0
        %3322 = vmatpush1.msra.mxu0 0.0
        %3323 = vmatprep.subr.mxu0 0.0
        %3324 = vmatpush1.msra.mxu0 0.0
        %3325 = vmatprep.subr.mxu0 0.0
        %3326 = vmatpush1.msra.mxu0 0.0
        %3327 = vmatprep.subr.mxu0 0.0
        %3328 = vmatpush1.msra.mxu0 0.0
        %3329 = vmatprep.subr.mxu0 0.0
        %3330 = vmatpush1.msra.mxu0 0.0
        %3331 = vmatprep.subr.mxu0 0.0
        %3332 = vmatpush1.msra.mxu0 0.0
        %3333 = vmatprep.subr.mxu0 0.0
        %3334 = vmatpush1.msra.mxu0 0.0
        %3335 = vmatprep.subr.mxu0 0.0
        %3336 = vmatpush1.msra.mxu0 0.0
        %3337 = vmatprep.subr.mxu0 0.0
        %3338 = vmatpush1.msra.mxu0 0.0
        %3339 = vmatprep.subr.mxu0 0.0
        %3340 = vmatpush1.msra.mxu0 0.0
        %3341 = vmatprep.subr.mxu0 0.0
        %3342 = vmatpush1.msra.mxu0 0.0
        %3343 = vmatprep.subr.mxu0 0.0
        %3344 = vmatpush1.msra.mxu0 0.0
        %3345 = vmatprep.subr.mxu0 0.0
        %3346 = vmatpush1.msra.mxu0 0.0
        %3347 = vmatprep.subr.mxu0 0.0
        %3348 = vmatpush1.msra.mxu0 0.0
        %3349 = vmatprep.subr.mxu0 0.0
        %3350 = vmatpush1.msra.mxu0 0.0
        %3351 = vmatprep.subr.mxu0 0.0
        %3352 = vmatpush1.msra.mxu0 0.0
        %3353 = vmatprep.mubr.f32.mxu0 0.0
        %v3354 = vand.u32 %v391, 4294901760
        %3355 = vmatmul.mubr.f32.gmra.mrb[0].mxu0 %v3354
        %v3356 = vpop.f32.mrb[0].mxu0
        %v3357 = vadd.f32 %v3275, %v3356
        %v3358 = vpop.f32.mrb[0].mxu0
        %v3359 = vadd.f32 %v3277, %v3358
        %3360 = vdwg.mxu0
        %v3361 = vand.u32 %v3200, 4294901760
        %v3362 = vsub.f32 %v3200, %v3361
        %3363 = vmatprep.subr.mxu0 %v3362
        %v3364 = vand.u32 %v3199, 4294901760
        %v3365 = vsub.f32 %v3199, %v3364
        %3366 = vmatpush1.msra.mxu0 %v3365
        %3367 = vmatprep.subr.mxu0 0.0
        %3368 = vmatpush1.msra.mxu0 0.0
        %3369 = vmatprep.subr.mxu0 0.0
        %3370 = vmatpush1.msra.mxu0 0.0
        %3371 = vmatprep.subr.mxu0 0.0
        %3372 = vmatpush1.msra.mxu0 0.0
        %3373 = vmatprep.subr.mxu0 0.0
        %3374 = vmatpush1.msra.mxu0 0.0
        %3375 = vmatprep.subr.mxu0 0.0
        %3376 = vmatpush1.msra.mxu0 0.0
        %3377 = vmatprep.subr.mxu0 0.0
        %3378 = vmatpush1.msra.mxu0 0.0
        %3379 = vmatprep.subr.mxu0 0.0
        %3380 = vmatpush1.msra.mxu0 0.0
        %3381 = vmatprep.subr.mxu0 0.0
        %3382 = vmatpush1.msra.mxu0 0.0
        %3383 = vmatprep.subr.mxu0 0.0
        %3384 = vmatpush1.msra.mxu0 0.0
        %3385 = vmatprep.subr.mxu0 0.0
        %3386 = vmatpush1.msra.mxu0 0.0
        %3387 = vmatprep.subr.mxu0 0.0
        %3388 = vmatpush1.msra.mxu0 0.0
        %3389 = vmatprep.subr.mxu0 0.0
        %3390 = vmatpush1.msra.mxu0 0.0
        %3391 = vmatprep.subr.mxu0 0.0
        %3392 = vmatpush1.msra.mxu0 0.0
        %3393 = vmatprep.subr.mxu0 0.0
        %3394 = vmatpush1.msra.mxu0 0.0
        %3395 = vmatprep.subr.mxu0 0.0
        %3396 = vmatpush1.msra.mxu0 0.0
        %3397 = vmatprep.subr.mxu0 0.0
        %3398 = vmatpush1.msra.mxu0 0.0
        %3399 = vmatprep.subr.mxu0 0.0
        %3400 = vmatpush1.msra.mxu0 0.0
        %3401 = vmatprep.subr.mxu0 0.0
        %3402 = vmatpush1.msra.mxu0 0.0
        %3403 = vmatprep.subr.mxu0 0.0
        %3404 = vmatpush1.msra.mxu0 0.0
        %3405 = vmatprep.subr.mxu0 0.0
        %3406 = vmatpush1.msra.mxu0 0.0
        %3407 = vmatprep.subr.mxu0 0.0
        %3408 = vmatpush1.msra.mxu0 0.0
        %3409 = vmatprep.subr.mxu0 0.0
        %3410 = vmatpush1.msra.mxu0 0.0
        %3411 = vmatprep.subr.mxu0 0.0
        %3412 = vmatpush1.msra.mxu0 0.0
        %3413 = vmatprep.subr.mxu0 0.0
        %3414 = vmatpush1.msra.mxu0 0.0
        %3415 = vmatprep.subr.mxu0 0.0
        %3416 = vmatpush1.msra.mxu0 0.0
        %3417 = vmatprep.subr.mxu0 0.0
        %3418 = vmatpush1.msra.mxu0 0.0
        %3419 = vmatprep.subr.mxu0 0.0
        %3420 = vmatpush1.msra.mxu0 0.0
        %3421 = vmatprep.subr.mxu0 0.0
        %3422 = vmatpush1.msra.mxu0 0.0
        %3423 = vmatprep.subr.mxu0 0.0
        %3424 = vmatpush1.msra.mxu0 0.0
        %3425 = vmatprep.subr.mxu0 0.0
        %3426 = vmatpush1.msra.mxu0 0.0
        %3427 = vmatprep.subr.mxu0 0.0
        %3428 = vmatpush1.msra.mxu0 0.0
        %3429 = vmatprep.mubr.f32.mxu0 0.0
        %v3430 = vand.u32 %v391, 4294901760
        %v3431 = vsub.f32 %v391, %v3430
        %3432 = vmatmul.mubr.f32.gmra.mrb[0].mxu0 %v3431
        %v3433 = vpop.f32.mrb[0].mxu0
        %v3434 = vadd.f32 %v3357, %v3433
        %v3435 = vpop.f32.mrb[0].mxu0
        %v3436 = vadd.f32 %v3359, %v3435
        %3437 = vdwg.mxu0
        %v3438 = vand.u32 %v3200, 4294901760
        %3439 = vmatprep.subr.mxu0 %v3438
        %v3440 = vand.u32 %v3199, 4294901760
        %3441 = vmatpush1.msra.mxu0 %v3440
        %3442 = vmatprep.subr.mxu0 0.0
        %3443 = vmatpush1.msra.mxu0 0.0
        %3444 = vmatprep.subr.mxu0 0.0
        %3445 = vmatpush1.msra.mxu0 0.0
        %3446 = vmatprep.subr.mxu0 0.0
        %3447 = vmatpush1.msra.mxu0 0.0
        %3448 = vmatprep.subr.mxu0 0.0
        %3449 = vmatpush1.msra.mxu0 0.0
        %3450 = vmatprep.subr.mxu0 0.0
        %3451 = vmatpush1.msra.mxu0 0.0
        %3452 = vmatprep.subr.mxu0 0.0
        %3453 = vmatpush1.msra.mxu0 0.0
        %3454 = vmatprep.subr.mxu0 0.0
        %3455 = vmatpush1.msra.mxu0 0.0
        %3456 = vmatprep.subr.mxu0 0.0
        %3457 = vmatpush1.msra.mxu0 0.0
        %3458 = vmatprep.subr.mxu0 0.0
        %3459 = vmatpush1.msra.mxu0 0.0
        %3460 = vmatprep.subr.mxu0 0.0
        %3461 = vmatpush1.msra.mxu0 0.0
        %3462 = vmatprep.subr.mxu0 0.0
        %3463 = vmatpush1.msra.mxu0 0.0
        %3464 = vmatprep.subr.mxu0 0.0
        %3465 = vmatpush1.msra.mxu0 0.0
        %3466 = vmatprep.subr.mxu0 0.0
        %3467 = vmatpush1.msra.mxu0 0.0
        %3468 = vmatprep.subr.mxu0 0.0
        %3469 = vmatpush1.msra.mxu0 0.0
        %3470 = vmatprep.subr.mxu0 0.0
        %3471 = vmatpush1.msra.mxu0 0.0
        %3472 = vmatprep.subr.mxu0 0.0
        %3473 = vmatpush1.msra.mxu0 0.0
        %3474 = vmatprep.subr.mxu0 0.0
        %3475 = vmatpush1.msra.mxu0 0.0
        %3476 = vmatprep.subr.mxu0 0.0
        %3477 = vmatpush1.msra.mxu0 0.0
        %3478 = vmatprep.subr.mxu0 0.0
        %3479 = vmatpush1.msra.mxu0 0.0
        %3480 = vmatprep.subr.mxu0 0.0
        %3481 = vmatpush1.msra.mxu0 0.0
        %3482 = vmatprep.subr.mxu0 0.0
        %3483 = vmatpush1.msra.mxu0 0.0
        %3484 = vmatprep.subr.mxu0 0.0
        %3485 = vmatpush1.msra.mxu0 0.0
        %3486 = vmatprep.subr.mxu0 0.0
        %3487 = vmatpush1.msra.mxu0 0.0
        %3488 = vmatprep.subr.mxu0 0.0
        %3489 = vmatpush1.msra.mxu0 0.0
        %3490 = vmatprep.subr.mxu0 0.0
        %3491 = vmatpush1.msra.mxu0 0.0
        %3492 = vmatprep.subr.mxu0 0.0
        %3493 = vmatpush1.msra.mxu0 0.0
        %3494 = vmatprep.subr.mxu0 0.0
        %3495 = vmatpush1.msra.mxu0 0.0
        %3496 = vmatprep.subr.mxu0 0.0
        %3497 = vmatpush1.msra.mxu0 0.0
        %3498 = vmatprep.subr.mxu0 0.0
        %3499 = vmatpush1.msra.mxu0 0.0
        %3500 = vmatprep.subr.mxu0 0.0
        %3501 = vmatpush1.msra.mxu0 0.0
        %3502 = vmatprep.subr.mxu0 0.0
        %3503 = vmatpush1.msra.mxu0 0.0
        %3504 = vmatprep.mubr.f32.mxu0 0.0
        %v3505 = vand.u32 %v391, 4294901760
        %v3506 = vsub.f32 %v391, %v3505
        %v3507 = vand.u32 %v3506, 4294901760
        %3508 = vmatmul.mubr.f32.gmra.mrb[0].mxu0 %v3507
        %v3509 = vpop.f32.mrb[0].mxu0
        %v3510 = vadd.f32 %v3434, %v3509
        %v3511 = vpop.f32.mrb[0].mxu0
        %v3512 = vadd.f32 %v3436, %v3511
        %3513 = vdwg.mxu0
        %v3514 = vand.u32 %v3200, 4294901760
        %v3515 = vsub.f32 %v3200, %v3514
        %v3516 = vand.u32 %v3515, 4294901760
        %3517 = vmatprep.subr.mxu0 %v3516
        %v3518 = vand.u32 %v3199, 4294901760
        %v3519 = vsub.f32 %v3199, %v3518
        %v3520 = vand.u32 %v3519, 4294901760
        %3521 = vmatpush1.msra.mxu0 %v3520
        %3522 = vmatprep.subr.mxu0 0.0
        %3523 = vmatpush1.msra.mxu0 0.0
        %3524 = vmatprep.subr.mxu0 0.0
        %3525 = vmatpush1.msra.mxu0 0.0
        %3526 = vmatprep.subr.mxu0 0.0
        %3527 = vmatpush1.msra.mxu0 0.0
        %3528 = vmatprep.subr.mxu0 0.0
        %3529 = vmatpush1.msra.mxu0 0.0
        %3530 = vmatprep.subr.mxu0 0.0
        %3531 = vmatpush1.msra.mxu0 0.0
        %3532 = vmatprep.subr.mxu0 0.0
        %3533 = vmatpush1.msra.mxu0 0.0
        %3534 = vmatprep.subr.mxu0 0.0
        %3535 = vmatpush1.msra.mxu0 0.0
        %3536 = vmatprep.subr.mxu0 0.0
        %3537 = vmatpush1.msra.mxu0 0.0
        %3538 = vmatprep.subr.mxu0 0.0
        %3539 = vmatpush1.msra.mxu0 0.0
        %3540 = vmatprep.subr.mxu0 0.0
        %3541 = vmatpush1.msra.mxu0 0.0
        %3542 = vmatprep.subr.mxu0 0.0
        %3543 = vmatpush1.msra.mxu0 0.0
        %3544 = vmatprep.subr.mxu0 0.0
        %3545 = vmatpush1.msra.mxu0 0.0
        %3546 = vmatprep.subr.mxu0 0.0
        %3547 = vmatpush1.msra.mxu0 0.0
        %3548 = vmatprep.subr.mxu0 0.0
        %3549 = vmatpush1.msra.mxu0 0.0
        %3550 = vmatprep.subr.mxu0 0.0
        %3551 = vmatpush1.msra.mxu0 0.0
        %3552 = vmatprep.subr.mxu0 0.0
        %3553 = vmatpush1.msra.mxu0 0.0
        %3554 = vmatprep.subr.mxu0 0.0
        %3555 = vmatpush1.msra.mxu0 0.0
        %3556 = vmatprep.subr.mxu0 0.0
        %3557 = vmatpush1.msra.mxu0 0.0
        %3558 = vmatprep.subr.mxu0 0.0
        %3559 = vmatpush1.msra.mxu0 0.0
        %3560 = vmatprep.subr.mxu0 0.0
        %3561 = vmatpush1.msra.mxu0 0.0
        %3562 = vmatprep.subr.mxu0 0.0
        %3563 = vmatpush1.msra.mxu0 0.0
        %3564 = vmatprep.subr.mxu0 0.0
        %3565 = vmatpush1.msra.mxu0 0.0
        %3566 = vmatprep.subr.mxu0 0.0
        %3567 = vmatpush1.msra.mxu0 0.0
        %3568 = vmatprep.subr.mxu0 0.0
        %3569 = vmatpush1.msra.mxu0 0.0
        %3570 = vmatprep.subr.mxu0 0.0
        %3571 = vmatpush1.msra.mxu0 0.0
        %3572 = vmatprep.subr.mxu0 0.0
        %3573 = vmatpush1.msra.mxu0 0.0
        %3574 = vmatprep.subr.mxu0 0.0
        %3575 = vmatpush1.msra.mxu0 0.0
        %3576 = vmatprep.subr.mxu0 0.0
        %3577 = vmatpush1.msra.mxu0 0.0
        %3578 = vmatprep.subr.mxu0 0.0
        %3579 = vmatpush1.msra.mxu0 0.0
        %3580 = vmatprep.subr.mxu0 0.0
        %3581 = vmatpush1.msra.mxu0 0.0
        %3582 = vmatprep.subr.mxu0 0.0
        %3583 = vmatpush1.msra.mxu0 0.0
        %3584 = vmatprep.mubr.f32.mxu0 0.0
        %v3585 = vand.u32 %v391, 4294901760
        %3586 = vmatmul.mubr.f32.gmra.mrb[0].mxu0 %v3585
        %v3587 = vpop.f32.mrb[0].mxu0
        %v3588 = vadd.f32 %v3510, %v3587
        %v3589 = vpop.f32.mrb[0].mxu0
        %v3590 = vadd.f32 %v3512, %v3589
        %3591 = vdwg.mxu0
        %v3592 = vand.u32 %v3200, 4294901760
        %3593 = vmatprep.subr.mxu0 %v3592
        %v3594 = vand.u32 %v3199, 4294901760
        %3595 = vmatpush1.msra.mxu0 %v3594
        %3596 = vmatprep.subr.mxu0 0.0
        %3597 = vmatpush1.msra.mxu0 0.0
        %3598 = vmatprep.subr.mxu0 0.0
        %3599 = vmatpush1.msra.mxu0 0.0
        %3600 = vmatprep.subr.mxu0 0.0
        %3601 = vmatpush1.msra.mxu0 0.0
        %3602 = vmatprep.subr.mxu0 0.0
        %3603 = vmatpush1.msra.mxu0 0.0
        %3604 = vmatprep.subr.mxu0 0.0
        %3605 = vmatpush1.msra.mxu0 0.0
        %3606 = vmatprep.subr.mxu0 0.0
        %3607 = vmatpush1.msra.mxu0 0.0
        %3608 = vmatprep.subr.mxu0 0.0
        %3609 = vmatpush1.msra.mxu0 0.0
        %3610 = vmatprep.subr.mxu0 0.0
        %3611 = vmatpush1.msra.mxu0 0.0
        %3612 = vmatprep.subr.mxu0 0.0
        %3613 = vmatpush1.msra.mxu0 0.0
        %3614 = vmatprep.subr.mxu0 0.0
        %3615 = vmatpush1.msra.mxu0 0.0
        %3616 = vmatprep.subr.mxu0 0.0
        %3617 = vmatpush1.msra.mxu0 0.0
        %3618 = vmatprep.subr.mxu0 0.0
        %3619 = vmatpush1.msra.mxu0 0.0
        %3620 = vmatprep.subr.mxu0 0.0
        %3621 = vmatpush1.msra.mxu0 0.0
        %3622 = vmatprep.subr.mxu0 0.0
        %3623 = vmatpush1.msra.mxu0 0.0
        %3624 = vmatprep.subr.mxu0 0.0
        %3625 = vmatpush1.msra.mxu0 0.0
        %3626 = vmatprep.subr.mxu0 0.0
        %3627 = vmatpush1.msra.mxu0 0.0
        %3628 = vmatprep.subr.mxu0 0.0
        %3629 = vmatpush1.msra.mxu0 0.0
        %3630 = vmatprep.subr.mxu0 0.0
        %3631 = vmatpush1.msra.mxu0 0.0
        %3632 = vmatprep.subr.mxu0 0.0
        %3633 = vmatpush1.msra.mxu0 0.0
        %3634 = vmatprep.subr.mxu0 0.0
        %3635 = vmatpush1.msra.mxu0 0.0
        %3636 = vmatprep.subr.mxu0 0.0
        %3637 = vmatpush1.msra.mxu0 0.0
        %3638 = vmatprep.subr.mxu0 0.0
        %3639 = vmatpush1.msra.mxu0 0.0
        %3640 = vmatprep.subr.mxu0 0.0
        %3641 = vmatpush1.msra.mxu0 0.0
        %3642 = vmatprep.subr.mxu0 0.0
        %3643 = vmatpush1.msra.mxu0 0.0
        %3644 = vmatprep.subr.mxu0 0.0
        %3645 = vmatpush1.msra.mxu0 0.0
        %3646 = vmatprep.subr.mxu0 0.0
        %3647 = vmatpush1.msra.mxu0 0.0
        %3648 = vmatprep.subr.mxu0 0.0
        %3649 = vmatpush1.msra.mxu0 0.0
        %3650 = vmatprep.subr.mxu0 0.0
        %3651 = vmatpush1.msra.mxu0 0.0
        %3652 = vmatprep.subr.mxu0 0.0
        %3653 = vmatpush1.msra.mxu0 0.0
        %3654 = vmatprep.subr.mxu0 0.0
        %3655 = vmatpush1.msra.mxu0 0.0
        %3656 = vmatprep.subr.mxu0 0.0
        %3657 = vmatpush1.msra.mxu0 0.0
        %3658 = vmatprep.mubr.f32.mxu0 0.0
        %v3659 = vand.u32 %v391, 4294901760
        %3660 = vmatmul.mubr.f32.gmra.mrb[0].mxu0 %v3659
        %v3661 = vpop.f32.mrb[0].mxu0
        %v3662 = vadd.f32 %v3588, %v3661
        %v3663 = vpop.f32.mrb[0].mxu0
        %v3664 = vadd.f32 %v3590, %v3663
        %3665 = vdwg.mxu0
        %v3666 = vrot.slane %v3199, 4
        %v3667 = vmax.f32 %v3199, %v3666
        %v3668 = vrot.slane %v3667, 2
        %v3669 = vmax.f32 %v3667, %v3668
        %v3670 = vrot.slane %v3669, 1
        %v3671 = vmax.f32 %v3669, %v3670
        %v3672 = vrot.slane %v3200, 4
        %v3673 = vmax.f32 %v3200, %v3672
        %v3674 = vrot.slane %v3673, 2
        %v3675 = vmax.f32 %v3673, %v3674
        %v3676 = vrot.slane %v3675, 1
        %v3677 = vmax.f32 %v3675, %v3676
        %v3678 = vsub.f32 %v3199, %v3671
        %v3679 = vsub.f32 %v3200, %v3677
        %v3680 = vmul.f32 %v3678, 1.442695
        %v3681 = vpow.pop %v3680
        %v3682 = vmul.f32 %v3679, 1.442695
        %v3683 = vpow.pop %v3682
        %v3684 = vrot.slane %v3681, 4
        %v3685 = vadd.f32 %v3681, %v3684
        %v3686 = vrot.slane %v3685, 2
        %v3687 = vadd.f32 %v3685, %v3686
        %v3688 = vrot.slane %v3687, 1
        %v3689 = vadd.f32 %v3687, %v3688
        %v3690 = vrot.slane %v3683, 4
        %v3691 = vadd.f32 %v3683, %v3690
        %v3692 = vrot.slane %v3691, 2
        %v3693 = vadd.f32 %v3691, %v3692
        %v3694 = vrot.slane %v3693, 1
        %v3695 = vadd.f32 %v3693, %v3694
        %v3696 = vrcp.pop %v3689
        %v3697 = vrcp.pop %v3695
        %v3698 = vmul.f32 %v3681, %v3696
        %v3699 = vmul.f32 %v3683, %v3697
        %s3700 = scalar_lea.vmem %s330, 16 [#allocation3]
        %3701 = vst [vmem:[%s3700] sm:$0xff] %v3698
        %3702 = vst [vmem:[%s3700 + $0x8] sm:$0xff] %v3699
        %v3703 = vlaneseq
        %v3704 = vshrl.u32 %v3703, 7
        %v3705 = vsub.s32 0, %v3704
        %v3706 = vrot.slane %v3662, %v3705
        %v3707 = vlaneseq
        %v3708 = vshrl.u32 %v3707, 7
        %v3709 = vsub.s32 0, %v3708
        %v3710 = vrot.slane %v3664, %v3709
        %v3711 = vmul.f32 %v3698, %v3706
        %v3712 = vmul.f32 %v3699, %v3710
        %3713 = vmatprep.subr.mxu0 0.0
        %v3714 = vand.u32 %v345, 4294901760
        %3715 = vmatpush1.msra.mxu0 %v3714
        %3716 = vmatprep.subr.mxu0 0.0
        %v3717 = vand.u32 %v346, 4294901760
        %3718 = vmatpush1.msra.mxu0 %v3717
        %3719 = vmatprep.subr.mxu0 0.0
        %v3720 = vand.u32 %v347, 4294901760
        %3721 = vmatpush1.msra.mxu0 %v3720
        %3722 = vmatprep.subr.mxu0 0.0
        %v3723 = vand.u32 %v348, 4294901760
        %3724 = vmatpush1.msra.mxu0 %v3723
        %3725 = vmatprep.subr.mxu0 0.0
        %v3726 = vand.u32 %v349, 4294901760
        %3727 = vmatpush1.msra.mxu0 %v3726
        %3728 = vmatprep.subr.mxu0 0.0
        %v3729 = vand.u32 %v350, 4294901760
        %3730 = vmatpush1.msra.mxu0 %v3729
        %3731 = vmatprep.subr.mxu0 0.0
        %v3732 = vand.u32 %v351, 4294901760
        %3733 = vmatpush1.msra.mxu0 %v3732
        %3734 = vmatprep.subr.mxu0 0.0
        %v3735 = vand.u32 %v352, 4294901760
        %3736 = vmatpush1.msra.mxu0 %v3735
        %3737 = vmatprep.subr.mxu0 0.0
        %v3738 = vand.u32 %v353, 4294901760
        %3739 = vmatpush1.msra.mxu0 %v3738
        %3740 = vmatprep.subr.mxu0 0.0
        %v3741 = vand.u32 %v354, 4294901760
        %3742 = vmatpush1.msra.mxu0 %v3741
        %3743 = vmatprep.subr.mxu0 0.0
        %v3744 = vand.u32 %v355, 4294901760
        %3745 = vmatpush1.msra.mxu0 %v3744
        %3746 = vmatprep.subr.mxu0 0.0
        %v3747 = vand.u32 %v356, 4294901760
        %3748 = vmatpush1.msra.mxu0 %v3747
        %3749 = vmatprep.subr.mxu0 0.0
        %v3750 = vand.u32 %v357, 4294901760
        %3751 = vmatpush1.msra.mxu0 %v3750
        %3752 = vmatprep.subr.mxu0 0.0
        %v3753 = vand.u32 %v358, 4294901760
        %3754 = vmatpush1.msra.mxu0 %v3753
        %3755 = vmatprep.subr.mxu0 0.0
        %v3756 = vand.u32 %v359, 4294901760
        %3757 = vmatpush1.msra.mxu0 %v3756
        %3758 = vmatprep.subr.mxu0 0.0
        %v3759 = vand.u32 %v360, 4294901760
        %3760 = vmatpush1.msra.mxu0 %v3759
        %3761 = vmatprep.subr.mxu0 0.0
        %v3762 = vand.u32 %v361, 4294901760
        %3763 = vmatpush1.msra.mxu0 %v3762
        %3764 = vmatprep.subr.mxu0 0.0
        %v3765 = vand.u32 %v362, 4294901760
        %3766 = vmatpush1.msra.mxu0 %v3765
        %3767 = vmatprep.subr.mxu0 0.0
        %v3768 = vand.u32 %v363, 4294901760
        %3769 = vmatpush1.msra.mxu0 %v3768
        %3770 = vmatprep.subr.mxu0 0.0
        %v3771 = vand.u32 %v364, 4294901760
        %3772 = vmatpush1.msra.mxu0 %v3771
        %3773 = vmatprep.subr.mxu0 0.0
        %v3774 = vand.u32 %v365, 4294901760
        %3775 = vmatpush1.msra.mxu0 %v3774
        %3776 = vmatprep.subr.mxu0 0.0
        %v3777 = vand.u32 %v366, 4294901760
        %3778 = vmatpush1.msra.mxu0 %v3777
        %3779 = vmatprep.subr.mxu0 0.0
        %v3780 = vand.u32 %v367, 4294901760
        %3781 = vmatpush1.msra.mxu0 %v3780
        %3782 = vmatprep.subr.mxu0 0.0
        %v3783 = vand.u32 %v368, 4294901760
        %3784 = vmatpush1.msra.mxu0 %v3783
        %3785 = vmatprep.subr.mxu0 0.0
        %v3786 = vand.u32 %v369, 4294901760
        %3787 = vmatpush1.msra.mxu0 %v3786
        %3788 = vmatprep.subr.mxu0 0.0
        %v3789 = vand.u32 %v370, 4294901760
        %3790 = vmatpush1.msra.mxu0 %v3789
        %3791 = vmatprep.subr.mxu0 0.0
        %v3792 = vand.u32 %v371, 4294901760
        %3793 = vmatpush1.msra.mxu0 %v3792
        %3794 = vmatprep.subr.mxu0 0.0
        %v3795 = vand.u32 %v372, 4294901760
        %3796 = vmatpush1.msra.mxu0 %v3795
        %3797 = vmatprep.subr.mxu0 0.0
        %v3798 = vand.u32 %v373, 4294901760
        %3799 = vmatpush1.msra.mxu0 %v3798
        %3800 = vmatprep.subr.mxu0 0.0
        %v3801 = vand.u32 %v374, 4294901760
        %3802 = vmatpush1.msra.mxu0 %v3801
        %3803 = vmatprep.subr.mxu0 0.0
        %v3804 = vand.u32 %v375, 4294901760
        %3805 = vmatpush1.msra.mxu0 %v3804
        %3806 = vmatprep.subr.mxu0 0.0
        %v3807 = vand.u32 %v376, 4294901760
        %3808 = vmatpush1.msra.mxu0 %v3807
        %v3809 = vand.u32 %v3712, 4294901760
        %v3810 = vsub.f32 %v3712, %v3809
        %v3811 = vand.u32 %v3810, 4294901760
        %v3812 = vsub.f32 %v3810, %v3811
        %v3813 = vand.u32 %v3812, 4294901760
        %3814 = vmatprep.mubr.f32.mxu0 %v3813
        %v3815 = vand.u32 %v3711, 4294901760
        %v3816 = vsub.f32 %v3711, %v3815
        %v3817 = vand.u32 %v3816, 4294901760
        %v3818 = vsub.f32 %v3816, %v3817
        %v3819 = vand.u32 %v3818, 4294901760
        %3820 = vmatmul.mubr.f32.gmra.mrb[0].mxu0 %v3819
        %v3821 = vpop.f32.mrb[0].mxu0
        %v3822 = vadd.f32 0.0, %v3821
        %v3823 = vpop.f32.mrb[0].mxu0
        %3824 = vdwg.mxu0
        %3825 = vmatprep.subr.mxu0 0.0
        %v3826 = vand.u32 %v345, 4294901760
        %v3827 = vsub.f32 %v345, %v3826
        %v3828 = vand.u32 %v3827, 4294901760
        %v3829 = vsub.f32 %v3827, %v3828
        %v3830 = vand.u32 %v3829, 4294901760
        %3831 = vmatpush1.msra.mxu0 %v3830
        %3832 = vmatprep.subr.mxu0 0.0
        %v3833 = vand.u32 %v346, 4294901760
        %v3834 = vsub.f32 %v346, %v3833
        %v3835 = vand.u32 %v3834, 4294901760
        %v3836 = vsub.f32 %v3834, %v3835
        %v3837 = vand.u32 %v3836, 4294901760
        %3838 = vmatpush1.msra.mxu0 %v3837
        %3839 = vmatprep.subr.mxu0 0.0
        %v3840 = vand.u32 %v347, 4294901760
        %v3841 = vsub.f32 %v347, %v3840
        %v3842 = vand.u32 %v3841, 4294901760
        %v3843 = vsub.f32 %v3841, %v3842
        %v3844 = vand.u32 %v3843, 4294901760
        %3845 = vmatpush1.msra.mxu0 %v3844
        %3846 = vmatprep.subr.mxu0 0.0
        %v3847 = vand.u32 %v348, 4294901760
        %v3848 = vsub.f32 %v348, %v3847
        %v3849 = vand.u32 %v3848, 4294901760
        %v3850 = vsub.f32 %v3848, %v3849
        %v3851 = vand.u32 %v3850, 4294901760
        %3852 = vmatpush1.msra.mxu0 %v3851
        %3853 = vmatprep.subr.mxu0 0.0
        %v3854 = vand.u32 %v349, 4294901760
        %v3855 = vsub.f32 %v349, %v3854
        %v3856 = vand.u32 %v3855, 4294901760
        %v3857 = vsub.f32 %v3855, %v3856
        %v3858 = vand.u32 %v3857, 4294901760
        %3859 = vmatpush1.msra.mxu0 %v3858
        %3860 = vmatprep.subr.mxu0 0.0
        %v3861 = vand.u32 %v350, 4294901760
        %v3862 = vsub.f32 %v350, %v3861
        %v3863 = vand.u32 %v3862, 4294901760
        %v3864 = vsub.f32 %v3862, %v3863
        %v3865 = vand.u32 %v3864, 4294901760
        %3866 = vmatpush1.msra.mxu0 %v3865
        %3867 = vmatprep.subr.mxu0 0.0
        %v3868 = vand.u32 %v351, 4294901760
        %v3869 = vsub.f32 %v351, %v3868
        %v3870 = vand.u32 %v3869, 4294901760
        %v3871 = vsub.f32 %v3869, %v3870
        %v3872 = vand.u32 %v3871, 4294901760
        %3873 = vmatpush1.msra.mxu0 %v3872
        %3874 = vmatprep.subr.mxu0 0.0
        %v3875 = vand.u32 %v352, 4294901760
        %v3876 = vsub.f32 %v352, %v3875
        %v3877 = vand.u32 %v3876, 4294901760
        %v3878 = vsub.f32 %v3876, %v3877
        %v3879 = vand.u32 %v3878, 4294901760
        %3880 = vmatpush1.msra.mxu0 %v3879
        %3881 = vmatprep.subr.mxu0 0.0
        %v3882 = vand.u32 %v353, 4294901760
        %v3883 = vsub.f32 %v353, %v3882
        %v3884 = vand.u32 %v3883, 4294901760
        %v3885 = vsub.f32 %v3883, %v3884
        %v3886 = vand.u32 %v3885, 4294901760
        %3887 = vmatpush1.msra.mxu0 %v3886
        %3888 = vmatprep.subr.mxu0 0.0
        %v3889 = vand.u32 %v354, 4294901760
        %v3890 = vsub.f32 %v354, %v3889
        %v3891 = vand.u32 %v3890, 4294901760
        %v3892 = vsub.f32 %v3890, %v3891
        %v3893 = vand.u32 %v3892, 4294901760
        %3894 = vmatpush1.msra.mxu0 %v3893
        %3895 = vmatprep.subr.mxu0 0.0
        %v3896 = vand.u32 %v355, 4294901760
        %v3897 = vsub.f32 %v355, %v3896
        %v3898 = vand.u32 %v3897, 4294901760
        %v3899 = vsub.f32 %v3897, %v3898
        %v3900 = vand.u32 %v3899, 4294901760
        %3901 = vmatpush1.msra.mxu0 %v3900
        %3902 = vmatprep.subr.mxu0 0.0
        %v3903 = vand.u32 %v356, 4294901760
        %v3904 = vsub.f32 %v356, %v3903
        %v3905 = vand.u32 %v3904, 4294901760
        %v3906 = vsub.f32 %v3904, %v3905
        %v3907 = vand.u32 %v3906, 4294901760
        %3908 = vmatpush1.msra.mxu0 %v3907
        %3909 = vmatprep.subr.mxu0 0.0
        %v3910 = vand.u32 %v357, 4294901760
        %v3911 = vsub.f32 %v357, %v3910
        %v3912 = vand.u32 %v3911, 4294901760
        %v3913 = vsub.f32 %v3911, %v3912
        %v3914 = vand.u32 %v3913, 4294901760
        %3915 = vmatpush1.msra.mxu0 %v3914
        %3916 = vmatprep.subr.mxu0 0.0
        %v3917 = vand.u32 %v358, 4294901760
        %v3918 = vsub.f32 %v358, %v3917
        %v3919 = vand.u32 %v3918, 4294901760
        %v3920 = vsub.f32 %v3918, %v3919
        %v3921 = vand.u32 %v3920, 4294901760
        %3922 = vmatpush1.msra.mxu0 %v3921
        %3923 = vmatprep.subr.mxu0 0.0
        %v3924 = vand.u32 %v359, 4294901760
        %v3925 = vsub.f32 %v359, %v3924
        %v3926 = vand.u32 %v3925, 4294901760
        %v3927 = vsub.f32 %v3925, %v3926
        %v3928 = vand.u32 %v3927, 4294901760
        %3929 = vmatpush1.msra.mxu0 %v3928
        %3930 = vmatprep.subr.mxu0 0.0
        %v3931 = vand.u32 %v360, 4294901760
        %v3932 = vsub.f32 %v360, %v3931
        %v3933 = vand.u32 %v3932, 4294901760
        %v3934 = vsub.f32 %v3932, %v3933
        %v3935 = vand.u32 %v3934, 4294901760
        %3936 = vmatpush1.msra.mxu0 %v3935
        %3937 = vmatprep.subr.mxu0 0.0
        %v3938 = vand.u32 %v361, 4294901760
        %v3939 = vsub.f32 %v361, %v3938
        %v3940 = vand.u32 %v3939, 4294901760
        %v3941 = vsub.f32 %v3939, %v3940
        %v3942 = vand.u32 %v3941, 4294901760
        %3943 = vmatpush1.msra.mxu0 %v3942
        %3944 = vmatprep.subr.mxu0 0.0
        %v3945 = vand.u32 %v362, 4294901760
        %v3946 = vsub.f32 %v362, %v3945
        %v3947 = vand.u32 %v3946, 4294901760
        %v3948 = vsub.f32 %v3946, %v3947
        %v3949 = vand.u32 %v3948, 4294901760
        %3950 = vmatpush1.msra.mxu0 %v3949
        %3951 = vmatprep.subr.mxu0 0.0
        %v3952 = vand.u32 %v363, 4294901760
        %v3953 = vsub.f32 %v363, %v3952
        %v3954 = vand.u32 %v3953, 4294901760
        %v3955 = vsub.f32 %v3953, %v3954
        %v3956 = vand.u32 %v3955, 4294901760
        %3957 = vmatpush1.msra.mxu0 %v3956
        %3958 = vmatprep.subr.mxu0 0.0
        %v3959 = vand.u32 %v364, 4294901760
        %v3960 = vsub.f32 %v364, %v3959
        %v3961 = vand.u32 %v3960, 4294901760
        %v3962 = vsub.f32 %v3960, %v3961
        %v3963 = vand.u32 %v3962, 4294901760
        %3964 = vmatpush1.msra.mxu0 %v3963
        %3965 = vmatprep.subr.mxu0 0.0
        %v3966 = vand.u32 %v365, 4294901760
        %v3967 = vsub.f32 %v365, %v3966
        %v3968 = vand.u32 %v3967, 4294901760
        %v3969 = vsub.f32 %v3967, %v3968
        %v3970 = vand.u32 %v3969, 4294901760
        %3971 = vmatpush1.msra.mxu0 %v3970
        %3972 = vmatprep.subr.mxu0 0.0
        %v3973 = vand.u32 %v366, 4294901760
        %v3974 = vsub.f32 %v366, %v3973
        %v3975 = vand.u32 %v3974, 4294901760
        %v3976 = vsub.f32 %v3974, %v3975
        %v3977 = vand.u32 %v3976, 4294901760
        %3978 = vmatpush1.msra.mxu0 %v3977
        %3979 = vmatprep.subr.mxu0 0.0
        %v3980 = vand.u32 %v367, 4294901760
        %v3981 = vsub.f32 %v367, %v3980
        %v3982 = vand.u32 %v3981, 4294901760
        %v3983 = vsub.f32 %v3981, %v3982
        %v3984 = vand.u32 %v3983, 4294901760
        %3985 = vmatpush1.msra.mxu0 %v3984
        %3986 = vmatprep.subr.mxu0 0.0
        %v3987 = vand.u32 %v368, 4294901760
        %v3988 = vsub.f32 %v368, %v3987
        %v3989 = vand.u32 %v3988, 4294901760
        %v3990 = vsub.f32 %v3988, %v3989
        %v3991 = vand.u32 %v3990, 4294901760
        %3992 = vmatpush1.msra.mxu0 %v3991
        %3993 = vmatprep.subr.mxu0 0.0
        %v3994 = vand.u32 %v369, 4294901760
        %v3995 = vsub.f32 %v369, %v3994
        %v3996 = vand.u32 %v3995, 4294901760
        %v3997 = vsub.f32 %v3995, %v3996
        %v3998 = vand.u32 %v3997, 4294901760
        %3999 = vmatpush1.msra.mxu0 %v3998
        %4000 = vmatprep.subr.mxu0 0.0
        %v4001 = vand.u32 %v370, 4294901760
        %v4002 = vsub.f32 %v370, %v4001
        %v4003 = vand.u32 %v4002, 4294901760
        %v4004 = vsub.f32 %v4002, %v4003
        %v4005 = vand.u32 %v4004, 4294901760
        %4006 = vmatpush1.msra.mxu0 %v4005
        %4007 = vmatprep.subr.mxu0 0.0
        %v4008 = vand.u32 %v371, 4294901760
        %v4009 = vsub.f32 %v371, %v4008
        %v4010 = vand.u32 %v4009, 4294901760
        %v4011 = vsub.f32 %v4009, %v4010
        %v4012 = vand.u32 %v4011, 4294901760
        %4013 = vmatpush1.msra.mxu0 %v4012
        %4014 = vmatprep.subr.mxu0 0.0
        %v4015 = vand.u32 %v372, 4294901760
        %v4016 = vsub.f32 %v372, %v4015
        %v4017 = vand.u32 %v4016, 4294901760
        %v4018 = vsub.f32 %v4016, %v4017
        %v4019 = vand.u32 %v4018, 4294901760
        %4020 = vmatpush1.msra.mxu0 %v4019
        %4021 = vmatprep.subr.mxu0 0.0
        %v4022 = vand.u32 %v373, 4294901760
        %v4023 = vsub.f32 %v373, %v4022
        %v4024 = vand.u32 %v4023, 4294901760
        %v4025 = vsub.f32 %v4023, %v4024
        %v4026 = vand.u32 %v4025, 4294901760
        %4027 = vmatpush1.msra.mxu0 %v4026
        %4028 = vmatprep.subr.mxu0 0.0
        %v4029 = vand.u32 %v374, 4294901760
        %v4030 = vsub.f32 %v374, %v4029
        %v4031 = vand.u32 %v4030, 4294901760
        %v4032 = vsub.f32 %v4030, %v4031
        %v4033 = vand.u32 %v4032, 4294901760
        %4034 = vmatpush1.msra.mxu0 %v4033
        %4035 = vmatprep.subr.mxu0 0.0
        %v4036 = vand.u32 %v375, 4294901760
        %v4037 = vsub.f32 %v375, %v4036
        %v4038 = vand.u32 %v4037, 4294901760
        %v4039 = vsub.f32 %v4037, %v4038
        %v4040 = vand.u32 %v4039, 4294901760
        %4041 = vmatpush1.msra.mxu0 %v4040
        %4042 = vmatprep.subr.mxu0 0.0
        %v4043 = vand.u32 %v376, 4294901760
        %v4044 = vsub.f32 %v376, %v4043
        %v4045 = vand.u32 %v4044, 4294901760
        %v4046 = vsub.f32 %v4044, %v4045
        %v4047 = vand.u32 %v4046, 4294901760
        %4048 = vmatpush1.msra.mxu0 %v4047
        %v4049 = vand.u32 %v3712, 4294901760
        %4050 = vmatprep.mubr.f32.mxu0 %v4049
        %v4051 = vand.u32 %v3711, 4294901760
        %4052 = vmatmul.mubr.f32.gmra.mrb[0].mxu0 %v4051
        %v4053 = vpop.f32.mrb[0].mxu0
        %v4054 = vadd.f32 %v3822, %v4053
        %v4055 = vpop.f32.mrb[0].mxu0
        %4056 = vdwg.mxu0
        %4057 = vmatprep.subr.mxu0 0.0
        %v4058 = vand.u32 %v345, 4294901760
        %v4059 = vsub.f32 %v345, %v4058
        %4060 = vmatpush1.msra.mxu0 %v4059
        %4061 = vmatprep.subr.mxu0 0.0
        %v4062 = vand.u32 %v346, 4294901760
        %v4063 = vsub.f32 %v346, %v4062
        %4064 = vmatpush1.msra.mxu0 %v4063
        %4065 = vmatprep.subr.mxu0 0.0
        %v4066 = vand.u32 %v347, 4294901760
        %v4067 = vsub.f32 %v347, %v4066
        %4068 = vmatpush1.msra.mxu0 %v4067
        %4069 = vmatprep.subr.mxu0 0.0
        %v4070 = vand.u32 %v348, 4294901760
        %v4071 = vsub.f32 %v348, %v4070
        %4072 = vmatpush1.msra.mxu0 %v4071
        %4073 = vmatprep.subr.mxu0 0.0
        %v4074 = vand.u32 %v349, 4294901760
        %v4075 = vsub.f32 %v349, %v4074
        %4076 = vmatpush1.msra.mxu0 %v4075
        %4077 = vmatprep.subr.mxu0 0.0
        %v4078 = vand.u32 %v350, 4294901760
        %v4079 = vsub.f32 %v350, %v4078
        %4080 = vmatpush1.msra.mxu0 %v4079
        %4081 = vmatprep.subr.mxu0 0.0
        %v4082 = vand.u32 %v351, 4294901760
        %v4083 = vsub.f32 %v351, %v4082
        %4084 = vmatpush1.msra.mxu0 %v4083
        %4085 = vmatprep.subr.mxu0 0.0
        %v4086 = vand.u32 %v352, 4294901760
        %v4087 = vsub.f32 %v352, %v4086
        %4088 = vmatpush1.msra.mxu0 %v4087
        %4089 = vmatprep.subr.mxu0 0.0
        %v4090 = vand.u32 %v353, 4294901760
        %v4091 = vsub.f32 %v353, %v4090
        %4092 = vmatpush1.msra.mxu0 %v4091
        %4093 = vmatprep.subr.mxu0 0.0
        %v4094 = vand.u32 %v354, 4294901760
        %v4095 = vsub.f32 %v354, %v4094
        %4096 = vmatpush1.msra.mxu0 %v4095
        %4097 = vmatprep.subr.mxu0 0.0
        %v4098 = vand.u32 %v355, 4294901760
        %v4099 = vsub.f32 %v355, %v4098
        %4100 = vmatpush1.msra.mxu0 %v4099
        %4101 = vmatprep.subr.mxu0 0.0
        %v4102 = vand.u32 %v356, 4294901760
        %v4103 = vsub.f32 %v356, %v4102
        %4104 = vmatpush1.msra.mxu0 %v4103
        %4105 = vmatprep.subr.mxu0 0.0
        %v4106 = vand.u32 %v357, 4294901760
        %v4107 = vsub.f32 %v357, %v4106
        %4108 = vmatpush1.msra.mxu0 %v4107
        %4109 = vmatprep.subr.mxu0 0.0
        %v4110 = vand.u32 %v358, 4294901760
        %v4111 = vsub.f32 %v358, %v4110
        %4112 = vmatpush1.msra.mxu0 %v4111
        %4113 = vmatprep.subr.mxu0 0.0
        %v4114 = vand.u32 %v359, 4294901760
        %v4115 = vsub.f32 %v359, %v4114
        %4116 = vmatpush1.msra.mxu0 %v4115
        %4117 = vmatprep.subr.mxu0 0.0
        %v4118 = vand.u32 %v360, 4294901760
        %v4119 = vsub.f32 %v360, %v4118
        %4120 = vmatpush1.msra.mxu0 %v4119
        %4121 = vmatprep.subr.mxu0 0.0
        %v4122 = vand.u32 %v361, 4294901760
        %v4123 = vsub.f32 %v361, %v4122
        %4124 = vmatpush1.msra.mxu0 %v4123
        %4125 = vmatprep.subr.mxu0 0.0
        %v4126 = vand.u32 %v362, 4294901760
        %v4127 = vsub.f32 %v362, %v4126
        %4128 = vmatpush1.msra.mxu0 %v4127
        %4129 = vmatprep.subr.mxu0 0.0
        %v4130 = vand.u32 %v363, 4294901760
        %v4131 = vsub.f32 %v363, %v4130
        %4132 = vmatpush1.msra.mxu0 %v4131
        %4133 = vmatprep.subr.mxu0 0.0
        %v4134 = vand.u32 %v364, 4294901760
        %v4135 = vsub.f32 %v364, %v4134
        %4136 = vmatpush1.msra.mxu0 %v4135
        %4137 = vmatprep.subr.mxu0 0.0
        %v4138 = vand.u32 %v365, 4294901760
        %v4139 = vsub.f32 %v365, %v4138
        %4140 = vmatpush1.msra.mxu0 %v4139
        %4141 = vmatprep.subr.mxu0 0.0
        %v4142 = vand.u32 %v366, 4294901760
        %v4143 = vsub.f32 %v366, %v4142
        %4144 = vmatpush1.msra.mxu0 %v4143
        %4145 = vmatprep.subr.mxu0 0.0
        %v4146 = vand.u32 %v367, 4294901760
        %v4147 = vsub.f32 %v367, %v4146
        %4148 = vmatpush1.msra.mxu0 %v4147
        %4149 = vmatprep.subr.mxu0 0.0
        %v4150 = vand.u32 %v368, 4294901760
        %v4151 = vsub.f32 %v368, %v4150
        %4152 = vmatpush1.msra.mxu0 %v4151
        %4153 = vmatprep.subr.mxu0 0.0
        %v4154 = vand.u32 %v369, 4294901760
        %v4155 = vsub.f32 %v369, %v4154
        %4156 = vmatpush1.msra.mxu0 %v4155
        %4157 = vmatprep.subr.mxu0 0.0
        %v4158 = vand.u32 %v370, 4294901760
        %v4159 = vsub.f32 %v370, %v4158
        %4160 = vmatpush1.msra.mxu0 %v4159
        %4161 = vmatprep.subr.mxu0 0.0
        %v4162 = vand.u32 %v371, 4294901760
        %v4163 = vsub.f32 %v371, %v4162
        %4164 = vmatpush1.msra.mxu0 %v4163
        %4165 = vmatprep.subr.mxu0 0.0
        %v4166 = vand.u32 %v372, 4294901760
        %v4167 = vsub.f32 %v372, %v4166
        %4168 = vmatpush1.msra.mxu0 %v4167
        %4169 = vmatprep.subr.mxu0 0.0
        %v4170 = vand.u32 %v373, 4294901760
        %v4171 = vsub.f32 %v373, %v4170
        %4172 = vmatpush1.msra.mxu0 %v4171
        %4173 = vmatprep.subr.mxu0 0.0
        %v4174 = vand.u32 %v374, 4294901760
        %v4175 = vsub.f32 %v374, %v4174
        %4176 = vmatpush1.msra.mxu0 %v4175
        %4177 = vmatprep.subr.mxu0 0.0
        %v4178 = vand.u32 %v375, 4294901760
        %v4179 = vsub.f32 %v375, %v4178
        %4180 = vmatpush1.msra.mxu0 %v4179
        %4181 = vmatprep.subr.mxu0 0.0
        %v4182 = vand.u32 %v376, 4294901760
        %v4183 = vsub.f32 %v376, %v4182
        %4184 = vmatpush1.msra.mxu0 %v4183
        %v4185 = vand.u32 %v3712, 4294901760
        %v4186 = vsub.f32 %v3712, %v4185
        %4187 = vmatprep.mubr.f32.mxu0 %v4186
        %v4188 = vand.u32 %v3711, 4294901760
        %v4189 = vsub.f32 %v3711, %v4188
        %4190 = vmatmul.mubr.f32.gmra.mrb[0].mxu0 %v4189
        %v4191 = vpop.f32.mrb[0].mxu0
        %v4192 = vadd.f32 %v4054, %v4191
        %v4193 = vpop.f32.mrb[0].mxu0
        %4194 = vdwg.mxu0
        %4195 = vmatprep.subr.mxu0 0.0
        %v4196 = vand.u32 %v345, 4294901760
        %4197 = vmatpush1.msra.mxu0 %v4196
        %4198 = vmatprep.subr.mxu0 0.0
        %v4199 = vand.u32 %v346, 4294901760
        %4200 = vmatpush1.msra.mxu0 %v4199
        %4201 = vmatprep.subr.mxu0 0.0
        %v4202 = vand.u32 %v347, 4294901760
        %4203 = vmatpush1.msra.mxu0 %v4202
        %4204 = vmatprep.subr.mxu0 0.0
        %v4205 = vand.u32 %v348, 4294901760
        %4206 = vmatpush1.msra.mxu0 %v4205
        %4207 = vmatprep.subr.mxu0 0.0
        %v4208 = vand.u32 %v349, 4294901760
        %4209 = vmatpush1.msra.mxu0 %v4208
        %4210 = vmatprep.subr.mxu0 0.0
        %v4211 = vand.u32 %v350, 4294901760
        %4212 = vmatpush1.msra.mxu0 %v4211
        %4213 = vmatprep.subr.mxu0 0.0
        %v4214 = vand.u32 %v351, 4294901760
        %4215 = vmatpush1.msra.mxu0 %v4214
        %4216 = vmatprep.subr.mxu0 0.0
        %v4217 = vand.u32 %v352, 4294901760
        %4218 = vmatpush1.msra.mxu0 %v4217
        %4219 = vmatprep.subr.mxu0 0.0
        %v4220 = vand.u32 %v353, 4294901760
        %4221 = vmatpush1.msra.mxu0 %v4220
        %4222 = vmatprep.subr.mxu0 0.0
        %v4223 = vand.u32 %v354, 4294901760
        %4224 = vmatpush1.msra.mxu0 %v4223
        %4225 = vmatprep.subr.mxu0 0.0
        %v4226 = vand.u32 %v355, 4294901760
        %4227 = vmatpush1.msra.mxu0 %v4226
        %4228 = vmatprep.subr.mxu0 0.0
        %v4229 = vand.u32 %v356, 4294901760
        %4230 = vmatpush1.msra.mxu0 %v4229
        %4231 = vmatprep.subr.mxu0 0.0
        %v4232 = vand.u32 %v357, 4294901760
        %4233 = vmatpush1.msra.mxu0 %v4232
        %4234 = vmatprep.subr.mxu0 0.0
        %v4235 = vand.u32 %v358, 4294901760
        %4236 = vmatpush1.msra.mxu0 %v4235
        %4237 = vmatprep.subr.mxu0 0.0
        %v4238 = vand.u32 %v359, 4294901760
        %4239 = vmatpush1.msra.mxu0 %v4238
        %4240 = vmatprep.subr.mxu0 0.0
        %v4241 = vand.u32 %v360, 4294901760
        %4242 = vmatpush1.msra.mxu0 %v4241
        %4243 = vmatprep.subr.mxu0 0.0
        %v4244 = vand.u32 %v361, 4294901760
        %4245 = vmatpush1.msra.mxu0 %v4244
        %4246 = vmatprep.subr.mxu0 0.0
        %v4247 = vand.u32 %v362, 4294901760
        %4248 = vmatpush1.msra.mxu0 %v4247
        %4249 = vmatprep.subr.mxu0 0.0
        %v4250 = vand.u32 %v363, 4294901760
        %4251 = vmatpush1.msra.mxu0 %v4250
        %4252 = vmatprep.subr.mxu0 0.0
        %v4253 = vand.u32 %v364, 4294901760
        %4254 = vmatpush1.msra.mxu0 %v4253
        %4255 = vmatprep.subr.mxu0 0.0
        %v4256 = vand.u32 %v365, 4294901760
        %4257 = vmatpush1.msra.mxu0 %v4256
        %4258 = vmatprep.subr.mxu0 0.0
        %v4259 = vand.u32 %v366, 4294901760
        %4260 = vmatpush1.msra.mxu0 %v4259
        %4261 = vmatprep.subr.mxu0 0.0
        %v4262 = vand.u32 %v367, 4294901760
        %4263 = vmatpush1.msra.mxu0 %v4262
        %4264 = vmatprep.subr.mxu0 0.0
        %v4265 = vand.u32 %v368, 4294901760
        %4266 = vmatpush1.msra.mxu0 %v4265
        %4267 = vmatprep.subr.mxu0 0.0
        %v4268 = vand.u32 %v369, 4294901760
        %4269 = vmatpush1.msra.mxu0 %v4268
        %4270 = vmatprep.subr.mxu0 0.0
        %v4271 = vand.u32 %v370, 4294901760
        %4272 = vmatpush1.msra.mxu0 %v4271
        %4273 = vmatprep.subr.mxu0 0.0
        %v4274 = vand.u32 %v371, 4294901760
        %4275 = vmatpush1.msra.mxu0 %v4274
        %4276 = vmatprep.subr.mxu0 0.0
        %v4277 = vand.u32 %v372, 4294901760
        %4278 = vmatpush1.msra.mxu0 %v4277
        %4279 = vmatprep.subr.mxu0 0.0
        %v4280 = vand.u32 %v373, 4294901760
        %4281 = vmatpush1.msra.mxu0 %v4280
        %4282 = vmatprep.subr.mxu0 0.0
        %v4283 = vand.u32 %v374, 4294901760
        %4284 = vmatpush1.msra.mxu0 %v4283
        %4285 = vmatprep.subr.mxu0 0.0
        %v4286 = vand.u32 %v375, 4294901760
        %4287 = vmatpush1.msra.mxu0 %v4286
        %4288 = vmatprep.subr.mxu0 0.0
        %v4289 = vand.u32 %v376, 4294901760
        %4290 = vmatpush1.msra.mxu0 %v4289
        %v4291 = vand.u32 %v3712, 4294901760
        %v4292 = vsub.f32 %v3712, %v4291
        %v4293 = vand.u32 %v4292, 4294901760
        %4294 = vmatprep.mubr.f32.mxu0 %v4293
        %v4295 = vand.u32 %v3711, 4294901760
        %v4296 = vsub.f32 %v3711, %v4295
        %v4297 = vand.u32 %v4296, 4294901760
        %4298 = vmatmul.mubr.f32.gmra.mrb[0].mxu0 %v4297
        %v4299 = vpop.f32.mrb[0].mxu0
        %v4300 = vadd.f32 %v4192, %v4299
        %v4301 = vpop.f32.mrb[0].mxu0
        %4302 = vdwg.mxu0
        %4303 = vmatprep.subr.mxu0 0.0
        %v4304 = vand.u32 %v345, 4294901760
        %v4305 = vsub.f32 %v345, %v4304
        %v4306 = vand.u32 %v4305, 4294901760
        %4307 = vmatpush1.msra.mxu0 %v4306
        %4308 = vmatprep.subr.mxu0 0.0
        %v4309 = vand.u32 %v346, 4294901760
        %v4310 = vsub.f32 %v346, %v4309
        %v4311 = vand.u32 %v4310, 4294901760
        %4312 = vmatpush1.msra.mxu0 %v4311
        %4313 = vmatprep.subr.mxu0 0.0
        %v4314 = vand.u32 %v347, 4294901760
        %v4315 = vsub.f32 %v347, %v4314
        %v4316 = vand.u32 %v4315, 4294901760
        %4317 = vmatpush1.msra.mxu0 %v4316
        %4318 = vmatprep.subr.mxu0 0.0
        %v4319 = vand.u32 %v348, 4294901760
        %v4320 = vsub.f32 %v348, %v4319
        %v4321 = vand.u32 %v4320, 4294901760
        %4322 = vmatpush1.msra.mxu0 %v4321
        %4323 = vmatprep.subr.mxu0 0.0
        %v4324 = vand.u32 %v349, 4294901760
        %v4325 = vsub.f32 %v349, %v4324
        %v4326 = vand.u32 %v4325, 4294901760
        %4327 = vmatpush1.msra.mxu0 %v4326
        %4328 = vmatprep.subr.mxu0 0.0
        %v4329 = vand.u32 %v350, 4294901760
        %v4330 = vsub.f32 %v350, %v4329
        %v4331 = vand.u32 %v4330, 4294901760
        %4332 = vmatpush1.msra.mxu0 %v4331
        %4333 = vmatprep.subr.mxu0 0.0
        %v4334 = vand.u32 %v351, 4294901760
        %v4335 = vsub.f32 %v351, %v4334
        %v4336 = vand.u32 %v4335, 4294901760
        %4337 = vmatpush1.msra.mxu0 %v4336
        %4338 = vmatprep.subr.mxu0 0.0
        %v4339 = vand.u32 %v352, 4294901760
        %v4340 = vsub.f32 %v352, %v4339
        %v4341 = vand.u32 %v4340, 4294901760
        %4342 = vmatpush1.msra.mxu0 %v4341
        %4343 = vmatprep.subr.mxu0 0.0
        %v4344 = vand.u32 %v353, 4294901760
        %v4345 = vsub.f32 %v353, %v4344
        %v4346 = vand.u32 %v4345, 4294901760
        %4347 = vmatpush1.msra.mxu0 %v4346
        %4348 = vmatprep.subr.mxu0 0.0
        %v4349 = vand.u32 %v354, 4294901760
        %v4350 = vsub.f32 %v354, %v4349
        %v4351 = vand.u32 %v4350, 4294901760
        %4352 = vmatpush1.msra.mxu0 %v4351
        %4353 = vmatprep.subr.mxu0 0.0
        %v4354 = vand.u32 %v355, 4294901760
        %v4355 = vsub.f32 %v355, %v4354
        %v4356 = vand.u32 %v4355, 4294901760
        %4357 = vmatpush1.msra.mxu0 %v4356
        %4358 = vmatprep.subr.mxu0 0.0
        %v4359 = vand.u32 %v356, 4294901760
        %v4360 = vsub.f32 %v356, %v4359
        %v4361 = vand.u32 %v4360, 4294901760
        %4362 = vmatpush1.msra.mxu0 %v4361
        %4363 = vmatprep.subr.mxu0 0.0
        %v4364 = vand.u32 %v357, 4294901760
        %v4365 = vsub.f32 %v357, %v4364
        %v4366 = vand.u32 %v4365, 4294901760
        %4367 = vmatpush1.msra.mxu0 %v4366
        %4368 = vmatprep.subr.mxu0 0.0
        %v4369 = vand.u32 %v358, 4294901760
        %v4370 = vsub.f32 %v358, %v4369
        %v4371 = vand.u32 %v4370, 4294901760
        %4372 = vmatpush1.msra.mxu0 %v4371
        %4373 = vmatprep.subr.mxu0 0.0
        %v4374 = vand.u32 %v359, 4294901760
        %v4375 = vsub.f32 %v359, %v4374
        %v4376 = vand.u32 %v4375, 4294901760
        %4377 = vmatpush1.msra.mxu0 %v4376
        %4378 = vmatprep.subr.mxu0 0.0
        %v4379 = vand.u32 %v360, 4294901760
        %v4380 = vsub.f32 %v360, %v4379
        %v4381 = vand.u32 %v4380, 4294901760
        %4382 = vmatpush1.msra.mxu0 %v4381
        %4383 = vmatprep.subr.mxu0 0.0
        %v4384 = vand.u32 %v361, 4294901760
        %v4385 = vsub.f32 %v361, %v4384
        %v4386 = vand.u32 %v4385, 4294901760
        %4387 = vmatpush1.msra.mxu0 %v4386
        %4388 = vmatprep.subr.mxu0 0.0
        %v4389 = vand.u32 %v362, 4294901760
        %v4390 = vsub.f32 %v362, %v4389
        %v4391 = vand.u32 %v4390, 4294901760
        %4392 = vmatpush1.msra.mxu0 %v4391
        %4393 = vmatprep.subr.mxu0 0.0
        %v4394 = vand.u32 %v363, 4294901760
        %v4395 = vsub.f32 %v363, %v4394
        %v4396 = vand.u32 %v4395, 4294901760
        %4397 = vmatpush1.msra.mxu0 %v4396
        %4398 = vmatprep.subr.mxu0 0.0
        %v4399 = vand.u32 %v364, 4294901760
        %v4400 = vsub.f32 %v364, %v4399
        %v4401 = vand.u32 %v4400, 4294901760
        %4402 = vmatpush1.msra.mxu0 %v4401
        %4403 = vmatprep.subr.mxu0 0.0
        %v4404 = vand.u32 %v365, 4294901760
        %v4405 = vsub.f32 %v365, %v4404
        %v4406 = vand.u32 %v4405, 4294901760
        %4407 = vmatpush1.msra.mxu0 %v4406
        %4408 = vmatprep.subr.mxu0 0.0
        %v4409 = vand.u32 %v366, 4294901760
        %v4410 = vsub.f32 %v366, %v4409
        %v4411 = vand.u32 %v4410, 4294901760
        %4412 = vmatpush1.msra.mxu0 %v4411
        %4413 = vmatprep.subr.mxu0 0.0
        %v4414 = vand.u32 %v367, 4294901760
        %v4415 = vsub.f32 %v367, %v4414
        %v4416 = vand.u32 %v4415, 4294901760
        %4417 = vmatpush1.msra.mxu0 %v4416
        %4418 = vmatprep.subr.mxu0 0.0
        %v4419 = vand.u32 %v368, 4294901760
        %v4420 = vsub.f32 %v368, %v4419
        %v4421 = vand.u32 %v4420, 4294901760
        %4422 = vmatpush1.msra.mxu0 %v4421
        %4423 = vmatprep.subr.mxu0 0.0
        %v4424 = vand.u32 %v369, 4294901760
        %v4425 = vsub.f32 %v369, %v4424
        %v4426 = vand.u32 %v4425, 4294901760
        %4427 = vmatpush1.msra.mxu0 %v4426
        %4428 = vmatprep.subr.mxu0 0.0
        %v4429 = vand.u32 %v370, 4294901760
        %v4430 = vsub.f32 %v370, %v4429
        %v4431 = vand.u32 %v4430, 4294901760
        %4432 = vmatpush1.msra.mxu0 %v4431
        %4433 = vmatprep.subr.mxu0 0.0
        %v4434 = vand.u32 %v371, 4294901760
        %v4435 = vsub.f32 %v371, %v4434
        %v4436 = vand.u32 %v4435, 4294901760
        %4437 = vmatpush1.msra.mxu0 %v4436
        %4438 = vmatprep.subr.mxu0 0.0
        %v4439 = vand.u32 %v372, 4294901760
        %v4440 = vsub.f32 %v372, %v4439
        %v4441 = vand.u32 %v4440, 4294901760
        %4442 = vmatpush1.msra.mxu0 %v4441
        %4443 = vmatprep.subr.mxu0 0.0
        %v4444 = vand.u32 %v373, 4294901760
        %v4445 = vsub.f32 %v373, %v4444
        %v4446 = vand.u32 %v4445, 4294901760
        %4447 = vmatpush1.msra.mxu0 %v4446
        %4448 = vmatprep.subr.mxu0 0.0
        %v4449 = vand.u32 %v374, 4294901760
        %v4450 = vsub.f32 %v374, %v4449
        %v4451 = vand.u32 %v4450, 4294901760
        %4452 = vmatpush1.msra.mxu0 %v4451
        %4453 = vmatprep.subr.mxu0 0.0
        %v4454 = vand.u32 %v375, 4294901760
        %v4455 = vsub.f32 %v375, %v4454
        %v4456 = vand.u32 %v4455, 4294901760
        %4457 = vmatpush1.msra.mxu0 %v4456
        %4458 = vmatprep.subr.mxu0 0.0
        %v4459 = vand.u32 %v376, 4294901760
        %v4460 = vsub.f32 %v376, %v4459
        %v4461 = vand.u32 %v4460, 4294901760
        %4462 = vmatpush1.msra.mxu0 %v4461
        %v4463 = vand.u32 %v3712, 4294901760
        %4464 = vmatprep.mubr.f32.mxu0 %v4463
        %v4465 = vand.u32 %v3711, 4294901760
        %4466 = vmatmul.mubr.f32.gmra.mrb[0].mxu0 %v4465
        %v4467 = vpop.f32.mrb[0].mxu0
        %v4468 = vadd.f32 %v4300, %v4467
        %v4469 = vpop.f32.mrb[0].mxu0
        %4470 = vdwg.mxu0
        %4471 = vmatprep.subr.mxu0 0.0
        %v4472 = vand.u32 %v345, 4294901760
        %4473 = vmatpush1.msra.mxu0 %v4472
        %4474 = vmatprep.subr.mxu0 0.0
        %v4475 = vand.u32 %v346, 4294901760
        %4476 = vmatpush1.msra.mxu0 %v4475
        %4477 = vmatprep.subr.mxu0 0.0
        %v4478 = vand.u32 %v347, 4294901760
        %4479 = vmatpush1.msra.mxu0 %v4478
        %4480 = vmatprep.subr.mxu0 0.0
        %v4481 = vand.u32 %v348, 4294901760
        %4482 = vmatpush1.msra.mxu0 %v4481
        %4483 = vmatprep.subr.mxu0 0.0
        %v4484 = vand.u32 %v349, 4294901760
        %4485 = vmatpush1.msra.mxu0 %v4484
        %4486 = vmatprep.subr.mxu0 0.0
        %v4487 = vand.u32 %v350, 4294901760
        %4488 = vmatpush1.msra.mxu0 %v4487
        %4489 = vmatprep.subr.mxu0 0.0
        %v4490 = vand.u32 %v351, 4294901760
        %4491 = vmatpush1.msra.mxu0 %v4490
        %4492 = vmatprep.subr.mxu0 0.0
        %v4493 = vand.u32 %v352, 4294901760
        %4494 = vmatpush1.msra.mxu0 %v4493
        %4495 = vmatprep.subr.mxu0 0.0
        %v4496 = vand.u32 %v353, 4294901760
        %4497 = vmatpush1.msra.mxu0 %v4496
        %4498 = vmatprep.subr.mxu0 0.0
        %v4499 = vand.u32 %v354, 4294901760
        %4500 = vmatpush1.msra.mxu0 %v4499
        %4501 = vmatprep.subr.mxu0 0.0
        %v4502 = vand.u32 %v355, 4294901760
        %4503 = vmatpush1.msra.mxu0 %v4502
        %4504 = vmatprep.subr.mxu0 0.0
        %v4505 = vand.u32 %v356, 4294901760
        %4506 = vmatpush1.msra.mxu0 %v4505
        %4507 = vmatprep.subr.mxu0 0.0
        %v4508 = vand.u32 %v357, 4294901760
        %4509 = vmatpush1.msra.mxu0 %v4508
        %4510 = vmatprep.subr.mxu0 0.0
        %v4511 = vand.u32 %v358, 4294901760
        %4512 = vmatpush1.msra.mxu0 %v4511
        %4513 = vmatprep.subr.mxu0 0.0
        %v4514 = vand.u32 %v359, 4294901760
        %4515 = vmatpush1.msra.mxu0 %v4514
        %4516 = vmatprep.subr.mxu0 0.0
        %v4517 = vand.u32 %v360, 4294901760
        %4518 = vmatpush1.msra.mxu0 %v4517
        %4519 = vmatprep.subr.mxu0 0.0
        %v4520 = vand.u32 %v361, 4294901760
        %4521 = vmatpush1.msra.mxu0 %v4520
        %4522 = vmatprep.subr.mxu0 0.0
        %v4523 = vand.u32 %v362, 4294901760
        %4524 = vmatpush1.msra.mxu0 %v4523
        %4525 = vmatprep.subr.mxu0 0.0
        %v4526 = vand.u32 %v363, 4294901760
        %4527 = vmatpush1.msra.mxu0 %v4526
        %4528 = vmatprep.subr.mxu0 0.0
        %v4529 = vand.u32 %v364, 4294901760
        %4530 = vmatpush1.msra.mxu0 %v4529
        %4531 = vmatprep.subr.mxu0 0.0
        %v4532 = vand.u32 %v365, 4294901760
        %4533 = vmatpush1.msra.mxu0 %v4532
        %4534 = vmatprep.subr.mxu0 0.0
        %v4535 = vand.u32 %v366, 4294901760
        %4536 = vmatpush1.msra.mxu0 %v4535
        %4537 = vmatprep.subr.mxu0 0.0
        %v4538 = vand.u32 %v367, 4294901760
        %4539 = vmatpush1.msra.mxu0 %v4538
        %4540 = vmatprep.subr.mxu0 0.0
        %v4541 = vand.u32 %v368, 4294901760
        %4542 = vmatpush1.msra.mxu0 %v4541
        %4543 = vmatprep.subr.mxu0 0.0
        %v4544 = vand.u32 %v369, 4294901760
        %4545 = vmatpush1.msra.mxu0 %v4544
        %4546 = vmatprep.subr.mxu0 0.0
        %v4547 = vand.u32 %v370, 4294901760
        %4548 = vmatpush1.msra.mxu0 %v4547
        %4549 = vmatprep.subr.mxu0 0.0
        %v4550 = vand.u32 %v371, 4294901760
        %4551 = vmatpush1.msra.mxu0 %v4550
        %4552 = vmatprep.subr.mxu0 0.0
        %v4553 = vand.u32 %v372, 4294901760
        %4554 = vmatpush1.msra.mxu0 %v4553
        %4555 = vmatprep.subr.mxu0 0.0
        %v4556 = vand.u32 %v373, 4294901760
        %4557 = vmatpush1.msra.mxu0 %v4556
        %4558 = vmatprep.subr.mxu0 0.0
        %v4559 = vand.u32 %v374, 4294901760
        %4560 = vmatpush1.msra.mxu0 %v4559
        %4561 = vmatprep.subr.mxu0 0.0
        %v4562 = vand.u32 %v375, 4294901760
        %4563 = vmatpush1.msra.mxu0 %v4562
        %4564 = vmatprep.subr.mxu0 0.0
        %v4565 = vand.u32 %v376, 4294901760
        %4566 = vmatpush1.msra.mxu0 %v4565
        %v4567 = vand.u32 %v3712, 4294901760
        %4568 = vmatprep.mubr.f32.mxu0 %v4567
        %v4569 = vand.u32 %v3711, 4294901760
        %4570 = vmatmul.mubr.f32.gmra.mrb[0].mxu0 %v4569
        %v4571 = vpop.f32.mrb[0].mxu0
        %v4572 = vadd.f32 %v4468, %v4571
        %v4573 = vpop.f32.mrb[0].mxu0
        %4574 = vdwg.mxu0
        %4575 = vmatprep.subr.mxu0 0.0
        %v4576 = vand.u32 %v4572, 4294901760
        %4577 = vmatpush1.msra.mxu0 %v4576
        %4578 = vmatprep.subr.mxu0 0.0
        %4579 = vmatpush1.msra.mxu0 0.0
        %4580 = vmatprep.subr.mxu0 0.0
        %4581 = vmatpush1.msra.mxu0 0.0
        %4582 = vmatprep.subr.mxu0 0.0
        %4583 = vmatpush1.msra.mxu0 0.0
        %4584 = vmatprep.subr.mxu0 0.0
        %4585 = vmatpush1.msra.mxu0 0.0
        %4586 = vmatprep.subr.mxu0 0.0
        %4587 = vmatpush1.msra.mxu0 0.0
        %4588 = vmatprep.subr.mxu0 0.0
        %4589 = vmatpush1.msra.mxu0 0.0
        %4590 = vmatprep.subr.mxu0 0.0
        %4591 = vmatpush1.msra.mxu0 0.0
        %4592 = vmatprep.subr.mxu0 0.0
        %4593 = vmatpush1.msra.mxu0 0.0
        %4594 = vmatprep.subr.mxu0 0.0
        %4595 = vmatpush1.msra.mxu0 0.0
        %4596 = vmatprep.subr.mxu0 0.0
        %4597 = vmatpush1.msra.mxu0 0.0
        %4598 = vmatprep.subr.mxu0 0.0
        %4599 = vmatpush1.msra.mxu0 0.0
        %4600 = vmatprep.subr.mxu0 0.0
        %4601 = vmatpush1.msra.mxu0 0.0
        %4602 = vmatprep.subr.mxu0 0.0
        %4603 = vmatpush1.msra.mxu0 0.0
        %4604 = vmatprep.subr.mxu0 0.0
        %4605 = vmatpush1.msra.mxu0 0.0
        %4606 = vmatprep.subr.mxu0 0.0
        %4607 = vmatpush1.msra.mxu0 0.0
        %4608 = vmatprep.subr.mxu0 0.0
        %4609 = vmatpush1.msra.mxu0 0.0
        %4610 = vmatprep.subr.mxu0 0.0
        %4611 = vmatpush1.msra.mxu0 0.0
        %4612 = vmatprep.subr.mxu0 0.0
        %4613 = vmatpush1.msra.mxu0 0.0
        %4614 = vmatprep.subr.mxu0 0.0
        %4615 = vmatpush1.msra.mxu0 0.0
        %4616 = vmatprep.subr.mxu0 0.0
        %4617 = vmatpush1.msra.mxu0 0.0
        %4618 = vmatprep.subr.mxu0 0.0
        %4619 = vmatpush1.msra.mxu0 0.0
        %4620 = vmatprep.subr.mxu0 0.0
        %4621 = vmatpush1.msra.mxu0 0.0
        %4622 = vmatprep.subr.mxu0 0.0
        %4623 = vmatpush1.msra.mxu0 0.0
        %4624 = vmatprep.subr.mxu0 0.0
        %4625 = vmatpush1.msra.mxu0 0.0
        %4626 = vmatprep.subr.mxu0 0.0
        %4627 = vmatpush1.msra.mxu0 0.0
        %4628 = vmatprep.subr.mxu0 0.0
        %4629 = vmatpush1.msra.mxu0 0.0
        %4630 = vmatprep.subr.mxu0 0.0
        %4631 = vmatpush1.msra.mxu0 0.0
        %4632 = vmatprep.subr.mxu0 0.0
        %4633 = vmatpush1.msra.mxu0 0.0
        %4634 = vmatprep.subr.mxu0 0.0
        %4635 = vmatpush1.msra.mxu0 0.0
        %4636 = vmatprep.subr.mxu0 0.0
        %4637 = vmatpush1.msra.mxu0 0.0
        %4638 = vmatprep.subr.mxu0 0.0
        %4639 = vmatpush1.msra.mxu0 0.0
        %4640 = vmatprep.mubr.f32.mxu0 0.0
        %v4641 = vand.u32 %v1772, 4294901760
        %v4642 = vsub.f32 %v1772, %v4641
        %v4643 = vand.u32 %v4642, 4294901760
        %v4644 = vsub.f32 %v4642, %v4643
        %v4645 = vand.u32 %v4644, 4294901760
        %4646 = vmatmul.mubr.f32.gmra.mrb[0].mxu0 %v4645
        %v4647 = vpop.f32.mrb[0].mxu0
        %v4648 = vadd.f32 %v1769, %v4647
        %v4649 = vpop.f32.mrb[0].mxu0
        %4650 = vdwg.mxu0
        %4651 = vmatprep.subr.mxu0 0.0
        %v4652 = vand.u32 %v4572, 4294901760
        %v4653 = vsub.f32 %v4572, %v4652
        %v4654 = vand.u32 %v4653, 4294901760
        %v4655 = vsub.f32 %v4653, %v4654
        %v4656 = vand.u32 %v4655, 4294901760
        %4657 = vmatpush1.msra.mxu0 %v4656
        %4658 = vmatprep.subr.mxu0 0.0
        %4659 = vmatpush1.msra.mxu0 0.0
        %4660 = vmatprep.subr.mxu0 0.0
        %4661 = vmatpush1.msra.mxu0 0.0
        %4662 = vmatprep.subr.mxu0 0.0
        %4663 = vmatpush1.msra.mxu0 0.0
        %4664 = vmatprep.subr.mxu0 0.0
        %4665 = vmatpush1.msra.mxu0 0.0
        %4666 = vmatprep.subr.mxu0 0.0
        %4667 = vmatpush1.msra.mxu0 0.0
        %4668 = vmatprep.subr.mxu0 0.0
        %4669 = vmatpush1.msra.mxu0 0.0
        %4670 = vmatprep.subr.mxu0 0.0
        %4671 = vmatpush1.msra.mxu0 0.0
        %4672 = vmatprep.subr.mxu0 0.0
        %4673 = vmatpush1.msra.mxu0 0.0
        %4674 = vmatprep.subr.mxu0 0.0
        %4675 = vmatpush1.msra.mxu0 0.0
        %4676 = vmatprep.subr.mxu0 0.0
        %4677 = vmatpush1.msra.mxu0 0.0
        %4678 = vmatprep.subr.mxu0 0.0
        %4679 = vmatpush1.msra.mxu0 0.0
        %4680 = vmatprep.subr.mxu0 0.0
        %4681 = vmatpush1.msra.mxu0 0.0
        %4682 = vmatprep.subr.mxu0 0.0
        %4683 = vmatpush1.msra.mxu0 0.0
        %4684 = vmatprep.subr.mxu0 0.0
        %4685 = vmatpush1.msra.mxu0 0.0
        %4686 = vmatprep.subr.mxu0 0.0
        %4687 = vmatpush1.msra.mxu0 0.0
        %4688 = vmatprep.subr.mxu0 0.0
        %4689 = vmatpush1.msra.mxu0 0.0
        %4690 = vmatprep.subr.mxu0 0.0
        %4691 = vmatpush1.msra.mxu0 0.0
        %4692 = vmatprep.subr.mxu0 0.0
        %4693 = vmatpush1.msra.mxu0 0.0
        %4694 = vmatprep.subr.mxu0 0.0
        %4695 = vmatpush1.msra.mxu0 0.0
        %4696 = vmatprep.subr.mxu0 0.0
        %4697 = vmatpush1.msra.mxu0 0.0
        %4698 = vmatprep.subr.mxu0 0.0
        %4699 = vmatpush1.msra.mxu0 0.0
        %4700 = vmatprep.subr.mxu0 0.0
        %4701 = vmatpush1.msra.mxu0 0.0
        %4702 = vmatprep.subr.mxu0 0.0
        %4703 = vmatpush1.msra.mxu0 0.0
        %4704 = vmatprep.subr.mxu0 0.0
        %4705 = vmatpush1.msra.mxu0 0.0
        %4706 = vmatprep.subr.mxu0 0.0
        %4707 = vmatpush1.msra.mxu0 0.0
        %4708 = vmatprep.subr.mxu0 0.0
        %4709 = vmatpush1.msra.mxu0 0.0
        %4710 = vmatprep.subr.mxu0 0.0
        %4711 = vmatpush1.msra.mxu0 0.0
        %4712 = vmatprep.subr.mxu0 0.0
        %4713 = vmatpush1.msra.mxu0 0.0
        %4714 = vmatprep.subr.mxu0 0.0
        %4715 = vmatpush1.msra.mxu0 0.0
        %4716 = vmatprep.subr.mxu0 0.0
        %4717 = vmatpush1.msra.mxu0 0.0
        %4718 = vmatprep.subr.mxu0 0.0
        %4719 = vmatpush1.msra.mxu0 0.0
        %4720 = vmatprep.mubr.f32.mxu0 0.0
        %v4721 = vand.u32 %v1772, 4294901760
        %4722 = vmatmul.mubr.f32.gmra.mrb[0].mxu0 %v4721
        %v4723 = vpop.f32.mrb[0].mxu0
        %v4724 = vadd.f32 %v4648, %v4723
        %v4725 = vpop.f32.mrb[0].mxu0
        %4726 = vdwg.mxu0
        %4727 = vmatprep.subr.mxu0 0.0
        %v4728 = vand.u32 %v4572, 4294901760
        %v4729 = vsub.f32 %v4572, %v4728
        %4730 = vmatpush1.msra.mxu0 %v4729
        %4731 = vmatprep.subr.mxu0 0.0
        %4732 = vmatpush1.msra.mxu0 0.0
        %4733 = vmatprep.subr.mxu0 0.0
        %4734 = vmatpush1.msra.mxu0 0.0
        %4735 = vmatprep.subr.mxu0 0.0
        %4736 = vmatpush1.msra.mxu0 0.0
        %4737 = vmatprep.subr.mxu0 0.0
        %4738 = vmatpush1.msra.mxu0 0.0
        %4739 = vmatprep.subr.mxu0 0.0
        %4740 = vmatpush1.msra.mxu0 0.0
        %4741 = vmatprep.subr.mxu0 0.0
        %4742 = vmatpush1.msra.mxu0 0.0
        %4743 = vmatprep.subr.mxu0 0.0
        %4744 = vmatpush1.msra.mxu0 0.0
        %4745 = vmatprep.subr.mxu0 0.0
        %4746 = vmatpush1.msra.mxu0 0.0
        %4747 = vmatprep.subr.mxu0 0.0
        %4748 = vmatpush1.msra.mxu0 0.0
        %4749 = vmatprep.subr.mxu0 0.0
        %4750 = vmatpush1.msra.mxu0 0.0
        %4751 = vmatprep.subr.mxu0 0.0
        %4752 = vmatpush1.msra.mxu0 0.0
        %4753 = vmatprep.subr.mxu0 0.0
        %4754 = vmatpush1.msra.mxu0 0.0
        %4755 = vmatprep.subr.mxu0 0.0
        %4756 = vmatpush1.msra.mxu0 0.0
        %4757 = vmatprep.subr.mxu0 0.0
        %4758 = vmatpush1.msra.mxu0 0.0
        %4759 = vmatprep.subr.mxu0 0.0
        %4760 = vmatpush1.msra.mxu0 0.0
        %4761 = vmatprep.subr.mxu0 0.0
        %4762 = vmatpush1.msra.mxu0 0.0
        %4763 = vmatprep.subr.mxu0 0.0
        %4764 = vmatpush1.msra.mxu0 0.0
        %4765 = vmatprep.subr.mxu0 0.0
        %4766 = vmatpush1.msra.mxu0 0.0
        %4767 = vmatprep.subr.mxu0 0.0
        %4768 = vmatpush1.msra.mxu0 0.0
        %4769 = vmatprep.subr.mxu0 0.0
        %4770 = vmatpush1.msra.mxu0 0.0
        %4771 = vmatprep.subr.mxu0 0.0
        %4772 = vmatpush1.msra.mxu0 0.0
        %4773 = vmatprep.subr.mxu0 0.0
        %4774 = vmatpush1.msra.mxu0 0.0
        %4775 = vmatprep.subr.mxu0 0.0
        %4776 = vmatpush1.msra.mxu0 0.0
        %4777 = vmatprep.subr.mxu0 0.0
        %4778 = vmatpush1.msra.mxu0 0.0
        %4779 = vmatprep.subr.mxu0 0.0
        %4780 = vmatpush1.msra.mxu0 0.0
        %4781 = vmatprep.subr.mxu0 0.0
        %4782 = vmatpush1.msra.mxu0 0.0
        %4783 = vmatprep.subr.mxu0 0.0
        %4784 = vmatpush1.msra.mxu0 0.0
        %4785 = vmatprep.subr.mxu0 0.0
        %4786 = vmatpush1.msra.mxu0 0.0
        %4787 = vmatprep.subr.mxu0 0.0
        %4788 = vmatpush1.msra.mxu0 0.0
        %4789 = vmatprep.subr.mxu0 0.0
        %4790 = vmatpush1.msra.mxu0 0.0
        %4791 = vmatprep.subr.mxu0 0.0
        %4792 = vmatpush1.msra.mxu0 0.0
        %4793 = vmatprep.mubr.f32.mxu0 0.0
        %v4794 = vand.u32 %v1772, 4294901760
        %v4795 = vsub.f32 %v1772, %v4794
        %4796 = vmatmul.mubr.f32.gmra.mrb[0].mxu0 %v4795
        %v4797 = vpop.f32.mrb[0].mxu0
        %v4798 = vadd.f32 %v4724, %v4797
        %v4799 = vpop.f32.mrb[0].mxu0
        %4800 = vdwg.mxu0
        %4801 = vmatprep.subr.mxu0 0.0
        %v4802 = vand.u32 %v4572, 4294901760
        %4803 = vmatpush1.msra.mxu0 %v4802
        %4804 = vmatprep.subr.mxu0 0.0
        %4805 = vmatpush1.msra.mxu0 0.0
        %4806 = vmatprep.subr.mxu0 0.0
        %4807 = vmatpush1.msra.mxu0 0.0
        %4808 = vmatprep.subr.mxu0 0.0
        %4809 = vmatpush1.msra.mxu0 0.0
        %4810 = vmatprep.subr.mxu0 0.0
        %4811 = vmatpush1.msra.mxu0 0.0
        %4812 = vmatprep.subr.mxu0 0.0
        %4813 = vmatpush1.msra.mxu0 0.0
        %4814 = vmatprep.subr.mxu0 0.0
        %4815 = vmatpush1.msra.mxu0 0.0
        %4816 = vmatprep.subr.mxu0 0.0
        %4817 = vmatpush1.msra.mxu0 0.0
        %4818 = vmatprep.subr.mxu0 0.0
        %4819 = vmatpush1.msra.mxu0 0.0
        %4820 = vmatprep.subr.mxu0 0.0
        %4821 = vmatpush1.msra.mxu0 0.0
        %4822 = vmatprep.subr.mxu0 0.0
        %4823 = vmatpush1.msra.mxu0 0.0
        %4824 = vmatprep.subr.mxu0 0.0
        %4825 = vmatpush1.msra.mxu0 0.0
        %4826 = vmatprep.subr.mxu0 0.0
        %4827 = vmatpush1.msra.mxu0 0.0
        %4828 = vmatprep.subr.mxu0 0.0
        %4829 = vmatpush1.msra.mxu0 0.0
        %4830 = vmatprep.subr.mxu0 0.0
        %4831 = vmatpush1.msra.mxu0 0.0
        %4832 = vmatprep.subr.mxu0 0.0
        %4833 = vmatpush1.msra.mxu0 0.0
        %4834 = vmatprep.subr.mxu0 0.0
        %4835 = vmatpush1.msra.mxu0 0.0
        %4836 = vmatprep.subr.mxu0 0.0
        %4837 = vmatpush1.msra.mxu0 0.0
        %4838 = vmatprep.subr.mxu0 0.0
        %4839 = vmatpush1.msra.mxu0 0.0
        %4840 = vmatprep.subr.mxu0 0.0
        %4841 = vmatpush1.msra.mxu0 0.0
        %4842 = vmatprep.subr.mxu0 0.0
        %4843 = vmatpush1.msra.mxu0 0.0
        %4844 = vmatprep.subr.mxu0 0.0
        %4845 = vmatpush1.msra.mxu0 0.0
        %4846 = vmatprep.subr.mxu0 0.0
        %4847 = vmatpush1.msra.mxu0 0.0
        %4848 = vmatprep.subr.mxu0 0.0
        %4849 = vmatpush1.msra.mxu0 0.0
        %4850 = vmatprep.subr.mxu0 0.0
        %4851 = vmatpush1.msra.mxu0 0.0
        %4852 = vmatprep.subr.mxu0 0.0
        %4853 = vmatpush1.msra.mxu0 0.0
        %4854 = vmatprep.subr.mxu0 0.0
        %4855 = vmatpush1.msra.mxu0 0.0
        %4856 = vmatprep.subr.mxu0 0.0
        %4857 = vmatpush1.msra.mxu0 0.0
        %4858 = vmatprep.subr.mxu0 0.0
        %4859 = vmatpush1.msra.mxu0 0.0
        %4860 = vmatprep.subr.mxu0 0.0
        %4861 = vmatpush1.msra.mxu0 0.0
        %4862 = vmatprep.subr.mxu0 0.0
        %4863 = vmatpush1.msra.mxu0 0.0
        %4864 = vmatprep.subr.mxu0 0.0
        %4865 = vmatpush1.msra.mxu0 0.0
        %4866 = vmatprep.mubr.f32.mxu0 0.0
        %v4867 = vand.u32 %v1772, 4294901760
        %v4868 = vsub.f32 %v1772, %v4867
        %v4869 = vand.u32 %v4868, 4294901760
        %4870 = vmatmul.mubr.f32.gmra.mrb[0].mxu0 %v4869
        %v4871 = vpop.f32.mrb[0].mxu0
        %v4872 = vadd.f32 %v4798, %v4871
        %v4873 = vpop.f32.mrb[0].mxu0
        %4874 = vdwg.mxu0
        %4875 = vmatprep.subr.mxu0 0.0
        %v4876 = vand.u32 %v4572, 4294901760
        %v4877 = vsub.f32 %v4572, %v4876
        %v4878 = vand.u32 %v4877, 4294901760
        %4879 = vmatpush1.msra.mxu0 %v4878
        %4880 = vmatprep.subr.mxu0 0.0
        %4881 = vmatpush1.msra.mxu0 0.0
        %4882 = vmatprep.subr.mxu0 0.0
        %4883 = vmatpush1.msra.mxu0 0.0
        %4884 = vmatprep.subr.mxu0 0.0
        %4885 = vmatpush1.msra.mxu0 0.0
        %4886 = vmatprep.subr.mxu0 0.0
        %4887 = vmatpush1.msra.mxu0 0.0
        %4888 = vmatprep.subr.mxu0 0.0
        %4889 = vmatpush1.msra.mxu0 0.0
        %4890 = vmatprep.subr.mxu0 0.0
        %4891 = vmatpush1.msra.mxu0 0.0
        %4892 = vmatprep.subr.mxu0 0.0
        %4893 = vmatpush1.msra.mxu0 0.0
        %4894 = vmatprep.subr.mxu0 0.0
        %4895 = vmatpush1.msra.mxu0 0.0
        %4896 = vmatprep.subr.mxu0 0.0
        %4897 = vmatpush1.msra.mxu0 0.0
        %4898 = vmatprep.subr.mxu0 0.0
        %4899 = vmatpush1.msra.mxu0 0.0
        %4900 = vmatprep.subr.mxu0 0.0
        %4901 = vmatpush1.msra.mxu0 0.0
        %4902 = vmatprep.subr.mxu0 0.0
        %4903 = vmatpush1.msra.mxu0 0.0
        %4904 = vmatprep.subr.mxu0 0.0
        %4905 = vmatpush1.msra.mxu0 0.0
        %4906 = vmatprep.subr.mxu0 0.0
        %4907 = vmatpush1.msra.mxu0 0.0
        %4908 = vmatprep.subr.mxu0 0.0
        %4909 = vmatpush1.msra.mxu0 0.0
        %4910 = vmatprep.subr.mxu0 0.0
        %4911 = vmatpush1.msra.mxu0 0.0
        %4912 = vmatprep.subr.mxu0 0.0
        %4913 = vmatpush1.msra.mxu0 0.0
        %4914 = vmatprep.subr.mxu0 0.0
        %4915 = vmatpush1.msra.mxu0 0.0
        %4916 = vmatprep.subr.mxu0 0.0
        %4917 = vmatpush1.msra.mxu0 0.0
        %4918 = vmatprep.subr.mxu0 0.0
        %4919 = vmatpush1.msra.mxu0 0.0
        %4920 = vmatprep.subr.mxu0 0.0
        %4921 = vmatpush1.msra.mxu0 0.0
        %4922 = vmatprep.subr.mxu0 0.0
        %4923 = vmatpush1.msra.mxu0 0.0
        %4924 = vmatprep.subr.mxu0 0.0
        %4925 = vmatpush1.msra.mxu0 0.0
        %4926 = vmatprep.subr.mxu0 0.0
        %4927 = vmatpush1.msra.mxu0 0.0
        %4928 = vmatprep.subr.mxu0 0.0
        %4929 = vmatpush1.msra.mxu0 0.0
        %4930 = vmatprep.subr.mxu0 0.0
        %4931 = vmatpush1.msra.mxu0 0.0
        %4932 = vmatprep.subr.mxu0 0.0
        %4933 = vmatpush1.msra.mxu0 0.0
        %4934 = vmatprep.subr.mxu0 0.0
        %4935 = vmatpush1.msra.mxu0 0.0
        %4936 = vmatprep.subr.mxu0 0.0
        %4937 = vmatpush1.msra.mxu0 0.0
        %4938 = vmatprep.subr.mxu0 0.0
        %4939 = vmatpush1.msra.mxu0 0.0
        %4940 = vmatprep.subr.mxu0 0.0
        %4941 = vmatpush1.msra.mxu0 0.0
        %4942 = vmatprep.mubr.f32.mxu0 0.0
        %v4943 = vand.u32 %v1772, 4294901760
        %4944 = vmatmul.mubr.f32.gmra.mrb[0].mxu0 %v4943
        %v4945 = vpop.f32.mrb[0].mxu0
        %v4946 = vadd.f32 %v4872, %v4945
        %v4947 = vpop.f32.mrb[0].mxu0
        %4948 = vdwg.mxu0
        %4949 = vmatprep.subr.mxu0 0.0
        %v4950 = vand.u32 %v4572, 4294901760
        %4951 = vmatpush1.msra.mxu0 %v4950
        %4952 = vmatprep.subr.mxu0 0.0
        %4953 = vmatpush1.msra.mxu0 0.0
        %4954 = vmatprep.subr.mxu0 0.0
        %4955 = vmatpush1.msra.mxu0 0.0
        %4956 = vmatprep.subr.mxu0 0.0
        %4957 = vmatpush1.msra.mxu0 0.0
        %4958 = vmatprep.subr.mxu0 0.0
        %4959 = vmatpush1.msra.mxu0 0.0
        %4960 = vmatprep.subr.mxu0 0.0
        %4961 = vmatpush1.msra.mxu0 0.0
        %4962 = vmatprep.subr.mxu0 0.0
        %4963 = vmatpush1.msra.mxu0 0.0
        %4964 = vmatprep.subr.mxu0 0.0
        %4965 = vmatpush1.msra.mxu0 0.0
        %4966 = vmatprep.subr.mxu0 0.0
        %4967 = vmatpush1.msra.mxu0 0.0
        %4968 = vmatprep.subr.mxu0 0.0
        %4969 = vmatpush1.msra.mxu0 0.0
        %4970 = vmatprep.subr.mxu0 0.0
        %4971 = vmatpush1.msra.mxu0 0.0
        %4972 = vmatprep.subr.mxu0 0.0
        %4973 = vmatpush1.msra.mxu0 0.0
        %4974 = vmatprep.subr.mxu0 0.0
        %4975 = vmatpush1.msra.mxu0 0.0
        %4976 = vmatprep.subr.mxu0 0.0
        %4977 = vmatpush1.msra.mxu0 0.0
        %4978 = vmatprep.subr.mxu0 0.0
        %4979 = vmatpush1.msra.mxu0 0.0
        %4980 = vmatprep.subr.mxu0 0.0
        %4981 = vmatpush1.msra.mxu0 0.0
        %4982 = vmatprep.subr.mxu0 0.0
        %4983 = vmatpush1.msra.mxu0 0.0
        %4984 = vmatprep.subr.mxu0 0.0
        %4985 = vmatpush1.msra.mxu0 0.0
        %4986 = vmatprep.subr.mxu0 0.0
        %4987 = vmatpush1.msra.mxu0 0.0
        %4988 = vmatprep.subr.mxu0 0.0
        %4989 = vmatpush1.msra.mxu0 0.0
        %4990 = vmatprep.subr.mxu0 0.0
        %4991 = vmatpush1.msra.mxu0 0.0
        %4992 = vmatprep.subr.mxu0 0.0
        %4993 = vmatpush1.msra.mxu0 0.0
        %4994 = vmatprep.subr.mxu0 0.0
        %4995 = vmatpush1.msra.mxu0 0.0
        %4996 = vmatprep.subr.mxu0 0.0
        %4997 = vmatpush1.msra.mxu0 0.0
        %4998 = vmatprep.subr.mxu0 0.0
        %4999 = vmatpush1.msra.mxu0 0.0
        %5000 = vmatprep.subr.mxu0 0.0
        %5001 = vmatpush1.msra.mxu0 0.0
        %5002 = vmatprep.subr.mxu0 0.0
        %5003 = vmatpush1.msra.mxu0 0.0
        %5004 = vmatprep.subr.mxu0 0.0
        %5005 = vmatpush1.msra.mxu0 0.0
        %5006 = vmatprep.subr.mxu0 0.0
        %5007 = vmatpush1.msra.mxu0 0.0
        %5008 = vmatprep.subr.mxu0 0.0
        %5009 = vmatpush1.msra.mxu0 0.0
        %5010 = vmatprep.subr.mxu0 0.0
        %5011 = vmatpush1.msra.mxu0 0.0
        %5012 = vmatprep.subr.mxu0 0.0
        %5013 = vmatpush1.msra.mxu0 0.0
        %5014 = vmatprep.mubr.f32.mxu0 0.0
        %v5015 = vand.u32 %v1772, 4294901760
        %5016 = vmatmul.mubr.f32.gmra.mrb[0].mxu0 %v5015
        %v5017 = vpop.f32.mrb[0].mxu0
        %v5018 = vadd.f32 %v4946, %v5017
        %v5019 = vpop.f32.mrb[0].mxu0
        %5020 = vdwg.mxu0
        %v5021 = vsel %vm2220, %v5018, 0.0
        %5022 = vadd.xlane.f32.xlu0 %v5021
        %v5023 = vpop.xlane.xlu0 %5022
        %v5024 = vrot.slane %v5023, 4
        %v5025 = vadd.f32 %v5023, %v5024
        %v5026 = vrot.slane %v5025, 2
        %v5027 = vadd.f32 %v5025, %v5026
        %v5028 = vrot.slane %v5027, 1
        %v5029 = vadd.f32 %v5027, %v5028
        %s5030 = vtos %v5029
        %v5031 = vrcp.pop 8.0
        %s5032 = vtos %v5031
        %s5033 = smul.f32 %s5030, %s5032
        %v5034 = vstv %s5033
        %v5035 = vsub.f32 %v5018, %v5034
        %v5036 = vmul.f32 %v5035, %v5035
        %v5037 = vsel %vm2220, %v5036, 0.0
        %5038 = vadd.xlane.f32.xlu0 %v5037
        %v5039 = vpop.xlane.xlu0 %5038
        %v5040 = vrot.slane %v5039, 4
        %v5041 = vadd.f32 %v5039, %v5040
        %v5042 = vrot.slane %v5041, 2
        %v5043 = vadd.f32 %v5041, %v5042
        %v5044 = vrot.slane %v5043, 1
        %v5045 = vadd.f32 %v5043, %v5044
        %s5046 = vtos %v5045
        %v5047 = vrcp.pop 8.0
        %s5048 = vtos %v5047
        %s5049 = smul.f32 %s5046, %s5048
        %s5050 = sadd.f32 %s5049, 1e-05
        %v5051 = vstv %s5050
        %v5052 = vrsqrt.pop %v5051
        %s5053 = vtos %v5052
        %v5054 = vstv %s5053
        %v5055 = vmul.f32 %v5035, %v5054
        %v5056 = vmax.f32 %v5055, 0.0
        %v5058 = vsel %vm2266, %v5056, 0
        %5060 = vmatprep.subr.mxu0 0.0
        %v5061 = vand.u32 %v5058, 4294901760
        %5062 = vmatpush1.msra.mxu0 %v5061
        %5063 = vmatprep.subr.mxu0 0.0
        %5064 = vmatpush1.msra.mxu0 0.0
        %5065 = vmatprep.subr.mxu0 0.0
        %5066 = vmatpush1.msra.mxu0 0.0
        %5067 = vmatprep.subr.mxu0 0.0
        %5068 = vmatpush1.msra.mxu0 0.0
        %5069 = vmatprep.subr.mxu0 0.0
        %5070 = vmatpush1.msra.mxu0 0.0
        %5071 = vmatprep.subr.mxu0 0.0
        %5072 = vmatpush1.msra.mxu0 0.0
        %5073 = vmatprep.subr.mxu0 0.0
        %5074 = vmatpush1.msra.mxu0 0.0
        %5075 = vmatprep.subr.mxu0 0.0
        %5076 = vmatpush1.msra.mxu0 0.0
        %5077 = vmatprep.subr.mxu0 0.0
        %5078 = vmatpush1.msra.mxu0 0.0
        %5079 = vmatprep.subr.mxu0 0.0
        %5080 = vmatpush1.msra.mxu0 0.0
        %5081 = vmatprep.subr.mxu0 0.0
        %5082 = vmatpush1.msra.mxu0 0.0
        %5083 = vmatprep.subr.mxu0 0.0
        %5084 = vmatpush1.msra.mxu0 0.0
        %5085 = vmatprep.subr.mxu0 0.0
        %5086 = vmatpush1.msra.mxu0 0.0
        %5087 = vmatprep.subr.mxu0 0.0
        %5088 = vmatpush1.msra.mxu0 0.0
        %5089 = vmatprep.subr.mxu0 0.0
        %5090 = vmatpush1.msra.mxu0 0.0
        %5091 = vmatprep.subr.mxu0 0.0
        %5092 = vmatpush1.msra.mxu0 0.0
        %5093 = vmatprep.subr.mxu0 0.0
        %5094 = vmatpush1.msra.mxu0 0.0
        %5095 = vmatprep.subr.mxu0 0.0
        %5096 = vmatpush1.msra.mxu0 0.0
        %5097 = vmatprep.subr.mxu0 0.0
        %5098 = vmatpush1.msra.mxu0 0.0
        %5099 = vmatprep.subr.mxu0 0.0
        %5100 = vmatpush1.msra.mxu0 0.0
        %5101 = vmatprep.subr.mxu0 0.0
        %5102 = vmatpush1.msra.mxu0 0.0
        %5103 = vmatprep.subr.mxu0 0.0
        %5104 = vmatpush1.msra.mxu0 0.0
        %5105 = vmatprep.subr.mxu0 0.0
        %5106 = vmatpush1.msra.mxu0 0.0
        %5107 = vmatprep.subr.mxu0 0.0
        %5108 = vmatpush1.msra.mxu0 0.0
        %5109 = vmatprep.subr.mxu0 0.0
        %5110 = vmatpush1.msra.mxu0 0.0
        %5111 = vmatprep.subr.mxu0 0.0
        %5112 = vmatpush1.msra.mxu0 0.0
        %5113 = vmatprep.subr.mxu0 0.0
        %5114 = vmatpush1.msra.mxu0 0.0
        %5115 = vmatprep.subr.mxu0 0.0
        %5116 = vmatpush1.msra.mxu0 0.0
        %5117 = vmatprep.subr.mxu0 0.0
        %5118 = vmatpush1.msra.mxu0 0.0
        %5119 = vmatprep.subr.mxu0 0.0
        %5120 = vmatpush1.msra.mxu0 0.0
        %5121 = vmatprep.subr.mxu0 0.0
        %5122 = vmatpush1.msra.mxu0 0.0
        %5123 = vmatprep.subr.mxu0 0.0
        %5124 = vmatpush1.msra.mxu0 0.0
        %5125 = vmatprep.mubr.f32.mxu0 0.0
        %v5126 = vand.u32 %v2264, 4294901760
        %v5127 = vsub.f32 %v2264, %v5126
        %v5128 = vand.u32 %v5127, 4294901760
        %v5129 = vsub.f32 %v5127, %v5128
        %v5130 = vand.u32 %v5129, 4294901760
        %5131 = vmatmul.mubr.f32.gmra.mrb[0].mxu0 %v5130
        %v5132 = vpop.f32.mrb[0].mxu0
        %v5133 = vadd.f32 %v2260, %v5132
        %v5134 = vpop.f32.mrb[0].mxu0
        %5135 = vdwg.mxu0
        %5136 = vmatprep.subr.mxu0 0.0
        %v5137 = vand.u32 %v5058, 4294901760
        %v5138 = vsub.f32 %v5058, %v5137
        %v5139 = vand.u32 %v5138, 4294901760
        %v5140 = vsub.f32 %v5138, %v5139
        %v5141 = vand.u32 %v5140, 4294901760
        %5142 = vmatpush1.msra.mxu0 %v5141
        %5143 = vmatprep.subr.mxu0 0.0
        %5144 = vmatpush1.msra.mxu0 0.0
        %5145 = vmatprep.subr.mxu0 0.0
        %5146 = vmatpush1.msra.mxu0 0.0
        %5147 = vmatprep.subr.mxu0 0.0
        %5148 = vmatpush1.msra.mxu0 0.0
        %5149 = vmatprep.subr.mxu0 0.0
        %5150 = vmatpush1.msra.mxu0 0.0
        %5151 = vmatprep.subr.mxu0 0.0
        %5152 = vmatpush1.msra.mxu0 0.0
        %5153 = vmatprep.subr.mxu0 0.0
        %5154 = vmatpush1.msra.mxu0 0.0
        %5155 = vmatprep.subr.mxu0 0.0
        %5156 = vmatpush1.msra.mxu0 0.0
        %5157 = vmatprep.subr.mxu0 0.0
        %5158 = vmatpush1.msra.mxu0 0.0
        %5159 = vmatprep.subr.mxu0 0.0
        %5160 = vmatpush1.msra.mxu0 0.0
        %5161 = vmatprep.subr.mxu0 0.0
        %5162 = vmatpush1.msra.mxu0 0.0
        %5163 = vmatprep.subr.mxu0 0.0
        %5164 = vmatpush1.msra.mxu0 0.0
        %5165 = vmatprep.subr.mxu0 0.0
        %5166 = vmatpush1.msra.mxu0 0.0
        %5167 = vmatprep.subr.mxu0 0.0
        %5168 = vmatpush1.msra.mxu0 0.0
        %5169 = vmatprep.subr.mxu0 0.0
        %5170 = vmatpush1.msra.mxu0 0.0
        %5171 = vmatprep.subr.mxu0 0.0
        %5172 = vmatpush1.msra.mxu0 0.0
        %5173 = vmatprep.subr.mxu0 0.0
        %5174 = vmatpush1.msra.mxu0 0.0
        %5175 = vmatprep.subr.mxu0 0.0
        %5176 = vmatpush1.msra.mxu0 0.0
        %5177 = vmatprep.subr.mxu0 0.0
        %5178 = vmatpush1.msra.mxu0 0.0
        %5179 = vmatprep.subr.mxu0 0.0
        %5180 = vmatpush1.msra.mxu0 0.0
        %5181 = vmatprep.subr.mxu0 0.0
        %5182 = vmatpush1.msra.mxu0 0.0
        %5183 = vmatprep.subr.mxu0 0.0
        %5184 = vmatpush1.msra.mxu0 0.0
        %5185 = vmatprep.subr.mxu0 0.0
        %5186 = vmatpush1.msra.mxu0 0.0
        %5187 = vmatprep.subr.mxu0 0.0
        %5188 = vmatpush1.msra.mxu0 0.0
        %5189 = vmatprep.subr.mxu0 0.0
        %5190 = vmatpush1.msra.mxu0 0.0
        %5191 = vmatprep.subr.mxu0 0.0
        %5192 = vmatpush1.msra.mxu0 0.0
        %5193 = vmatprep.subr.mxu0 0.0
        %5194 = vmatpush1.msra.mxu0 0.0
        %5195 = vmatprep.subr.mxu0 0.0
        %5196 = vmatpush1.msra.mxu0 0.0
        %5197 = vmatprep.subr.mxu0 0.0
        %5198 = vmatpush1.msra.mxu0 0.0
        %5199 = vmatprep.subr.mxu0 0.0
        %5200 = vmatpush1.msra.mxu0 0.0
        %5201 = vmatprep.subr.mxu0 0.0
        %5202 = vmatpush1.msra.mxu0 0.0
        %5203 = vmatprep.subr.mxu0 0.0
        %5204 = vmatpush1.msra.mxu0 0.0
        %5205 = vmatprep.mubr.f32.mxu0 0.0
        %v5206 = vand.u32 %v2264, 4294901760
        %5207 = vmatmul.mubr.f32.gmra.mrb[0].mxu0 %v5206
        %v5208 = vpop.f32.mrb[0].mxu0
        %v5209 = vadd.f32 %v5133, %v5208
        %v5210 = vpop.f32.mrb[0].mxu0
        %5211 = vdwg.mxu0
        %5212 = vmatprep.subr.mxu0 0.0
        %v5213 = vand.u32 %v5058, 4294901760
        %v5214 = vsub.f32 %v5058, %v5213
        %5215 = vmatpush1.msra.mxu0 %v5214
        %5216 = vmatprep.subr.mxu0 0.0
        %5217 = vmatpush1.msra.mxu0 0.0
        %5218 = vmatprep.subr.mxu0 0.0
        %5219 = vmatpush1.msra.mxu0 0.0
        %5220 = vmatprep.subr.mxu0 0.0
        %5221 = vmatpush1.msra.mxu0 0.0
        %5222 = vmatprep.subr.mxu0 0.0
        %5223 = vmatpush1.msra.mxu0 0.0
        %5224 = vmatprep.subr.mxu0 0.0
        %5225 = vmatpush1.msra.mxu0 0.0
        %5226 = vmatprep.subr.mxu0 0.0
        %5227 = vmatpush1.msra.mxu0 0.0
        %5228 = vmatprep.subr.mxu0 0.0
        %5229 = vmatpush1.msra.mxu0 0.0
        %5230 = vmatprep.subr.mxu0 0.0
        %5231 = vmatpush1.msra.mxu0 0.0
        %5232 = vmatprep.subr.mxu0 0.0
        %5233 = vmatpush1.msra.mxu0 0.0
        %5234 = vmatprep.subr.mxu0 0.0
        %5235 = vmatpush1.msra.mxu0 0.0
        %5236 = vmatprep.subr.mxu0 0.0
        %5237 = vmatpush1.msra.mxu0 0.0
        %5238 = vmatprep.subr.mxu0 0.0
        %5239 = vmatpush1.msra.mxu0 0.0
        %5240 = vmatprep.subr.mxu0 0.0
        %5241 = vmatpush1.msra.mxu0 0.0
        %5242 = vmatprep.subr.mxu0 0.0
        %5243 = vmatpush1.msra.mxu0 0.0
        %5244 = vmatprep.subr.mxu0 0.0
        %5245 = vmatpush1.msra.mxu0 0.0
        %5246 = vmatprep.subr.mxu0 0.0
        %5247 = vmatpush1.msra.mxu0 0.0
        %5248 = vmatprep.subr.mxu0 0.0
        %5249 = vmatpush1.msra.mxu0 0.0
        %5250 = vmatprep.subr.mxu0 0.0
        %5251 = vmatpush1.msra.mxu0 0.0
        %5252 = vmatprep.subr.mxu0 0.0
        %5253 = vmatpush1.msra.mxu0 0.0
        %5254 = vmatprep.subr.mxu0 0.0
        %5255 = vmatpush1.msra.mxu0 0.0
        %5256 = vmatprep.subr.mxu0 0.0
        %5257 = vmatpush1.msra.mxu0 0.0
        %5258 = vmatprep.subr.mxu0 0.0
        %5259 = vmatpush1.msra.mxu0 0.0
        %5260 = vmatprep.subr.mxu0 0.0
        %5261 = vmatpush1.msra.mxu0 0.0
        %5262 = vmatprep.subr.mxu0 0.0
        %5263 = vmatpush1.msra.mxu0 0.0
        %5264 = vmatprep.subr.mxu0 0.0
        %5265 = vmatpush1.msra.mxu0 0.0
        %5266 = vmatprep.subr.mxu0 0.0
        %5267 = vmatpush1.msra.mxu0 0.0
        %5268 = vmatprep.subr.mxu0 0.0
        %5269 = vmatpush1.msra.mxu0 0.0
        %5270 = vmatprep.subr.mxu0 0.0
        %5271 = vmatpush1.msra.mxu0 0.0
        %5272 = vmatprep.subr.mxu0 0.0
        %5273 = vmatpush1.msra.mxu0 0.0
        %5274 = vmatprep.subr.mxu0 0.0
        %5275 = vmatpush1.msra.mxu0 0.0
        %5276 = vmatprep.subr.mxu0 0.0
        %5277 = vmatpush1.msra.mxu0 0.0
        %5278 = vmatprep.mubr.f32.mxu0 0.0
        %v5279 = vand.u32 %v2264, 4294901760
        %v5280 = vsub.f32 %v2264, %v5279
        %5281 = vmatmul.mubr.f32.gmra.mrb[0].mxu0 %v5280
        %v5282 = vpop.f32.mrb[0].mxu0
        %v5283 = vadd.f32 %v5209, %v5282
        %v5284 = vpop.f32.mrb[0].mxu0
        %5285 = vdwg.mxu0
        %5286 = vmatprep.subr.mxu0 0.0
        %v5287 = vand.u32 %v5058, 4294901760
        %5288 = vmatpush1.msra.mxu0 %v5287
        %5289 = vmatprep.subr.mxu0 0.0
        %5290 = vmatpush1.msra.mxu0 0.0
        %5291 = vmatprep.subr.mxu0 0.0
        %5292 = vmatpush1.msra.mxu0 0.0
        %5293 = vmatprep.subr.mxu0 0.0
        %5294 = vmatpush1.msra.mxu0 0.0
        %5295 = vmatprep.subr.mxu0 0.0
        %5296 = vmatpush1.msra.mxu0 0.0
        %5297 = vmatprep.subr.mxu0 0.0
        %5298 = vmatpush1.msra.mxu0 0.0
        %5299 = vmatprep.subr.mxu0 0.0
        %5300 = vmatpush1.msra.mxu0 0.0
        %5301 = vmatprep.subr.mxu0 0.0
        %5302 = vmatpush1.msra.mxu0 0.0
        %5303 = vmatprep.subr.mxu0 0.0
        %5304 = vmatpush1.msra.mxu0 0.0
        %5305 = vmatprep.subr.mxu0 0.0
        %5306 = vmatpush1.msra.mxu0 0.0
        %5307 = vmatprep.subr.mxu0 0.0
        %5308 = vmatpush1.msra.mxu0 0.0
        %5309 = vmatprep.subr.mxu0 0.0
        %5310 = vmatpush1.msra.mxu0 0.0
        %5311 = vmatprep.subr.mxu0 0.0
        %5312 = vmatpush1.msra.mxu0 0.0
        %5313 = vmatprep.subr.mxu0 0.0
        %5314 = vmatpush1.msra.mxu0 0.0
        %5315 = vmatprep.subr.mxu0 0.0
        %5316 = vmatpush1.msra.mxu0 0.0
        %5317 = vmatprep.subr.mxu0 0.0
        %5318 = vmatpush1.msra.mxu0 0.0
        %5319 = vmatprep.subr.mxu0 0.0
        %5320 = vmatpush1.msra.mxu0 0.0
        %5321 = vmatprep.subr.mxu0 0.0
        %5322 = vmatpush1.msra.mxu0 0.0
        %5323 = vmatprep.subr.mxu0 0.0
        %5324 = vmatpush1.msra.mxu0 0.0
        %5325 = vmatprep.subr.mxu0 0.0
        %5326 = vmatpush1.msra.mxu0 0.0
        %5327 = vmatprep.subr.mxu0 0.0
        %5328 = vmatpush1.msra.mxu0 0.0
        %5329 = vmatprep.subr.mxu0 0.0
        %5330 = vmatpush1.msra.mxu0 0.0
        %5331 = vmatprep.subr.mxu0 0.0
        %5332 = vmatpush1.msra.mxu0 0.0
        %5333 = vmatprep.subr.mxu0 0.0
        %5334 = vmatpush1.msra.mxu0 0.0
        %5335 = vmatprep.subr.mxu0 0.0
        %5336 = vmatpush1.msra.mxu0 0.0
        %5337 = vmatprep.subr.mxu0 0.0
        %5338 = vmatpush1.msra.mxu0 0.0
        %5339 = vmatprep.subr.mxu0 0.0
        %5340 = vmatpush1.msra.mxu0 0.0
        %5341 = vmatprep.subr.mxu0 0.0
        %5342 = vmatpush1.msra.mxu0 0.0
        %5343 = vmatprep.subr.mxu0 0.0
        %5344 = vmatpush1.msra.mxu0 0.0
        %5345 = vmatprep.subr.mxu0 0.0
        %5346 = vmatpush1.msra.mxu0 0.0
        %5347 = vmatprep.subr.mxu0 0.0
        %5348 = vmatpush1.msra.mxu0 0.0
        %5349 = vmatprep.subr.mxu0 0.0
        %5350 = vmatpush1.msra.mxu0 0.0
        %5351 = vmatprep.mubr.f32.mxu0 0.0
        %v5352 = vand.u32 %v2264, 4294901760
        %v5353 = vsub.f32 %v2264, %v5352
        %v5354 = vand.u32 %v5353, 4294901760
        %5355 = vmatmul.mubr.f32.gmra.mrb[0].mxu0 %v5354
        %v5356 = vpop.f32.mrb[0].mxu0
        %v5357 = vadd.f32 %v5283, %v5356
        %v5358 = vpop.f32.mrb[0].mxu0
        %5359 = vdwg.mxu0
        %5360 = vmatprep.subr.mxu0 0.0
        %v5361 = vand.u32 %v5058, 4294901760
        %v5362 = vsub.f32 %v5058, %v5361
        %v5363 = vand.u32 %v5362, 4294901760
        %5364 = vmatpush1.msra.mxu0 %v5363
        %5365 = vmatprep.subr.mxu0 0.0
        %5366 = vmatpush1.msra.mxu0 0.0
        %5367 = vmatprep.subr.mxu0 0.0
        %5368 = vmatpush1.msra.mxu0 0.0
        %5369 = vmatprep.subr.mxu0 0.0
        %5370 = vmatpush1.msra.mxu0 0.0
        %5371 = vmatprep.subr.mxu0 0.0
        %5372 = vmatpush1.msra.mxu0 0.0
        %5373 = vmatprep.subr.mxu0 0.0
        %5374 = vmatpush1.msra.mxu0 0.0
        %5375 = vmatprep.subr.mxu0 0.0
        %5376 = vmatpush1.msra.mxu0 0.0
        %5377 = vmatprep.subr.mxu0 0.0
        %5378 = vmatpush1.msra.mxu0 0.0
        %5379 = vmatprep.subr.mxu0 0.0
        %5380 = vmatpush1.msra.mxu0 0.0
        %5381 = vmatprep.subr.mxu0 0.0
        %5382 = vmatpush1.msra.mxu0 0.0
        %5383 = vmatprep.subr.mxu0 0.0
        %5384 = vmatpush1.msra.mxu0 0.0
        %5385 = vmatprep.subr.mxu0 0.0
        %5386 = vmatpush1.msra.mxu0 0.0
        %5387 = vmatprep.subr.mxu0 0.0
        %5388 = vmatpush1.msra.mxu0 0.0
        %5389 = vmatprep.subr.mxu0 0.0
        %5390 = vmatpush1.msra.mxu0 0.0
        %5391 = vmatprep.subr.mxu0 0.0
        %5392 = vmatpush1.msra.mxu0 0.0
        %5393 = vmatprep.subr.mxu0 0.0
        %5394 = vmatpush1.msra.mxu0 0.0
        %5395 = vmatprep.subr.mxu0 0.0
        %5396 = vmatpush1.msra.mxu0 0.0
        %5397 = vmatprep.subr.mxu0 0.0
        %5398 = vmatpush1.msra.mxu0 0.0
        %5399 = vmatprep.subr.mxu0 0.0
        %5400 = vmatpush1.msra.mxu0 0.0
        %5401 = vmatprep.subr.mxu0 0.0
        %5402 = vmatpush1.msra.mxu0 0.0
        %5403 = vmatprep.subr.mxu0 0.0
        %5404 = vmatpush1.msra.mxu0 0.0
        %5405 = vmatprep.subr.mxu0 0.0
        %5406 = vmatpush1.msra.mxu0 0.0
        %5407 = vmatprep.subr.mxu0 0.0
        %5408 = vmatpush1.msra.mxu0 0.0
        %5409 = vmatprep.subr.mxu0 0.0
        %5410 = vmatpush1.msra.mxu0 0.0
        %5411 = vmatprep.subr.mxu0 0.0
        %5412 = vmatpush1.msra.mxu0 0.0
        %5413 = vmatprep.subr.mxu0 0.0
        %5414 = vmatpush1.msra.mxu0 0.0
        %5415 = vmatprep.subr.mxu0 0.0
        %5416 = vmatpush1.msra.mxu0 0.0
        %5417 = vmatprep.subr.mxu0 0.0
        %5418 = vmatpush1.msra.mxu0 0.0
        %5419 = vmatprep.subr.mxu0 0.0
        %5420 = vmatpush1.msra.mxu0 0.0
        %5421 = vmatprep.subr.mxu0 0.0
        %5422 = vmatpush1.msra.mxu0 0.0
        %5423 = vmatprep.subr.mxu0 0.0
        %5424 = vmatpush1.msra.mxu0 0.0
        %5425 = vmatprep.subr.mxu0 0.0
        %5426 = vmatpush1.msra.mxu0 0.0
        %5427 = vmatprep.mubr.f32.mxu0 0.0
        %v5428 = vand.u32 %v2264, 4294901760
        %5429 = vmatmul.mubr.f32.gmra.mrb[0].mxu0 %v5428
        %v5430 = vpop.f32.mrb[0].mxu0
        %v5431 = vadd.f32 %v5357, %v5430
        %v5432 = vpop.f32.mrb[0].mxu0
        %5433 = vdwg.mxu0
        %5434 = vmatprep.subr.mxu0 0.0
        %v5435 = vand.u32 %v5058, 4294901760
        %5436 = vmatpush1.msra.mxu0 %v5435
        %5437 = vmatprep.subr.mxu0 0.0
        %5438 = vmatpush1.msra.mxu0 0.0
        %5439 = vmatprep.subr.mxu0 0.0
        %5440 = vmatpush1.msra.mxu0 0.0
        %5441 = vmatprep.subr.mxu0 0.0
        %5442 = vmatpush1.msra.mxu0 0.0
        %5443 = vmatprep.subr.mxu0 0.0
        %5444 = vmatpush1.msra.mxu0 0.0
        %5445 = vmatprep.subr.mxu0 0.0
        %5446 = vmatpush1.msra.mxu0 0.0
        %5447 = vmatprep.subr.mxu0 0.0
        %5448 = vmatpush1.msra.mxu0 0.0
        %5449 = vmatprep.subr.mxu0 0.0
        %5450 = vmatpush1.msra.mxu0 0.0
        %5451 = vmatprep.subr.mxu0 0.0
        %5452 = vmatpush1.msra.mxu0 0.0
        %5453 = vmatprep.subr.mxu0 0.0
        %5454 = vmatpush1.msra.mxu0 0.0
        %5455 = vmatprep.subr.mxu0 0.0
        %5456 = vmatpush1.msra.mxu0 0.0
        %5457 = vmatprep.subr.mxu0 0.0
        %5458 = vmatpush1.msra.mxu0 0.0
        %5459 = vmatprep.subr.mxu0 0.0
        %5460 = vmatpush1.msra.mxu0 0.0
        %5461 = vmatprep.subr.mxu0 0.0
        %5462 = vmatpush1.msra.mxu0 0.0
        %5463 = vmatprep.subr.mxu0 0.0
        %5464 = vmatpush1.msra.mxu0 0.0
        %5465 = vmatprep.subr.mxu0 0.0
        %5466 = vmatpush1.msra.mxu0 0.0
        %5467 = vmatprep.subr.mxu0 0.0
        %5468 = vmatpush1.msra.mxu0 0.0
        %5469 = vmatprep.subr.mxu0 0.0
        %5470 = vmatpush1.msra.mxu0 0.0
        %5471 = vmatprep.subr.mxu0 0.0
        %5472 = vmatpush1.msra.mxu0 0.0
        %5473 = vmatprep.subr.mxu0 0.0
        %5474 = vmatpush1.msra.mxu0 0.0
        %5475 = vmatprep.subr.mxu0 0.0
        %5476 = vmatpush1.msra.mxu0 0.0
        %5477 = vmatprep.subr.mxu0 0.0
        %5478 = vmatpush1.msra.mxu0 0.0
        %5479 = vmatprep.subr.mxu0 0.0
        %5480 = vmatpush1.msra.mxu0 0.0
        %5481 = vmatprep.subr.mxu0 0.0
        %5482 = vmatpush1.msra.mxu0 0.0
        %5483 = vmatprep.subr.mxu0 0.0
        %5484 = vmatpush1.msra.mxu0 0.0
        %5485 = vmatprep.subr.mxu0 0.0
        %5486 = vmatpush1.msra.mxu0 0.0
        %5487 = vmatprep.subr.mxu0 0.0
        %5488 = vmatpush1.msra.mxu0 0.0
        %5489 = vmatprep.subr.mxu0 0.0
        %5490 = vmatpush1.msra.mxu0 0.0
        %5491 = vmatprep.subr.mxu0 0.0
        %5492 = vmatpush1.msra.mxu0 0.0
        %5493 = vmatprep.subr.mxu0 0.0
        %5494 = vmatpush1.msra.mxu0 0.0
        %5495 = vmatprep.subr.mxu0 0.0
        %5496 = vmatpush1.msra.mxu0 0.0
        %5497 = vmatprep.subr.mxu0 0.0
        %5498 = vmatpush1.msra.mxu0 0.0
        %5499 = vmatprep.mubr.f32.mxu0 0.0
        %v5500 = vand.u32 %v2264, 4294901760
        %5501 = vmatmul.mubr.f32.gmra.mrb[0].mxu0 %v5500
        %v5502 = vpop.f32.mrb[0].mxu0
        %v5503 = vadd.f32 %v5431, %v5502
        %v5504 = vpop.f32.mrb[0].mxu0
        %5505 = vdwg.mxu0
        %v5506 = vld [vmem:[%s3700] sm:$0xff]
        %v5507 = vld [vmem:[%s3700 + $0x8] sm:$0xff]
        %v5509 = vsel %vm2720, %v5503, 0
        %v5511 = vand.u32 %v2727, 4294901760
        %5512 = vmatprep.subr.mxu0 %v5511
        %v5513 = vand.u32 %v2725, 4294901760
        %5514 = vmatpush1.msra.mxu0 %v5513
        %5515 = vmatprep.subr.mxu0 0.0
        %5516 = vmatpush1.msra.mxu0 0.0
        %5517 = vmatprep.subr.mxu0 0.0
        %5518 = vmatpush1.msra.mxu0 0.0
        %5519 = vmatprep.subr.mxu0 0.0
        %5520 = vmatpush1.msra.mxu0 0.0
        %5521 = vmatprep.subr.mxu0 0.0
        %5522 = vmatpush1.msra.mxu0 0.0
        %5523 = vmatprep.subr.mxu0 0.0
        %5524 = vmatpush1.msra.mxu0 0.0
        %5525 = vmatprep.subr.mxu0 0.0
        %5526 = vmatpush1.msra.mxu0 0.0
        %5527 = vmatprep.subr.mxu0 0.0
        %5528 = vmatpush1.msra.mxu0 0.0
        %5529 = vmatprep.subr.mxu0 0.0
        %5530 = vmatpush1.msra.mxu0 0.0
        %5531 = vmatprep.subr.mxu0 0.0
        %5532 = vmatpush1.msra.mxu0 0.0
        %5533 = vmatprep.subr.mxu0 0.0
        %5534 = vmatpush1.msra.mxu0 0.0
        %5535 = vmatprep.subr.mxu0 0.0
        %5536 = vmatpush1.msra.mxu0 0.0
        %5537 = vmatprep.subr.mxu0 0.0
        %5538 = vmatpush1.msra.mxu0 0.0
        %5539 = vmatprep.subr.mxu0 0.0
        %5540 = vmatpush1.msra.mxu0 0.0
        %5541 = vmatprep.subr.mxu0 0.0
        %5542 = vmatpush1.msra.mxu0 0.0
        %5543 = vmatprep.subr.mxu0 0.0
        %5544 = vmatpush1.msra.mxu0 0.0
        %5545 = vmatprep.subr.mxu0 0.0
        %5546 = vmatpush1.msra.mxu0 0.0
        %5547 = vmatprep.subr.mxu0 0.0
        %5548 = vmatpush1.msra.mxu0 0.0
        %5549 = vmatprep.subr.mxu0 0.0
        %5550 = vmatpush1.msra.mxu0 0.0
        %5551 = vmatprep.subr.mxu0 0.0
        %5552 = vmatpush1.msra.mxu0 0.0
        %5553 = vmatprep.subr.mxu0 0.0
        %5554 = vmatpush1.msra.mxu0 0.0
        %5555 = vmatprep.subr.mxu0 0.0
        %5556 = vmatpush1.msra.mxu0 0.0
        %5557 = vmatprep.subr.mxu0 0.0
        %5558 = vmatpush1.msra.mxu0 0.0
        %5559 = vmatprep.subr.mxu0 0.0
        %5560 = vmatpush1.msra.mxu0 0.0
        %5561 = vmatprep.subr.mxu0 0.0
        %5562 = vmatpush1.msra.mxu0 0.0
        %5563 = vmatprep.subr.mxu0 0.0
        %5564 = vmatpush1.msra.mxu0 0.0
        %5565 = vmatprep.subr.mxu0 0.0
        %5566 = vmatpush1.msra.mxu0 0.0
        %5567 = vmatprep.subr.mxu0 0.0
        %5568 = vmatpush1.msra.mxu0 0.0
        %5569 = vmatprep.subr.mxu0 0.0
        %5570 = vmatpush1.msra.mxu0 0.0
        %5571 = vmatprep.subr.mxu0 0.0
        %5572 = vmatpush1.msra.mxu0 0.0
        %5573 = vmatprep.subr.mxu0 0.0
        %5574 = vmatpush1.msra.mxu0 0.0
        %5575 = vmatprep.subr.mxu0 0.0
        %5576 = vmatpush1.msra.mxu0 0.0
        %5577 = vmatprep.mubr.f32.mxu0 0.0
        %v5578 = vand.u32 %v5509, 4294901760
        %v5579 = vsub.f32 %v5509, %v5578
        %v5580 = vand.u32 %v5579, 4294901760
        %v5581 = vsub.f32 %v5579, %v5580
        %v5582 = vand.u32 %v5581, 4294901760
        %5583 = vmatmul.mubr.f32.gmra.mrb[0].mxu0 %v5582
        %v5584 = vpop.f32.mrb[0].mxu0
        %v5585 = vadd.f32 0.0, %v5584
        %v5586 = vpop.f32.mrb[0].mxu0
        %v5587 = vadd.f32 0.0, %v5586
        %5588 = vdwg.mxu0
        %v5589 = vand.u32 %v2727, 4294901760
        %v5590 = vsub.f32 %v2727, %v5589
        %v5591 = vand.u32 %v5590, 4294901760
        %v5592 = vsub.f32 %v5590, %v5591
        %v5593 = vand.u32 %v5592, 4294901760
        %5594 = vmatprep.subr.mxu0 %v5593
        %v5595 = vand.u32 %v2725, 4294901760
        %v5596 = vsub.f32 %v2725, %v5595
        %v5597 = vand.u32 %v5596, 4294901760
        %v5598 = vsub.f32 %v5596, %v5597
        %v5599 = vand.u32 %v5598, 4294901760
        %5600 = vmatpush1.msra.mxu0 %v5599
        %5601 = vmatprep.subr.mxu0 0.0
        %5602 = vmatpush1.msra.mxu0 0.0
        %5603 = vmatprep.subr.mxu0 0.0
        %5604 = vmatpush1.msra.mxu0 0.0
        %5605 = vmatprep.subr.mxu0 0.0
        %5606 = vmatpush1.msra.mxu0 0.0
        %5607 = vmatprep.subr.mxu0 0.0
        %5608 = vmatpush1.msra.mxu0 0.0
        %5609 = vmatprep.subr.mxu0 0.0
        %5610 = vmatpush1.msra.mxu0 0.0
        %5611 = vmatprep.subr.mxu0 0.0
        %5612 = vmatpush1.msra.mxu0 0.0
        %5613 = vmatprep.subr.mxu0 0.0
        %5614 = vmatpush1.msra.mxu0 0.0
        %5615 = vmatprep.subr.mxu0 0.0
        %5616 = vmatpush1.msra.mxu0 0.0
        %5617 = vmatprep.subr.mxu0 0.0
        %5618 = vmatpush1.msra.mxu0 0.0
        %5619 = vmatprep.subr.mxu0 0.0
        %5620 = vmatpush1.msra.mxu0 0.0
        %5621 = vmatprep.subr.mxu0 0.0
        %5622 = vmatpush1.msra.mxu0 0.0
        %5623 = vmatprep.subr.mxu0 0.0
        %5624 = vmatpush1.msra.mxu0 0.0
        %5625 = vmatprep.subr.mxu0 0.0
        %5626 = vmatpush1.msra.mxu0 0.0
        %5627 = vmatprep.subr.mxu0 0.0
        %5628 = vmatpush1.msra.mxu0 0.0
        %5629 = vmatprep.subr.mxu0 0.0
        %5630 = vmatpush1.msra.mxu0 0.0
        %5631 = vmatprep.subr.mxu0 0.0
        %5632 = vmatpush1.msra.mxu0 0.0
        %5633 = vmatprep.subr.mxu0 0.0
        %5634 = vmatpush1.msra.mxu0 0.0
        %5635 = vmatprep.subr.mxu0 0.0
        %5636 = vmatpush1.msra.mxu0 0.0
        %5637 = vmatprep.subr.mxu0 0.0
        %5638 = vmatpush1.msra.mxu0 0.0
        %5639 = vmatprep.subr.mxu0 0.0
        %5640 = vmatpush1.msra.mxu0 0.0
        %5641 = vmatprep.subr.mxu0 0.0
        %5642 = vmatpush1.msra.mxu0 0.0
        %5643 = vmatprep.subr.mxu0 0.0
        %5644 = vmatpush1.msra.mxu0 0.0
        %5645 = vmatprep.subr.mxu0 0.0
        %5646 = vmatpush1.msra.mxu0 0.0
        %5647 = vmatprep.subr.mxu0 0.0
        %5648 = vmatpush1.msra.mxu0 0.0
        %5649 = vmatprep.subr.mxu0 0.0
        %5650 = vmatpush1.msra.mxu0 0.0
        %5651 = vmatprep.subr.mxu0 0.0
        %5652 = vmatpush1.msra.mxu0 0.0
        %5653 = vmatprep.subr.mxu0 0.0
        %5654 = vmatpush1.msra.mxu0 0.0
        %5655 = vmatprep.subr.mxu0 0.0
        %5656 = vmatpush1.msra.mxu0 0.0
        %5657 = vmatprep.subr.mxu0 0.0
        %5658 = vmatpush1.msra.mxu0 0.0
        %5659 = vmatprep.subr.mxu0 0.0
        %5660 = vmatpush1.msra.mxu0 0.0
        %5661 = vmatprep.subr.mxu0 0.0
        %5662 = vmatpush1.msra.mxu0 0.0
        %5663 = vmatprep.mubr.f32.mxu0 0.0
        %v5664 = vand.u32 %v5509, 4294901760
        %5665 = vmatmul.mubr.f32.gmra.mrb[0].mxu0 %v5664
        %v5666 = vpop.f32.mrb[0].mxu0
        %v5667 = vadd.f32 %v5585, %v5666
        %v5668 = vpop.f32.mrb[0].mxu0
        %v5669 = vadd.f32 %v5587, %v5668
        %5670 = vdwg.mxu0
        %v5671 = vand.u32 %v2727, 4294901760
        %v5672 = vsub.f32 %v2727, %v5671
        %5673 = vmatprep.subr.mxu0 %v5672
        %v5674 = vand.u32 %v2725, 4294901760
        %v5675 = vsub.f32 %v2725, %v5674
        %5676 = vmatpush1.msra.mxu0 %v5675
        %5677 = vmatprep.subr.mxu0 0.0
        %5678 = vmatpush1.msra.mxu0 0.0
        %5679 = vmatprep.subr.mxu0 0.0
        %5680 = vmatpush1.msra.mxu0 0.0
        %5681 = vmatprep.subr.mxu0 0.0
        %5682 = vmatpush1.msra.mxu0 0.0
        %5683 = vmatprep.subr.mxu0 0.0
        %5684 = vmatpush1.msra.mxu0 0.0
        %5685 = vmatprep.subr.mxu0 0.0
        %5686 = vmatpush1.msra.mxu0 0.0
        %5687 = vmatprep.subr.mxu0 0.0
        %5688 = vmatpush1.msra.mxu0 0.0
        %5689 = vmatprep.subr.mxu0 0.0
        %5690 = vmatpush1.msra.mxu0 0.0
        %5691 = vmatprep.subr.mxu0 0.0
        %5692 = vmatpush1.msra.mxu0 0.0
        %5693 = vmatprep.subr.mxu0 0.0
        %5694 = vmatpush1.msra.mxu0 0.0
        %5695 = vmatprep.subr.mxu0 0.0
        %5696 = vmatpush1.msra.mxu0 0.0
        %5697 = vmatprep.subr.mxu0 0.0
        %5698 = vmatpush1.msra.mxu0 0.0
        %5699 = vmatprep.subr.mxu0 0.0
        %5700 = vmatpush1.msra.mxu0 0.0
        %5701 = vmatprep.subr.mxu0 0.0
        %5702 = vmatpush1.msra.mxu0 0.0
        %5703 = vmatprep.subr.mxu0 0.0
        %5704 = vmatpush1.msra.mxu0 0.0
        %5705 = vmatprep.subr.mxu0 0.0
        %5706 = vmatpush1.msra.mxu0 0.0
        %5707 = vmatprep.subr.mxu0 0.0
        %5708 = vmatpush1.msra.mxu0 0.0
        %5709 = vmatprep.subr.mxu0 0.0
        %5710 = vmatpush1.msra.mxu0 0.0
        %5711 = vmatprep.subr.mxu0 0.0
        %5712 = vmatpush1.msra.mxu0 0.0
        %5713 = vmatprep.subr.mxu0 0.0
        %5714 = vmatpush1.msra.mxu0 0.0
        %5715 = vmatprep.subr.mxu0 0.0
        %5716 = vmatpush1.msra.mxu0 0.0
        %5717 = vmatprep.subr.mxu0 0.0
        %5718 = vmatpush1.msra.mxu0 0.0
        %5719 = vmatprep.subr.mxu0 0.0
        %5720 = vmatpush1.msra.mxu0 0.0
        %5721 = vmatprep.subr.mxu0 0.0
        %5722 = vmatpush1.msra.mxu0 0.0
        %5723 = vmatprep.subr.mxu0 0.0
        %5724 = vmatpush1.msra.mxu0 0.0
        %5725 = vmatprep.subr.mxu0 0.0
        %5726 = vmatpush1.msra.mxu0 0.0
        %5727 = vmatprep.subr.mxu0 0.0
        %5728 = vmatpush1.msra.mxu0 0.0
        %5729 = vmatprep.subr.mxu0 0.0
        %5730 = vmatpush1.msra.mxu0 0.0
        %5731 = vmatprep.subr.mxu0 0.0
        %5732 = vmatpush1.msra.mxu0 0.0
        %5733 = vmatprep.subr.mxu0 0.0
        %5734 = vmatpush1.msra.mxu0 0.0
        %5735 = vmatprep.subr.mxu0 0.0
        %5736 = vmatpush1.msra.mxu0 0.0
        %5737 = vmatprep.subr.mxu0 0.0
        %5738 = vmatpush1.msra.mxu0 0.0
        %5739 = vmatprep.mubr.f32.mxu0 0.0
        %v5740 = vand.u32 %v5509, 4294901760
        %v5741 = vsub.f32 %v5509, %v5740
        %5742 = vmatmul.mubr.f32.gmra.mrb[0].mxu0 %v5741
        %v5743 = vpop.f32.mrb[0].mxu0
        %v5744 = vadd.f32 %v5667, %v5743
        %v5745 = vpop.f32.mrb[0].mxu0
        %v5746 = vadd.f32 %v5669, %v5745
        %5747 = vdwg.mxu0
        %v5748 = vand.u32 %v2727, 4294901760
        %5749 = vmatprep.subr.mxu0 %v5748
        %v5750 = vand.u32 %v2725, 4294901760
        %5751 = vmatpush1.msra.mxu0 %v5750
        %5752 = vmatprep.subr.mxu0 0.0
        %5753 = vmatpush1.msra.mxu0 0.0
        %5754 = vmatprep.subr.mxu0 0.0
        %5755 = vmatpush1.msra.mxu0 0.0
        %5756 = vmatprep.subr.mxu0 0.0
        %5757 = vmatpush1.msra.mxu0 0.0
        %5758 = vmatprep.subr.mxu0 0.0
        %5759 = vmatpush1.msra.mxu0 0.0
        %5760 = vmatprep.subr.mxu0 0.0
        %5761 = vmatpush1.msra.mxu0 0.0
        %5762 = vmatprep.subr.mxu0 0.0
        %5763 = vmatpush1.msra.mxu0 0.0
        %5764 = vmatprep.subr.mxu0 0.0
        %5765 = vmatpush1.msra.mxu0 0.0
        %5766 = vmatprep.subr.mxu0 0.0
        %5767 = vmatpush1.msra.mxu0 0.0
        %5768 = vmatprep.subr.mxu0 0.0
        %5769 = vmatpush1.msra.mxu0 0.0
        %5770 = vmatprep.subr.mxu0 0.0
        %5771 = vmatpush1.msra.mxu0 0.0
        %5772 = vmatprep.subr.mxu0 0.0
        %5773 = vmatpush1.msra.mxu0 0.0
        %5774 = vmatprep.subr.mxu0 0.0
        %5775 = vmatpush1.msra.mxu0 0.0
        %5776 = vmatprep.subr.mxu0 0.0
        %5777 = vmatpush1.msra.mxu0 0.0
        %5778 = vmatprep.subr.mxu0 0.0
        %5779 = vmatpush1.msra.mxu0 0.0
        %5780 = vmatprep.subr.mxu0 0.0
        %5781 = vmatpush1.msra.mxu0 0.0
        %5782 = vmatprep.subr.mxu0 0.0
        %5783 = vmatpush1.msra.mxu0 0.0
        %5784 = vmatprep.subr.mxu0 0.0
        %5785 = vmatpush1.msra.mxu0 0.0
        %5786 = vmatprep.subr.mxu0 0.0
        %5787 = vmatpush1.msra.mxu0 0.0
        %5788 = vmatprep.subr.mxu0 0.0
        %5789 = vmatpush1.msra.mxu0 0.0
        %5790 = vmatprep.subr.mxu0 0.0
        %5791 = vmatpush1.msra.mxu0 0.0
        %5792 = vmatprep.subr.mxu0 0.0
        %5793 = vmatpush1.msra.mxu0 0.0
        %5794 = vmatprep.subr.mxu0 0.0
        %5795 = vmatpush1.msra.mxu0 0.0
        %5796 = vmatprep.subr.mxu0 0.0
        %5797 = vmatpush1.msra.mxu0 0.0
        %5798 = vmatprep.subr.mxu0 0.0
        %5799 = vmatpush1.msra.mxu0 0.0
        %5800 = vmatprep.subr.mxu0 0.0
        %5801 = vmatpush1.msra.mxu0 0.0
        %5802 = vmatprep.subr.mxu0 0.0
        %5803 = vmatpush1.msra.mxu0 0.0
        %5804 = vmatprep.subr.mxu0 0.0
        %5805 = vmatpush1.msra.mxu0 0.0
        %5806 = vmatprep.subr.mxu0 0.0
        %5807 = vmatpush1.msra.mxu0 0.0
        %5808 = vmatprep.subr.mxu0 0.0
        %5809 = vmatpush1.msra.mxu0 0.0
        %5810 = vmatprep.subr.mxu0 0.0
        %5811 = vmatpush1.msra.mxu0 0.0
        %5812 = vmatprep.subr.mxu0 0.0
        %5813 = vmatpush1.msra.mxu0 0.0
        %5814 = vmatprep.mubr.f32.mxu0 0.0
        %v5815 = vand.u32 %v5509, 4294901760
        %v5816 = vsub.f32 %v5509, %v5815
        %v5817 = vand.u32 %v5816, 4294901760
        %5818 = vmatmul.mubr.f32.gmra.mrb[0].mxu0 %v5817
        %v5819 = vpop.f32.mrb[0].mxu0
        %v5820 = vadd.f32 %v5744, %v5819
        %v5821 = vpop.f32.mrb[0].mxu0
        %v5822 = vadd.f32 %v5746, %v5821
        %5823 = vdwg.mxu0
        %v5824 = vand.u32 %v2727, 4294901760
        %v5825 = vsub.f32 %v2727, %v5824
        %v5826 = vand.u32 %v5825, 4294901760
        %5827 = vmatprep.subr.mxu0 %v5826
        %v5828 = vand.u32 %v2725, 4294901760
        %v5829 = vsub.f32 %v2725, %v5828
        %v5830 = vand.u32 %v5829, 4294901760
        %5831 = vmatpush1.msra.mxu0 %v5830
        %5832 = vmatprep.subr.mxu0 0.0
        %5833 = vmatpush1.msra.mxu0 0.0
        %5834 = vmatprep.subr.mxu0 0.0
        %5835 = vmatpush1.msra.mxu0 0.0
        %5836 = vmatprep.subr.mxu0 0.0
        %5837 = vmatpush1.msra.mxu0 0.0
        %5838 = vmatprep.subr.mxu0 0.0
        %5839 = vmatpush1.msra.mxu0 0.0
        %5840 = vmatprep.subr.mxu0 0.0
        %5841 = vmatpush1.msra.mxu0 0.0
        %5842 = vmatprep.subr.mxu0 0.0
        %5843 = vmatpush1.msra.mxu0 0.0
        %5844 = vmatprep.subr.mxu0 0.0
        %5845 = vmatpush1.msra.mxu0 0.0
        %5846 = vmatprep.subr.mxu0 0.0
        %5847 = vmatpush1.msra.mxu0 0.0
        %5848 = vmatprep.subr.mxu0 0.0
        %5849 = vmatpush1.msra.mxu0 0.0
        %5850 = vmatprep.subr.mxu0 0.0
        %5851 = vmatpush1.msra.mxu0 0.0
        %5852 = vmatprep.subr.mxu0 0.0
        %5853 = vmatpush1.msra.mxu0 0.0
        %5854 = vmatprep.subr.mxu0 0.0
        %5855 = vmatpush1.msra.mxu0 0.0
        %5856 = vmatprep.subr.mxu0 0.0
        %5857 = vmatpush1.msra.mxu0 0.0
        %5858 = vmatprep.subr.mxu0 0.0
        %5859 = vmatpush1.msra.mxu0 0.0
        %5860 = vmatprep.subr.mxu0 0.0
        %5861 = vmatpush1.msra.mxu0 0.0
        %5862 = vmatprep.subr.mxu0 0.0
        %5863 = vmatpush1.msra.mxu0 0.0
        %5864 = vmatprep.subr.mxu0 0.0
        %5865 = vmatpush1.msra.mxu0 0.0
        %5866 = vmatprep.subr.mxu0 0.0
        %5867 = vmatpush1.msra.mxu0 0.0
        %5868 = vmatprep.subr.mxu0 0.0
        %5869 = vmatpush1.msra.mxu0 0.0
        %5870 = vmatprep.subr.mxu0 0.0
        %5871 = vmatpush1.msra.mxu0 0.0
        %5872 = vmatprep.subr.mxu0 0.0
        %5873 = vmatpush1.msra.mxu0 0.0
        %5874 = vmatprep.subr.mxu0 0.0
        %5875 = vmatpush1.msra.mxu0 0.0
        %5876 = vmatprep.subr.mxu0 0.0
        %5877 = vmatpush1.msra.mxu0 0.0
        %5878 = vmatprep.subr.mxu0 0.0
        %5879 = vmatpush1.msra.mxu0 0.0
        %5880 = vmatprep.subr.mxu0 0.0
        %5881 = vmatpush1.msra.mxu0 0.0
        %5882 = vmatprep.subr.mxu0 0.0
        %5883 = vmatpush1.msra.mxu0 0.0
        %5884 = vmatprep.subr.mxu0 0.0
        %5885 = vmatpush1.msra.mxu0 0.0
        %5886 = vmatprep.subr.mxu0 0.0
        %5887 = vmatpush1.msra.mxu0 0.0
        %5888 = vmatprep.subr.mxu0 0.0
        %5889 = vmatpush1.msra.mxu0 0.0
        %5890 = vmatprep.subr.mxu0 0.0
        %5891 = vmatpush1.msra.mxu0 0.0
        %5892 = vmatprep.subr.mxu0 0.0
        %5893 = vmatpush1.msra.mxu0 0.0
        %5894 = vmatprep.mubr.f32.mxu0 0.0
        %v5895 = vand.u32 %v5509, 4294901760
        %5896 = vmatmul.mubr.f32.gmra.mrb[0].mxu0 %v5895
        %v5897 = vpop.f32.mrb[0].mxu0
        %v5898 = vadd.f32 %v5820, %v5897
        %v5899 = vpop.f32.mrb[0].mxu0
        %v5900 = vadd.f32 %v5822, %v5899
        %5901 = vdwg.mxu0
        %v5902 = vand.u32 %v2727, 4294901760
        %5903 = vmatprep.subr.mxu0 %v5902
        %v5904 = vand.u32 %v2725, 4294901760
        %5905 = vmatpush1.msra.mxu0 %v5904
        %5906 = vmatprep.subr.mxu0 0.0
        %5907 = vmatpush1.msra.mxu0 0.0
        %5908 = vmatprep.subr.mxu0 0.0
        %5909 = vmatpush1.msra.mxu0 0.0
        %5910 = vmatprep.subr.mxu0 0.0
        %5911 = vmatpush1.msra.mxu0 0.0
        %5912 = vmatprep.subr.mxu0 0.0
        %5913 = vmatpush1.msra.mxu0 0.0
        %5914 = vmatprep.subr.mxu0 0.0
        %5915 = vmatpush1.msra.mxu0 0.0
        %5916 = vmatprep.subr.mxu0 0.0
        %5917 = vmatpush1.msra.mxu0 0.0
        %5918 = vmatprep.subr.mxu0 0.0
        %5919 = vmatpush1.msra.mxu0 0.0
        %5920 = vmatprep.subr.mxu0 0.0
        %5921 = vmatpush1.msra.mxu0 0.0
        %5922 = vmatprep.subr.mxu0 0.0
        %5923 = vmatpush1.msra.mxu0 0.0
        %5924 = vmatprep.subr.mxu0 0.0
        %5925 = vmatpush1.msra.mxu0 0.0
        %5926 = vmatprep.subr.mxu0 0.0
        %5927 = vmatpush1.msra.mxu0 0.0
        %5928 = vmatprep.subr.mxu0 0.0
        %5929 = vmatpush1.msra.mxu0 0.0
        %5930 = vmatprep.subr.mxu0 0.0
        %5931 = vmatpush1.msra.mxu0 0.0
        %5932 = vmatprep.subr.mxu0 0.0
        %5933 = vmatpush1.msra.mxu0 0.0
        %5934 = vmatprep.subr.mxu0 0.0
        %5935 = vmatpush1.msra.mxu0 0.0
        %5936 = vmatprep.subr.mxu0 0.0
        %5937 = vmatpush1.msra.mxu0 0.0
        %5938 = vmatprep.subr.mxu0 0.0
        %5939 = vmatpush1.msra.mxu0 0.0
        %5940 = vmatprep.subr.mxu0 0.0
        %5941 = vmatpush1.msra.mxu0 0.0
        %5942 = vmatprep.subr.mxu0 0.0
        %5943 = vmatpush1.msra.mxu0 0.0
        %5944 = vmatprep.subr.mxu0 0.0
        %5945 = vmatpush1.msra.mxu0 0.0
        %5946 = vmatprep.subr.mxu0 0.0
        %5947 = vmatpush1.msra.mxu0 0.0
        %5948 = vmatprep.subr.mxu0 0.0
        %5949 = vmatpush1.msra.mxu0 0.0
        %5950 = vmatprep.subr.mxu0 0.0
        %5951 = vmatpush1.msra.mxu0 0.0
        %5952 = vmatprep.subr.mxu0 0.0
        %5953 = vmatpush1.msra.mxu0 0.0
        %5954 = vmatprep.subr.mxu0 0.0
        %5955 = vmatpush1.msra.mxu0 0.0
        %5956 = vmatprep.subr.mxu0 0.0
        %5957 = vmatpush1.msra.mxu0 0.0
        %5958 = vmatprep.subr.mxu0 0.0
        %5959 = vmatpush1.msra.mxu0 0.0
        %5960 = vmatprep.subr.mxu0 0.0
        %5961 = vmatpush1.msra.mxu0 0.0
        %5962 = vmatprep.subr.mxu0 0.0
        %5963 = vmatpush1.msra.mxu0 0.0
        %5964 = vmatprep.subr.mxu0 0.0
        %5965 = vmatpush1.msra.mxu0 0.0
        %5966 = vmatprep.subr.mxu0 0.0
        %5967 = vmatpush1.msra.mxu0 0.0
        %5968 = vmatprep.mubr.f32.mxu0 0.0
        %v5969 = vand.u32 %v5509, 4294901760
        %5970 = vmatmul.mubr.f32.gmra.mrb[0].mxu0 %v5969
        %v5971 = vpop.f32.mrb[0].mxu0
        %v5972 = vadd.f32 %v5898, %v5971
        %v5973 = vpop.f32.mrb[0].mxu0
        %v5974 = vadd.f32 %v5900, %v5973
        %5975 = vdwg.mxu0
        %v5976 = vadd.f32 %v5506, %v5972
        %v5977 = vadd.f32 %v5507, %v5974
        %5978 = vst [vmem:[%s3700] sm:$0xff] %v5976
        %5979 = vst [vmem:[%s3700 + $0x8] sm:$0xff] %v5977
        %s5980 = sand.u32 %s227, 1
        %s5981 = scalar_lea.sflag [#allocation4], %s5980
        %s5982 = sand.u32 %s227, 1
        %s5983 = smul.addr %s5982, 32
        %s5984 = scalar_lea.vmem [#allocation3], %s5983
        // Predicated region
        $region57: #{tpu_custom_call.1} parent=55 // pred_check
          %p5985 = pneg %p237
        $region58: #{tpu_custom_call.1} parent=55 // pred_check_branch
          %5987 = sbr.rel (%p5985) target = $region60
        $region59: #{tpu_custom_call.1} parent=55 // pred_region
          %s5988 = smul.u32 2, %s25
          %s5990 = ssub.s32 512, 512
          %5991 = vsyncadd %s5981, %s5990
          %s5992 = smul.addr %s5988, 2
          %s5993 = smul.addr %s5992, 128
          %s5994 = scalar_lea.hbm %s9, %s5993
          %s5995 = sshll.u32 %s5984, 4
          %s5996 = int_to_ptr.vmem [resolvable:$true] %s5995
          %6001 = dma.vmem_to_hbm [thread:$0]  %s5996, 512, %s5994, %s5981, 256, 256, 16
        $region60: #{tpu_custom_call.1} parent=55 // pred_fallthru
          _
      $region56: #{tpu_custom_call.1} parent=5 // pred_fallthru
        _
      %p6002 = scmp.le.s32.totalorder 2, %s20
      // Predicated region
      $region61: #{tpu_custom_call.1} parent=5 // pred_check
        %p6003 = pneg %p6002
      $region62: #{tpu_custom_call.1} parent=5 // pred_check_branch
        %6005 = sbr.rel (%p6003) target = $region64
      $region63: #{tpu_custom_call.1} parent=5 // pred_region
        %s6006 = ssub.s32 %s20, 2
        // Predicated region
        $region65: #{tpu_custom_call.1} parent=63 // pred_check
          %p6007 = pneg %p243
        $region66: #{tpu_custom_call.1} parent=63 // pred_check_branch
          %6009 = sbr.rel (%p6007) target = $region68
        $region67: #{tpu_custom_call.1} parent=63 // pred_region
          %s6010 = sand.u32 %s228, 1
          %s6011 = scalar_lea.sflag [#allocation4], %s6010
          %s6012 = sand.u32 %s228, 1
          %s6013 = smul.addr %s6012, 32
          %s6014 = scalar_lea.vmem [#allocation3], %s6013
          %6015 = dma.done %s6011, 512
        $region68: #{tpu_custom_call.1} parent=63 // pred_fallthru
          _
      $region64: #{tpu_custom_call.1} parent=5 // pred_fallthru
        _
    $region6: #{tpu_custom_call.1} parent=1 // loop_footer
      %s24 = sadd.s32 1, %s20
    $region7: #{tpu_custom_call.1} parent=1 // loop_footer_branch
      %19 = sbr.rel target = $region3
    $region8: #{tpu_custom_call.1} parent=1 // loop_exit
      _
    %6016 = vsyncpa [#allocation4], 1
    %s6017 = scalar_lea.sflag [#allocation4], 1
    %6018 = vsyncpa %s6017, 1

</llo_original>
